<compile_context>
chip_gen: v7x
topology: tpu7x:2x2x1
jax: 0.10.0
libtpu: 0.0.40
codegen_flags: <defaults>
</compile_context>

<pallas_src>
import jax
import jax.numpy as jnp
from jax import lax
from jax.experimental import pallas as pl
from jax.experimental.pallas import tpu as pltpu


def _make_conv_gru_kernel(rows, W, Ch, KH, KW):
    """Per-row-block ConvGRU-cell kernel (static shapes closed over).

    A row block always covers a whole number of images, so the cyclic
    reset-shift trick below is exact: wherever a shifted row index leaves the
    source image (or wraps around the block), the matching h-tap patch column
    is the conv's SAME zero padding, which kills the wrapped value.
    """
    R = rows

    def kernel(patches_ref, h_ref, w1_ref, b1_ref, w2_ref, out_ref, reset2_ref):
        # patches_ref: (R, KP)      bf16  cols = [9 h-taps | 9 x-taps | 0-pad]
        # h_ref      : (R, Ch)      f32   current hidden state (unpadded)
        # w1_ref     : (KP, 3Ch)    bf16  [conv_gates | conv_can x-part] weights
        # b1_ref     : (1, 3Ch)     f32   [gates bias | candidate bias]
        # w2_ref     : (T, Ch, Ch)  f32   conv_can h-part weights, per tap
        # out_ref    : (R, Ch)      f32   h_next
        # reset2_ref : (2R, Ch)     f32   scratch: doubled reset gate (row shifts)
        patches = patches_ref[...]

        # ---- fused conv #1 (one MXU dot): gates pre-act + conv_can x-path ----
        pre = jnp.dot(patches, w1_ref[...],
                      preferred_element_type=jnp.float32) + b1_ref[...]
        reset = jax.nn.sigmoid(pre[:, 0:Ch])           # gamma -> reset gate
        update = jax.nn.sigmoid(pre[:, Ch:2 * Ch])     # beta  -> update gate
        cc_x = pre[:, 2 * Ch:3 * Ch]                   # conv_can x-path (+ bias)

        # ---- conv #2 h-path: per-tap (shifted reset) * h-tap -> 9 small dots
        # reset2 = [reset; reset]: a static row slice at offset s gives the
        # reset gate cyclically shifted by s over the flattened row index.
        # Wrapped/off-image rows multiply the zero h-tap padding, so it is exact.
        reset2_ref[0:R, :] = reset
        reset2_ref[R:2 * R, :] = reset

        cc_h = None
        tap = 0
        for dh in range(-(KH // 2), KH // 2 + 1):
            for dw in range(-(KW // 2), KW // 2 + 1):
                s = (dh * W + dw) % R                  # static shift per tap
                r_s = reset2_ref[s:s + R, :]           # (R, Ch) f32, shifted reset
                h_t = patches[:, tap * Ch:(tap + 1) * Ch].astype(jnp.float32)
                d = jnp.dot(r_s * h_t, w2_ref[tap],
                            preferred_element_type=jnp.float32)
                cc_h = d if cc_h is None else cc_h + d
                tap += 1

        # ---- GRU state update (f32 elementwise) ------------------------------
        cnm = jnp.tanh(cc_x + cc_h)
        h_cur = h_ref[...]
        out_ref[...] = (1.0 - update) * h_cur + update * cnm

    return kernel


def _pick_images_per_block(B, M, target_rows=2048):
    """Whole-image row blocks: amortise per-step overhead, bound VMEM/step."""
    ipb = max(1, min(B, target_rows // max(M, 1)))
    while B % ipb:
        ipb -= 1
    if ipb == B and B > 1:
        # prefer >=2 grid steps so the v7x megacore split has work for both TCs
        for f in range(2, B + 1):
            if B % f == 0:
                ipb = B // f
                break
    return ipb


def conv_gru_cell(x_nchw, h_nchw, wg, bg, wc, bc, kernel_size=(3, 3)):
    """ConvGRUCell.forward: NCHW in / NCHW out (PyTorch module semantics).

    wg: (KH, KW, Cx+Ch, 2*Ch) HWIO conv_gates weight, bg: (2*Ch,)
    wc: (KH, KW, Cx+Ch, Ch)   HWIO conv_can   weight, bc: (Ch,)
    """
    B, Cx, H, W = x_nchw.shape
    Ch = h_nchw.shape[1]
    KH, KW = kernel_size
    pH, pW = KH // 2, KW // 2
    T = KH * KW
    HC, XC = T * Ch, T * Cx
    K_raw = HC + XC
    KP = ((K_raw + 127) // 128) * 128        # pad K to a lane-aligned multiple of 128
    NG = 3 * Ch                              # fused cols: [gates(2Ch) | can-x(Ch)]
    M = H * W

    # ---- layout plumbing (plain JAX): NCHW -> NHWC, bf16 BEFORE pad/im2col so
    # the HBM patch intermediate is half the size (review: im2col amplification).
    x16 = jnp.transpose(x_nchw, (0, 2, 3, 1)).astype(jnp.bfloat16)
    h_f32 = jnp.transpose(h_nchw, (0, 2, 3, 1)).astype(jnp.float32)
    h16 = h_f32.astype(jnp.bfloat16)
    xp = jnp.pad(x16, ((0, 0), (pH, pH), (pW, pW), (0, 0)))
    hp = jnp.pad(h16, ((0, 0), (pH, pH), (pW, pW), (0, 0)))

    def im2col(a):   # (B, H+2p, W+2p, C) -> (B, H, W, T*C), taps row-major
        cols = [a[:, kh:kh + H, kw:kw + W, :]
                for kh in range(KH) for kw in range(KW)]
        return jnp.concatenate(cols, axis=-1)

    # TODO(synk): for production H*W, build the taps inside the kernel from a
    # padded per-block slab to eliminate this ~9x HBM patch stream entirely.
    patches = jnp.concatenate(
        [im2col(hp), im2col(xp),
         jnp.zeros((B, H, W, KP - K_raw), jnp.bfloat16)], axis=-1)
    patches = patches.reshape(B * M, KP)
    h_flat = h_f32.reshape(B * M, Ch)

    # ---- pre-flattened weights (loaded once, resident across the grid) -------
    wg_h = wg[:, :, Cx:, :].reshape(HC, 2 * Ch)      # rows: tap-major, chan-minor
    wg_x = wg[:, :, :Cx, :].reshape(XC, 2 * Ch)
    wc_x = wc[:, :, :Cx, :].reshape(XC, Ch)
    w1 = jnp.zeros((KP, NG), jnp.float32)
    w1 = w1.at[:HC, :2 * Ch].set(wg_h)
    w1 = w1.at[HC:K_raw, :2 * Ch].set(wg_x)
    w1 = w1.at[HC:K_raw, 2 * Ch:].set(wc_x)
    w1 = w1.astype(jnp.bfloat16)
    w2 = wc[:, :, Cx:, :].reshape(T, Ch, Ch).astype(jnp.float32)   # per-tap h-part
    b1 = jnp.concatenate([bg, bc]).reshape(1, NG).astype(jnp.float32)

    ipb = _pick_images_per_block(B, M)
    rows = ipb * M
    n_blocks = (B * M) // rows

    # Per-step VMEM budget (sized against v7x's 64 MiB physical / 32 MiB scoped):
    #   patches 2*rows*KP*2B + h/out 2*2*rows*128(lane-pad)*4B
    #   + reset2 2*rows*128*4B + weights (~0.1 MiB)  ~= 7 MiB at rows=2048.
    kernel = _make_conv_gru_kernel(rows, W, Ch, KH, KW)
    out = pl.pallas_call(
        kernel,
        out_shape=jax.ShapeDtypeStruct((B * M, Ch), jnp.float32),
        grid_spec=pltpu.PrefetchScalarGridSpec(
            num_scalar_prefetch=0,
            grid=(n_blocks,),                                    # row blocks
            in_specs=[
                pl.BlockSpec((rows, KP), lambda r: (r, 0)),      # patches
                pl.BlockSpec((rows, Ch), lambda r: (r, 0)),      # h_cur
                pl.BlockSpec((KP, NG), lambda r: (0, 0)),        # w1 (resident)
                pl.BlockSpec((1, NG), lambda r: (0, 0)),         # b1
                pl.BlockSpec((T, Ch, Ch), lambda r: (0, 0, 0)),  # w2 (resident)
            ],
            out_specs=pl.BlockSpec((rows, Ch), lambda r: (r, 0)),
            scratch_shapes=[
                pltpu.VMEM((2 * rows, Ch), jnp.float32),         # doubled reset
            ],
        ),
        compiler_params=pltpu.CompilerParams(
            dimension_semantics=("parallel",),           # megacore: shard row blocks
            vmem_limit_bytes=32 * 1024 * 1024,           # explicit scoped-VMEM budget
        ),
    )(patches, h_flat, w1, b1, w2)

    out = out.reshape(B, H, W, Ch)
    return jnp.transpose(out, (0, 3, 1, 2))              # back to NCHW


# ----------------------------- pure-JAX reference -----------------------------
def _conv2d_same_nhwc(x, w, b):
    y = lax.conv_general_dilated(
        x, w, window_strides=(1, 1), padding="SAME",
        dimension_numbers=("NHWC", "HWIO", "NHWC"))
    return y + b


def conv_gru_cell_ref(x_nchw, h_nchw, wg, bg, wc, bc):
    x = jnp.transpose(x_nchw, (0, 2, 3, 1)).astype(jnp.float32)
    h = jnp.transpose(h_nchw, (0, 2, 3, 1)).astype(jnp.float32)
    Ch = h.shape[-1]
    combined = jnp.concatenate([x, h], axis=-1)
    gates = jax.nn.sigmoid(_conv2d_same_nhwc(combined, wg, bg))
    reset_gate, update_gate = gates[..., :Ch], gates[..., Ch:]
    combined2 = jnp.concatenate([x, reset_gate * h], axis=-1)
    cnm = jnp.tanh(_conv2d_same_nhwc(combined2, wc, bc))
    h_next = (1.0 - update_gate) * h + update_gate * cnm
    return jnp.transpose(h_next, (0, 3, 1, 2))


if __name__ == "__main__":
    # Small shapes consistent with the module's forward (NCHW inputs).
    B, Cx, Ch, H, W = 2, 4, 8, 16, 16
    KH, KW = 3, 3

    key = jax.random.PRNGKey(0)
    k1, k2, k3, k4, k5, k6 = jax.random.split(key, 6)

    x = jax.random.normal(k1, (B, Cx, H, W), jnp.float32)
    h_cur = jax.random.normal(k2, (B, Ch, H, W), jnp.float32)

    # Deterministic parameter init (PyTorch Conv2d-style uniform +-1/sqrt(fan_in)).
    fan_in = (Cx + Ch) * KH * KW
    bound = float(fan_in) ** -0.5
    wg = jax.random.uniform(k3, (KH, KW, Cx + Ch, 2 * Ch), jnp.float32, -bound, bound)
    bg = jax.random.uniform(k4, (2 * Ch,), jnp.float32, -bound, bound)
    wc = jax.random.uniform(k5, (KH, KW, Cx + Ch, Ch), jnp.float32, -bound, bound)
    bc = jax.random.uniform(k6, (Ch,), jnp.float32, -bound, bound)

    conv_gru = jax.jit(conv_gru_cell, static_argnames=("kernel_size",))
    h_next = conv_gru(x, h_cur, wg, bg, wc, bc, kernel_size=(KH, KW))
    h_next = jax.block_until_ready(h_next)

    h_ref = conv_gru_cell_ref(x, h_cur, wg, bg, wc, bc)
    assert h_next.shape == (B, Ch, H, W)
    max_err = float(jnp.max(jnp.abs(h_next - h_ref)))
    # bf16 MXU operands on the fused gate/x dot (f32 accumulation) -> slightly
    # looser tolerance vs the f32 reference; the h candidate path is f32.
    assert jnp.allclose(h_next, h_ref, atol=3e-2, rtol=3e-2), (
        f"mismatch vs reference, max abs err = {max_err}")
    print("KERNEL_OK")
</pallas_src>

<mosaic_0001>
module attributes {stable_mosaic.version = 11 : i64} {
  func.func @kernel(%arg0: i32, %arg1: memref<256x128xbf16, #tpu.memory_space<vmem>>, %arg2: memref<256x8xf32, #tpu.memory_space<vmem>>, %arg3: memref<128x24xbf16, #tpu.memory_space<vmem>>, %arg4: memref<1x24xf32, #tpu.memory_space<vmem>>, %arg5: memref<9x8x8xf32, #tpu.memory_space<vmem>>, %arg6: memref<256x8xf32, #tpu.memory_space<vmem>>, %arg7: memref<512x8xf32, #tpu.memory_space<vmem>>) attributes {dimension_semantics = [#tpu.dimension_semantics<parallel>], iteration_bounds = array<i64: 2>, scalar_prefetch = 0 : i64, scratch_operands = 1 : i64, tpu.core_type = #tpu.core_type<tc>, window_params = [{transform_indices = @transform_0, window_bounds = array<i64: 256, 128>}, {transform_indices = @transform_1, window_bounds = array<i64: 256, 8>}, {pipeline_mode = #tpu.pipeline_mode<synchronous>, transform_indices = @transform_2, window_bounds = array<i64: 128, 24>}, {pipeline_mode = #tpu.pipeline_mode<synchronous>, transform_indices = @transform_3, window_bounds = array<i64: 1, 24>}, {pipeline_mode = #tpu.pipeline_mode<synchronous>, transform_indices = @transform_4, window_bounds = array<i64: 9, 8, 8>}, {transform_indices = @transform_5, window_bounds = array<i64: 256, 8>}]} {
    %c0 = arith.constant 0 : index
    %c0_0 = arith.constant 0 : index
    %0 = vector.load %arg1[%c0, %c0_0] : memref<256x128xbf16, #tpu.memory_space<vmem>>, vector<256x128xbf16>
    %c0_1 = arith.constant 0 : index
    %c0_2 = arith.constant 0 : index
    %1 = vector.load %arg3[%c0_1, %c0_2] : memref<128x24xbf16, #tpu.memory_space<vmem>>, vector<128x24xbf16>
    %cst = arith.constant dense<0.000000e+00> : vector<256x24xf32>
    %2 = tpu.matmul %0, %1, %cst {dimension_numbers = #tpu.dot_dimension_numbers<[1], [0], [0], [1], [0, 0, 1, 1], [], []>} : vector<256x128xbf16>, vector<128x24xbf16>, vector<256x24xf32> -> vector<256x24xf32>
    %c0_3 = arith.constant 0 : index
    %c0_4 = arith.constant 0 : index
    %3 = vector.load %arg4[%c0_3, %c0_4] : memref<1x24xf32, #tpu.memory_space<vmem>>, vector<1x24xf32>
    %4 = vector.broadcast %3 : vector<1x24xf32> to vector<256x24xf32>
    %5 = arith.addf %2, %4 : vector<256x24xf32>
    %6 = vector.extract_strided_slice %5 {offsets = [0, 0], sizes = [256, 8], strides = [1, 1]} : vector<256x24xf32> to vector<256x8xf32>
    %7 = arith.negf %6 : vector<256x8xf32>
    %8 = math.exp %7 : vector<256x8xf32>
    %cst_5 = arith.constant 1.000000e+00 : f32
    %9 = vector.broadcast %cst_5 : f32 to vector<256x8xf32>
    %10 = arith.addf %9, %8 : vector<256x8xf32>
    %11 = arith.divf %9, %10 : vector<256x8xf32>
    %12 = vector.extract_strided_slice %5 {offsets = [0, 8], sizes = [256, 8], strides = [1, 1]} : vector<256x24xf32> to vector<256x8xf32>
    %13 = arith.negf %12 : vector<256x8xf32>
    %14 = math.exp %13 : vector<256x8xf32>
    %cst_6 = arith.constant 1.000000e+00 : f32
    %15 = vector.broadcast %cst_6 : f32 to vector<256x8xf32>
    %16 = arith.addf %15, %14 : vector<256x8xf32>
    %17 = arith.divf %15, %16 : vector<256x8xf32>
    %18 = vector.extract_strided_slice %5 {offsets = [0, 16], sizes = [256, 8], strides = [1, 1]} : vector<256x24xf32> to vector<256x8xf32>
    %c0_7 = arith.constant 0 : index
    %c0_8 = arith.constant 0 : index
    %19 = vector.load %arg7[%c0_7, %c0_8] : memref<512x8xf32, #tpu.memory_space<vmem>>, vector<256x8xf32>
    tpu.vector_store %arg7[%c0_7, %c0_8], %11 {strides = array<i32>} : memref<512x8xf32, #tpu.memory_space<vmem>>, vector<256x8xf32>,
    %c256 = arith.constant 256 : index
    %c0_9 = arith.constant 0 : index
    %20 = vector.load %arg7[%c256, %c0_9] : memref<512x8xf32, #tpu.memory_space<vmem>>, vector<256x8xf32>
    tpu.vector_store %arg7[%c256, %c0_9], %11 {strides = array<i32>} : memref<512x8xf32, #tpu.memory_space<vmem>>, vector<256x8xf32>,
    %c239 = arith.constant 239 : index
    %c0_10 = arith.constant 0 : index
    %21 = vector.load %arg7[%c239, %c0_10] : memref<512x8xf32, #tpu.memory_space<vmem>>, vector<256x8xf32>
    %22 = vector.extract_strided_slice %0 {offsets = [0, 0], sizes = [256, 8], strides = [1, 1]} : vector<256x128xbf16> to vector<256x8xbf16>
    %23 = arith.extf %22 : vector<256x8xbf16> to vector<256x8xf32>
    %24 = arith.mulf %21, %23 : vector<256x8xf32>
    %c0_11 = arith.constant 0 : index
    %c0_12 = arith.constant 0 : index
    %c0_13 = arith.constant 0 : index
    %25 = vector.load %arg5[%c0_11, %c0_12, %c0_13] : memref<9x8x8xf32, #tpu.memory_space<vmem>>, vector<1x8x8xf32>
    %26 = vector.shape_cast %25 : vector<1x8x8xf32> to vector<8x8xf32>
    %cst_14 = arith.constant dense<0.000000e+00> : vector<256x8xf32>
    %27 = tpu.matmul %24, %26, %cst_14 {dimension_numbers = #tpu.dot_dimension_numbers<[1], [0], [0], [1], [0, 0, 1, 1], [], []>} : vector<256x8xf32>, vector<8x8xf32>, vector<256x8xf32> -> vector<256x8xf32>
    %c240 = arith.constant 240 : index
    %c0_15 = arith.constant 0 : index
    %28 = vector.load %arg7[%c240, %c0_15] : memref<512x8xf32, #tpu.memory_space<vmem>>, vector<256x8xf32>
    %29 = vector.extract_strided_slice %0 {offsets = [0, 8], sizes = [256, 8], strides = [1, 1]} : vector<256x128xbf16> to vector<256x8xbf16>
    %30 = arith.extf %29 : vector<256x8xbf16> to vector<256x8xf32>
    %31 = arith.mulf %28, %30 : vector<256x8xf32>
    %c1 = arith.constant 1 : index
    %c0_16 = arith.constant 0 : index
    %c0_17 = arith.constant 0 : index
    %32 = vector.load %arg5[%c1, %c0_16, %c0_17] : memref<9x8x8xf32, #tpu.memory_space<vmem>>, vector<1x8x8xf32>
    %33 = vector.shape_cast %32 : vector<1x8x8xf32> to vector<8x8xf32>
    %cst_18 = arith.constant dense<0.000000e+00> : vector<256x8xf32>
    %34 = tpu.matmul %31, %33, %cst_18 {dimension_numbers = #tpu.dot_dimension_numbers<[1], [0], [0], [1], [0, 0, 1, 1], [], []>} : vector<256x8xf32>, vector<8x8xf32>, vector<256x8xf32> -> vector<256x8xf32>
    %35 = arith.addf %27, %34 : vector<256x8xf32>
    %c241 = arith.constant 241 : index
    %c0_19 = arith.constant 0 : index
    %36 = vector.load %arg7[%c241, %c0_19] : memref<512x8xf32, #tpu.memory_space<vmem>>, vector<256x8xf32>
    %37 = vector.extract_strided_slice %0 {offsets = [0, 16], sizes = [256, 8], strides = [1, 1]} : vector<256x128xbf16> to vector<256x8xbf16>
    %38 = arith.extf %37 : vector<256x8xbf16> to vector<256x8xf32>
    %39 = arith.mulf %36, %38 : vector<256x8xf32>
    %c2 = arith.constant 2 : index
    %c0_20 = arith.constant 0 : index
    %c0_21 = arith.constant 0 : index
    %40 = vector.load %arg5[%c2, %c0_20, %c0_21] : memref<9x8x8xf32, #tpu.memory_space<vmem>>, vector<1x8x8xf32>
    %41 = vector.shape_cast %40 : vector<1x8x8xf32> to vector<8x8xf32>
    %cst_22 = arith.constant dense<0.000000e+00> : vector<256x8xf32>
    %42 = tpu.matmul %39, %41, %cst_22 {dimension_numbers = #tpu.dot_dimension_numbers<[1], [0], [0], [1], [0, 0, 1, 1], [], []>} : vector<256x8xf32>, vector<8x8xf32>, vector<256x8xf32> -> vector<256x8xf32>
    %43 = arith.addf %35, %42 : vector<256x8xf32>
    %c255 = arith.constant 255 : index
    %c0_23 = arith.constant 0 : index
    %44 = vector.load %arg7[%c255, %c0_23] : memref<512x8xf32, #tpu.memory_space<vmem>>, vector<256x8xf32>
    %45 = vector.extract_strided_slice %0 {offsets = [0, 24], sizes = [256, 8], strides = [1, 1]} : vector<256x128xbf16> to vector<256x8xbf16>
    %46 = arith.extf %45 : vector<256x8xbf16> to vector<256x8xf32>
    %47 = arith.mulf %44, %46 : vector<256x8xf32>
    %c3 = arith.constant 3 : index
    %c0_24 = arith.constant 0 : index
    %c0_25 = arith.constant 0 : index
    %48 = vector.load %arg5[%c3, %c0_24, %c0_25] : memref<9x8x8xf32, #tpu.memory_space<vmem>>, vector<1x8x8xf32>
    %49 = vector.shape_cast %48 : vector<1x8x8xf32> to vector<8x8xf32>
    %cst_26 = arith.constant dense<0.000000e+00> : vector<256x8xf32>
    %50 = tpu.matmul %47, %49, %cst_26 {dimension_numbers = #tpu.dot_dimension_numbers<[1], [0], [0], [1], [0, 0, 1, 1], [], []>} : vector<256x8xf32>, vector<8x8xf32>, vector<256x8xf32> -> vector<256x8xf32>
    %51 = arith.addf %43, %50 : vector<256x8xf32>
    %c0_27 = arith.constant 0 : index
    %c0_28 = arith.constant 0 : index
    %52 = vector.load %arg7[%c0_27, %c0_28] : memref<512x8xf32, #tpu.memory_space<vmem>>, vector<256x8xf32>
    %53 = vector.extract_strided_slice %0 {offsets = [0, 32], sizes = [256, 8], strides = [1, 1]} : vector<256x128xbf16> to vector<256x8xbf16>
    %54 = arith.extf %53 : vector<256x8xbf16> to vector<256x8xf32>
    %55 = arith.mulf %52, %54 : vector<256x8xf32>
    %c4 = arith.constant 4 : index
    %c0_29 = arith.constant 0 : index
    %c0_30 = arith.constant 0 : index
    %56 = vector.load %arg5[%c4, %c0_29, %c0_30] : memref<9x8x8xf32, #tpu.memory_space<vmem>>, vector<1x8x8xf32>
    %57 = vector.shape_cast %56 : vector<1x8x8xf32> to vector<8x8xf32>
    %cst_31 = arith.constant dense<0.000000e+00> : vector<256x8xf32>
    %58 = tpu.matmul %55, %57, %cst_31 {dimension_numbers = #tpu.dot_dimension_numbers<[1], [0], [0], [1], [0, 0, 1, 1], [], []>} : vector<256x8xf32>, vector<8x8xf32>, vector<256x8xf32> -> vector<256x8xf32>
    %59 = arith.addf %51, %58 : vector<256x8xf32>
    %c1_32 = arith.constant 1 : index
    %c0_33 = arith.constant 0 : index
    %60 = vector.load %arg7[%c1_32, %c0_33] : memref<512x8xf32, #tpu.memory_space<vmem>>, vector<256x8xf32>
    %61 = vector.extract_strided_slice %0 {offsets = [0, 40], sizes = [256, 8], strides = [1, 1]} : vector<256x128xbf16> to vector<256x8xbf16>
    %62 = arith.extf %61 : vector<256x8xbf16> to vector<256x8xf32>
    %63 = arith.mulf %60, %62 : vector<256x8xf32>
    %c5 = arith.constant 5 : index
    %c0_34 = arith.constant 0 : index
    %c0_35 = arith.constant 0 : index
    %64 = vector.load %arg5[%c5, %c0_34, %c0_35] : memref<9x8x8xf32, #tpu.memory_space<vmem>>, vector<1x8x8xf32>
    %65 = vector.shape_cast %64 : vector<1x8x8xf32> to vector<8x8xf32>
    %cst_36 = arith.constant dense<0.000000e+00> : vector<256x8xf32>
    %66 = tpu.matmul %63, %65, %cst_36 {dimension_numbers = #tpu.dot_dimension_numbers<[1], [0], [0], [1], [0, 0, 1, 1], [], []>} : vector<256x8xf32>, vector<8x8xf32>, vector<256x8xf32> -> vector<256x8xf32>
    %67 = arith.addf %59, %66 : vector<256x8xf32>
    %c15 = arith.constant 15 : index
    %c0_37 = arith.constant 0 : index
    %68 = vector.load %arg7[%c15, %c0_37] : memref<512x8xf32, #tpu.memory_space<vmem>>, vector<256x8xf32>
    %69 = vector.extract_strided_slice %0 {offsets = [0, 48], sizes = [256, 8], strides = [1, 1]} : vector<256x128xbf16> to vector<256x8xbf16>
    %70 = arith.extf %69 : vector<256x8xbf16> to vector<256x8xf32>
    %71 = arith.mulf %68, %70 : vector<256x8xf32>
    %c6 = arith.constant 6 : index
    %c0_38 = arith.constant 0 : index
    %c0_39 = arith.constant 0 : index
    %72 = vector.load %arg5[%c6, %c0_38, %c0_39] : memref<9x8x8xf32, #tpu.memory_space<vmem>>, vector<1x8x8xf32>
    %73 = vector.shape_cast %72 : vector<1x8x8xf32> to vector<8x8xf32>
    %cst_40 = arith.constant dense<0.000000e+00> : vector<256x8xf32>
    %74 = tpu.matmul %71, %73, %cst_40 {dimension_numbers = #tpu.dot_dimension_numbers<[1], [0], [0], [1], [0, 0, 1, 1], [], []>} : vector<256x8xf32>, vector<8x8xf32>, vector<256x8xf32> -> vector<256x8xf32>
    %75 = arith.addf %67, %74 : vector<256x8xf32>
    %c16 = arith.constant 16 : index
    %c0_41 = arith.constant 0 : index
    %76 = vector.load %arg7[%c16, %c0_41] : memref<512x8xf32, #tpu.memory_space<vmem>>, vector<256x8xf32>
    %77 = vector.extract_strided_slice %0 {offsets = [0, 56], sizes = [256, 8], strides = [1, 1]} : vector<256x128xbf16> to vector<256x8xbf16>
    %78 = arith.extf %77 : vector<256x8xbf16> to vector<256x8xf32>
    %79 = arith.mulf %76, %78 : vector<256x8xf32>
    %c7 = arith.constant 7 : index
    %c0_42 = arith.constant 0 : index
    %c0_43 = arith.constant 0 : index
    %80 = vector.load %arg5[%c7, %c0_42, %c0_43] : memref<9x8x8xf32, #tpu.memory_space<vmem>>, vector<1x8x8xf32>
    %81 = vector.shape_cast %80 : vector<1x8x8xf32> to vector<8x8xf32>
    %cst_44 = arith.constant dense<0.000000e+00> : vector<256x8xf32>
    %82 = tpu.matmul %79, %81, %cst_44 {dimension_numbers = #tpu.dot_dimension_numbers<[1], [0], [0], [1], [0, 0, 1, 1], [], []>} : vector<256x8xf32>, vector<8x8xf32>, vector<256x8xf32> -> vector<256x8xf32>
    %83 = arith.addf %75, %82 : vector<256x8xf32>
    %c17 = arith.constant 17 : index
    %c0_45 = arith.constant 0 : index
    %84 = vector.load %arg7[%c17, %c0_45] : memref<512x8xf32, #tpu.memory_space<vmem>>, vector<256x8xf32>
    %85 = vector.extract_strided_slice %0 {offsets = [0, 64], sizes = [256, 8], strides = [1, 1]} : vector<256x128xbf16> to vector<256x8xbf16>
    %86 = arith.extf %85 : vector<256x8xbf16> to vector<256x8xf32>
    %87 = arith.mulf %84, %86 : vector<256x8xf32>
    %c8 = arith.constant 8 : index
    %c0_46 = arith.constant 0 : index
    %c0_47 = arith.constant 0 : index
    %88 = vector.load %arg5[%c8, %c0_46, %c0_47] : memref<9x8x8xf32, #tpu.memory_space<vmem>>, vector<1x8x8xf32>
    %89 = vector.shape_cast %88 : vector<1x8x8xf32> to vector<8x8xf32>
    %cst_48 = arith.constant dense<0.000000e+00> : vector<256x8xf32>
    %90 = tpu.matmul %87, %89, %cst_48 {dimension_numbers = #tpu.dot_dimension_numbers<[1], [0], [0], [1], [0, 0, 1, 1], [], []>} : vector<256x8xf32>, vector<8x8xf32>, vector<256x8xf32> -> vector<256x8xf32>
    %91 = arith.addf %83, %90 : vector<256x8xf32>
    %92 = arith.addf %18, %91 : vector<256x8xf32>
    %93 = math.tanh %92 : vector<256x8xf32>
    %c0_49 = arith.constant 0 : index
    %c0_50 = arith.constant 0 : index
    %94 = vector.load %arg2[%c0_49, %c0_50] : memref<256x8xf32, #tpu.memory_space<vmem>>, vector<256x8xf32>
    %cst_51 = arith.constant 1.000000e+00 : f32
    %95 = vector.broadcast %cst_51 : f32 to vector<256x8xf32>
    %96 = arith.subf %95, %17 : vector<256x8xf32>
    %97 = arith.mulf %96, %94 : vector<256x8xf32>
    %98 = arith.mulf %17, %93 : vector<256x8xf32>
    %99 = arith.addf %97, %98 : vector<256x8xf32>
    %c0_52 = arith.constant 0 : index
    %c0_53 = arith.constant 0 : index
    %100 = vector.load %arg6[%c0_52, %c0_53] : memref<256x8xf32, #tpu.memory_space<vmem>>, vector<256x8xf32>
    tpu.vector_store %arg6[%c0_52, %c0_53], %99 {strides = array<i32>} : memref<256x8xf32, #tpu.memory_space<vmem>>, vector<256x8xf32>,
    return
  }
  func.func @transform_0(%arg0: i32) -> (i32, i32) {
    %c0_i32 = arith.constant 0 : i32
    %c0_i32_0 = arith.constant 0 : i32
    return %arg0, %c0_i32 : i32, i32
  }
  func.func @transform_1(%arg0: i32) -> (i32, i32) {
    %c0_i32 = arith.constant 0 : i32
    %c0_i32_0 = arith.constant 0 : i32
    return %arg0, %c0_i32 : i32, i32
  }
  func.func @transform_2(%arg0: i32) -> (i32, i32) {
    %c0_i32 = arith.constant 0 : i32
    %c0_i32_0 = arith.constant 0 : i32
    %c0_i32_1 = arith.constant 0 : i32
    return %c0_i32, %c0_i32_0 : i32, i32
  }
  func.func @transform_3(%arg0: i32) -> (i32, i32) {
    %c0_i32 = arith.constant 0 : i32
    %c0_i32_0 = arith.constant 0 : i32
    %c0_i32_1 = arith.constant 0 : i32
    return %c0_i32, %c0_i32_0 : i32, i32
  }
  func.func @transform_4(%arg0: i32) -> (i32, i32, i32) {
    %c0_i32 = arith.constant 0 : i32
    %c0_i32_0 = arith.constant 0 : i32
    %c0_i32_1 = arith.constant 0 : i32
    %c0_i32_2 = arith.constant 0 : i32
    return %c0_i32, %c0_i32_0, %c0_i32_1 : i32, i32, i32
  }
  func.func @transform_5(%arg0: i32) -> (i32, i32) {
    %c0_i32 = arith.constant 0 : i32
    %c0_i32_0 = arith.constant 0 : i32
    return %arg0, %c0_i32 : i32, i32
  }
}

</mosaic_0001>

<llo_original>
// kernel: conv_gru_cell.1
$region0: #{conv_gru_cell.1}
  #allocation0 [shape = 'u32[]', space=smem, size = 0x4, offset = 0x4, fixed_abs, tag = 'smem constant byte address 0x4 - core index']
  #allocation1 [shape = 'u32[144,128]{1,0:T(1,128)}', space=vmem, size = 0x12000, scoped, tag = 'internal scratch']
  #allocation2 [shape = 'f32[512,8]{1,0:T(8,128)}', space=vmem, size = 0x40000, scoped, tag = 'scratch operand']
  %s0 = inlined_call_operand.vmem [shape: bf16[512,128], index: 0, kind: input, shape index: {}]
  %s1 = inlined_call_operand.vmem [shape: f32[512,8], index: 1, kind: input, shape index: {}]
  %s2 = inlined_call_operand.vmem [shape: bf16[128,24], index: 2, kind: input, shape index: {}]
  %s3 = inlined_call_operand.vmem [shape: f32[1,24], index: 3, kind: input, shape index: {}]
  %s4 = inlined_call_operand.vmem [shape: f32[9,8,8], index: 4, kind: input, shape index: {}]
  %s5 = inlined_call_operand.vmem [shape: f32[512,8], index: 5, kind: output, shape index: {}]
  %s6 = sld [smem:[#allocation0]]
  $region53: #{conv_gru_cell.1} parent=0
    _
  %s8 = ssub.s32 1, %s6
  %s9 = scalar_select 0, %s8, %s6
  loop: start=0, step=1, limit=4
  $region2: #{conv_gru_cell.1} parent=0 // loop_pre_header
    _
  $region3: #{conv_gru_cell.1} parent=0 // loop_header
    %s11 = sphi 0, %s15
    %p12 = scmp.ge.s32.totalorder %s11, 4
    %s21 = sphi 0, %s23
    %s24 = sphi 0, %s21
    %s25 = sphi 0, %s24
    %s41 = sphi 0, %s25
    %s47 = sphi 0, %s49
    %s50 = sphi 0, %s47
    %s51 = sphi 0, %s50
    %s67 = sphi 0, %s51
    %s71 = sphi 0, %s71
    %s73 = sphi 0, %s71
    %s74 = sphi 0, %s73
    %s88 = sphi 0, %s74
    %s92 = sphi 0, %s92
    %s94 = sphi 0, %s92
    %s95 = sphi 0, %s94
    %s109 = sphi 0, %s95
    %s113 = sphi 0, %s113
    %s115 = sphi 0, %s113
    %s116 = sphi 0, %s115
    %s130 = sphi 0, %s116
    %s136 = sphi 0, %s138
    %s139 = sphi 0, %s136
    %s140 = sphi 0, %s139
    %s156 = sphi 0, %s140
  $region4: #{conv_gru_cell.1} parent=0 // loop_header_branch
    %14 = sbr.rel (%p12) target = $region8
  $region5: #{conv_gru_cell.1} parent=0 // loop_body
    %s16 = ssub.s32 %s11, 1
    %s17 = ssub.s32 %s11, 2
    %s18 = sadd.s32 %s11, 1
    %s19 = ssub.s32 %s11, %s18
    %p20 = scmp.eq.s32.totalorder %s19, 0
    %s22 = sadd.s32 %s21, 1
    %s23 = scalar_select %p20, %s21, %s22
    %p26 = pneg %p20
    %p27 = scmp.eq.s32.totalorder %s11, 1
    %p28 = por %p26, %p27
    %p29 = scmp.ne.s32.totalorder %s21, %s24
    %p30 = scmp.eq.s32.totalorder %s11, 0
    %p31 = por %p29, %p30
    %p32 = scmp.ne.s32.totalorder %s21, %s24
    %p33 = scmp.eq.s32.totalorder %s16, 1
    %p34 = por %p32, %p33
    %p35 = scmp.ne.s32.totalorder %s24, %s25
    %p36 = scmp.eq.s32.totalorder %s16, 0
    %p37 = por %p35, %p36
    %p38 = scmp.ne.s32.totalorder %s24, %s25
    %p39 = scmp.eq.s32.totalorder %s17, 1
    %p40 = por %p38, %p39
    %p42 = scmp.ne.s32.totalorder %s25, %s41
    %p43 = scmp.eq.s32.totalorder %s17, 0
    %p44 = por %p42, %p43
    %s45 = ssub.s32 %s11, %s18
    %p46 = scmp.eq.s32.totalorder %s45, 0
    %s48 = sadd.s32 %s47, 1
    %s49 = scalar_select %p46, %s47, %s48
    %p52 = pneg %p46
    %p53 = scmp.eq.s32.totalorder %s11, 1
    %p54 = por %p52, %p53
    %p55 = scmp.ne.s32.totalorder %s47, %s50
    %p56 = scmp.eq.s32.totalorder %s11, 0
    %p57 = por %p55, %p56
    %p58 = scmp.ne.s32.totalorder %s47, %s50
    %p59 = scmp.eq.s32.totalorder %s16, 1
    %p60 = por %p58, %p59
    %p61 = scmp.ne.s32.totalorder %s50, %s51
    %p62 = scmp.eq.s32.totalorder %s16, 0
    %p63 = por %p61, %p62
    %p64 = scmp.ne.s32.totalorder %s50, %s51
    %p65 = scmp.eq.s32.totalorder %s17, 1
    %p66 = por %p64, %p65
    %p68 = scmp.ne.s32.totalorder %s51, %s67
    %p69 = scmp.eq.s32.totalorder %s17, 0
    %p70 = por %p68, %p69
    %s72 = sadd.s32 %s71, 1
    %p75 = scmp.eq.s32.totalorder %s11, 1
    %p76 = scmp.ne.s32.totalorder %s71, %s73
    %p77 = scmp.eq.s32.totalorder %s11, 0
    %p78 = por %p76, %p77
    %p79 = scmp.ne.s32.totalorder %s71, %s73
    %p80 = scmp.eq.s32.totalorder %s16, 1
    %p81 = por %p79, %p80
    %p82 = scmp.ne.s32.totalorder %s73, %s74
    %p83 = scmp.eq.s32.totalorder %s16, 0
    %p84 = por %p82, %p83
    %p85 = scmp.ne.s32.totalorder %s73, %s74
    %p86 = scmp.eq.s32.totalorder %s17, 1
    %p87 = por %p85, %p86
    %p89 = scmp.ne.s32.totalorder %s74, %s88
    %p90 = scmp.eq.s32.totalorder %s17, 0
    %p91 = por %p89, %p90
    %s93 = sadd.s32 %s92, 1
    %p96 = scmp.eq.s32.totalorder %s11, 1
    %p97 = scmp.ne.s32.totalorder %s92, %s94
    %p98 = scmp.eq.s32.totalorder %s11, 0
    %p99 = por %p97, %p98
    %p100 = scmp.ne.s32.totalorder %s92, %s94
    %p101 = scmp.eq.s32.totalorder %s16, 1
    %p102 = por %p100, %p101
    %p103 = scmp.ne.s32.totalorder %s94, %s95
    %p104 = scmp.eq.s32.totalorder %s16, 0
    %p105 = por %p103, %p104
    %p106 = scmp.ne.s32.totalorder %s94, %s95
    %p107 = scmp.eq.s32.totalorder %s17, 1
    %p108 = por %p106, %p107
    %p110 = scmp.ne.s32.totalorder %s95, %s109
    %p111 = scmp.eq.s32.totalorder %s17, 0
    %p112 = por %p110, %p111
    %s114 = sadd.s32 %s113, 1
    %p117 = scmp.eq.s32.totalorder %s11, 1
    %p118 = scmp.ne.s32.totalorder %s113, %s115
    %p119 = scmp.eq.s32.totalorder %s11, 0
    %p120 = por %p118, %p119
    %p121 = scmp.ne.s32.totalorder %s113, %s115
    %p122 = scmp.eq.s32.totalorder %s16, 1
    %p123 = por %p121, %p122
    %p124 = scmp.ne.s32.totalorder %s115, %s116
    %p125 = scmp.eq.s32.totalorder %s16, 0
    %p126 = por %p124, %p125
    %p127 = scmp.ne.s32.totalorder %s115, %s116
    %p128 = scmp.eq.s32.totalorder %s17, 1
    %p129 = por %p127, %p128
    %p131 = scmp.ne.s32.totalorder %s116, %s130
    %p132 = scmp.eq.s32.totalorder %s17, 0
    %p133 = por %p131, %p132
    %s134 = ssub.s32 %s11, %s18
    %p135 = scmp.eq.s32.totalorder %s134, 0
    %s137 = sadd.s32 %s136, 1
    %s138 = scalar_select %p135, %s136, %s137
    %p141 = pneg %p135
    %p142 = scmp.eq.s32.totalorder %s11, 1
    %p143 = por %p141, %p142
    %p144 = scmp.ne.s32.totalorder %s136, %s139
    %p145 = scmp.eq.s32.totalorder %s11, 0
    %p146 = por %p144, %p145
    %p147 = scmp.ne.s32.totalorder %s136, %s139
    %p148 = scmp.eq.s32.totalorder %s16, 1
    %p149 = por %p147, %p148
    %p150 = scmp.ne.s32.totalorder %s139, %s140
    %p151 = scmp.eq.s32.totalorder %s16, 0
    %p152 = por %p150, %p151
    %p153 = scmp.ne.s32.totalorder %s139, %s140
    %p154 = scmp.eq.s32.totalorder %s17, 1
    %p155 = por %p153, %p154
    %p157 = scmp.ne.s32.totalorder %s140, %s156
    %p158 = scmp.eq.s32.totalorder %s17, 0
    %p159 = por %p157, %p158
    %p160 = scmp.le.s32.totalorder 1, %s11
    %p161 = scmp.lt.s32.totalorder %s11, 3
    %p162 = pnand %p160, %p161
    %p163 = pneg %p162
    // Predicated region
    $region9: #{conv_gru_cell.1} parent=5 // pred_check
      _
    $region10: #{conv_gru_cell.1} parent=5 // pred_check_branch
      %165 = sbr.rel (%p162) target = $region12
    $region11: #{conv_gru_cell.1} parent=5 // pred_region
      %s166 = ssub.s32 %s11, 1
      // Predicated region
      $region13: #{conv_gru_cell.1} parent=11 // pred_check
        %p167 = pneg %p84
      $region14: #{conv_gru_cell.1} parent=11 // pred_check_branch
        %169 = sbr.rel (%p167) target = $region16
      $region15: #{conv_gru_cell.1} parent=11 // pred_region
        _
      $region16: #{conv_gru_cell.1} parent=11 // pred_fallthru
        _
      // Predicated region
      $region17: #{conv_gru_cell.1} parent=11 // pred_check
        %p170 = pneg %p105
      $region18: #{conv_gru_cell.1} parent=11 // pred_check_branch
        %172 = sbr.rel (%p170) target = $region20
      $region19: #{conv_gru_cell.1} parent=11 // pred_region
        _
      $region20: #{conv_gru_cell.1} parent=11 // pred_fallthru
        _
      // Predicated region
      $region21: #{conv_gru_cell.1} parent=11 // pred_check
        %p173 = pneg %p126
      $region22: #{conv_gru_cell.1} parent=11 // pred_check_branch
        %175 = sbr.rel (%p173) target = $region24
      $region23: #{conv_gru_cell.1} parent=11 // pred_region
        _
      $region24: #{conv_gru_cell.1} parent=11 // pred_fallthru
        _
    $region12: #{conv_gru_cell.1} parent=5 // pred_fallthru
      _
    %p176 = scmp.lt.s32.totalorder %s11, 2
    // Predicated region
    $region25: #{conv_gru_cell.1} parent=5 // pred_check
      %p177 = pneg %p176
    $region26: #{conv_gru_cell.1} parent=5 // pred_check_branch
      %179 = sbr.rel (%p177) target = $region28
    $region27: #{conv_gru_cell.1} parent=5 // pred_region
      // Predicated region
      $region29: #{conv_gru_cell.1} parent=27 // pred_check
        %p180 = pneg %p31
      $region30: #{conv_gru_cell.1} parent=27 // pred_check_branch
        %182 = sbr.rel (%p180) target = $region32
      $region31: #{conv_gru_cell.1} parent=27 // pred_region
        %s183 = smul.u32 32, %s11
        %p184 = scmp.lt.s32.totalorder %s183, 63
        %s185 = scalar_select %p184, %s183, 63
        %s186 = smul.addr %s185, 4
        %s187 = scalar_lea.vmem %s0, %s186
        %s188 = smul.u32 32, %s11
      $region32: #{conv_gru_cell.1} parent=27 // pred_fallthru
        _
      // Predicated region
      $region33: #{conv_gru_cell.1} parent=27 // pred_check
        %p189 = pneg %p57
      $region34: #{conv_gru_cell.1} parent=27 // pred_check_branch
        %191 = sbr.rel (%p189) target = $region36
      $region35: #{conv_gru_cell.1} parent=27 // pred_region
        %s192 = smul.u32 32, %s11
        %p193 = scmp.lt.s32.totalorder %s192, 63
        %s194 = scalar_select %p193, %s192, 63
        %s195 = smul.addr %s194, 8
        %s196 = scalar_lea.vmem %s1, %s195
        %s197 = smul.u32 32, %s11
      $region36: #{conv_gru_cell.1} parent=27 // pred_fallthru
        _
    $region28: #{conv_gru_cell.1} parent=5 // pred_fallthru
      _
    %p198 = scmp.le.s32.totalorder 1, %s11
    %p199 = scmp.lt.s32.totalorder %s11, 3
    %p200 = pnand %p198, %p199
    %p201 = pneg %p200
    // Predicated region
    $region37: #{conv_gru_cell.1} parent=5 // pred_check
      _
    $region38: #{conv_gru_cell.1} parent=5 // pred_check_branch
      %203 = sbr.rel (%p200) target = $region40
    $region39: #{conv_gru_cell.1} parent=5 // pred_region
      %s204 = ssub.s32 %s11, 1
      %s205 = smul.u32 32, %s16
      %p206 = scmp.lt.s32.totalorder %s205, 63
      %s207 = scalar_select %p206, %s205, 63
      %s208 = smul.addr %s207, 4
      %s209 = scalar_lea.vmem %s0, %s208
      %p210 = pneg %p37
      %p211 = pneg %p34
      %s212 = smul.u32 32, %s16
      %p213 = scmp.lt.s32.totalorder %s212, 63
      %s214 = scalar_select %p213, %s212, 63
      %s215 = smul.addr %s214, 8
      %s216 = scalar_lea.vmem %s1, %s215
      %p217 = pneg %p63
      %p218 = pneg %p60
      %p219 = pneg %p84
      %p220 = pneg %p81
      %p221 = pneg %p105
      %p222 = pneg %p102
      %p223 = pneg %p126
      %p224 = pneg %p123
      %p225 = pneg %p152
      %p226 = pneg %p149
      %s227 = smul.u32 32, %s16
      %p228 = scmp.lt.s32.totalorder %s227, 63
      %s229 = scalar_select %p228, %s227, 63
      %s230 = smul.addr %s229, 8
      %s231 = scalar_lea.vmem %s5, %s230
      %s232 = smul.u32 32, %s16
      %p233 = scmp.lt.s32.totalorder %s232, 63
      %s234 = scalar_select %p233, %s232, 63
      %s235 = smul.addr %s234, 4
      %s236 = scalar_lea.vmem %s0, %s235
      %s237 = smul.u32 32, %s16
      %s238 = smul.u32 32, %s16
      %p239 = scmp.lt.s32.totalorder %s238, 63
      %s240 = scalar_select %p239, %s238, 63
      %s241 = smul.addr %s240, 8
      %s242 = scalar_lea.vmem %s1, %s241
      %s243 = smul.u32 32, %s16
      %s244 = smul.u32 32, %s16
      %p245 = scmp.lt.s32.totalorder %s244, 63
      %s246 = scalar_select %p245, %s244, 63
      %s247 = smul.addr %s246, 8
      %s248 = scalar_lea.vmem %s5, %s247
      %s249 = smul.u32 32, %s16
      %v251 = vld [vmem:[%s236] sm:$0xf]
      %v252 = vld [vmem:[%s236 + $0x4] sm:$0xf]
      %v253 = vld [vmem:[%s236 + $0x8] sm:$0xf]
      %v254 = vld [vmem:[%s236 + $0xc] sm:$0xf]
      %v255 = vld [vmem:[%s236 + $0x10] sm:$0xf]
      %v256 = vld [vmem:[%s236 + $0x14] sm:$0xf]
      %v257 = vld [vmem:[%s236 + $0x18] sm:$0xf]
      %v258 = vld [vmem:[%s236 + $0x1c] sm:$0xf]
      %v259 = vld [vmem:[%s236 + $0x20] sm:$0xf]
      %v260 = vld [vmem:[%s236 + $0x24] sm:$0xf]
      %v261 = vld [vmem:[%s236 + $0x28] sm:$0xf]
      %v262 = vld [vmem:[%s236 + $0x2c] sm:$0xf]
      %v263 = vld [vmem:[%s236 + $0x30] sm:$0xf]
      %v264 = vld [vmem:[%s236 + $0x34] sm:$0xf]
      %v265 = vld [vmem:[%s236 + $0x38] sm:$0xf]
      %v266 = vld [vmem:[%s236 + $0x3c] sm:$0xf]
      %v267 = vld [vmem:[%s236 + $0x40] sm:$0xf]
      %v268 = vld [vmem:[%s236 + $0x44] sm:$0xf]
      %v269 = vld [vmem:[%s236 + $0x48] sm:$0xf]
      %v270 = vld [vmem:[%s236 + $0x4c] sm:$0xf]
      %v271 = vld [vmem:[%s236 + $0x50] sm:$0xf]
      %v272 = vld [vmem:[%s236 + $0x54] sm:$0xf]
      %v273 = vld [vmem:[%s236 + $0x58] sm:$0xf]
      %v274 = vld [vmem:[%s236 + $0x5c] sm:$0xf]
      %v275 = vld [vmem:[%s236 + $0x60] sm:$0xf]
      %v276 = vld [vmem:[%s236 + $0x64] sm:$0xf]
      %v277 = vld [vmem:[%s236 + $0x68] sm:$0xf]
      %v278 = vld [vmem:[%s236 + $0x6c] sm:$0xf]
      %v279 = vld [vmem:[%s236 + $0x70] sm:$0xf]
      %v280 = vld [vmem:[%s236 + $0x74] sm:$0xf]
      %v281 = vld [vmem:[%s236 + $0x78] sm:$0xf]
      %v282 = vld [vmem:[%s236 + $0x7c] sm:$0xf]
      %v283 = vld [vmem:[%s2] sm:$0xf]
      %v284 = vld [vmem:[%s2 + $0x4] sm:$0xf]
      %v285 = vld [vmem:[%s2 + $0x8] sm:$0xf]
      %v286 = vld [vmem:[%s2 + $0xc] sm:$0xf]
      %v287 = vld [vmem:[%s2 + $0x10] sm:$0xf]
      %v288 = vld [vmem:[%s2 + $0x14] sm:$0xf]
      %v289 = vld [vmem:[%s2 + $0x18] sm:$0xf]
      %v290 = vld [vmem:[%s2 + $0x1c] sm:$0xf]
      %v291 = vld [vmem:[%s2 + $0x20] sm:$0xf]
      %v292 = vld [vmem:[%s2 + $0x24] sm:$0xf]
      %v293 = vld [vmem:[%s2 + $0x28] sm:$0xf]
      %v294 = vld [vmem:[%s2 + $0x2c] sm:$0xf]
      %v295 = vld [vmem:[%s2 + $0x30] sm:$0xf]
      %v296 = vld [vmem:[%s2 + $0x34] sm:$0xf]
      %v297 = vld [vmem:[%s2 + $0x38] sm:$0xf]
      %v298 = vld [vmem:[%s2 + $0x3c] sm:$0xf]
      %v299 = vld [vmem:[%s3] sm:$0x1]
      %v301 = vlaneseq
      %v302 = vshrl.u32 %v301, 7
      %v303 = vsub.s32 0, %v302
      %v304 = vrot.slane %v299, %v303
      %v338 = vunpack.c.l.b16 %v251
      %v339 = vunpack.c.l.b16 %v252
      %v340 = vunpack.c.l.b16 %v253
      %v341 = vunpack.c.l.b16 %v254
      %v342 = vunpack.c.l.b16 %v255
      %v343 = vunpack.c.l.b16 %v256
      %v344 = vunpack.c.l.b16 %v257
      %v345 = vunpack.c.l.b16 %v258
      %v346 = vunpack.c.l.b16 %v259
      %v347 = vunpack.c.l.b16 %v260
      %v348 = vunpack.c.l.b16 %v261
      %v349 = vunpack.c.l.b16 %v262
      %v350 = vunpack.c.l.b16 %v263
      %v351 = vunpack.c.l.b16 %v264
      %v352 = vunpack.c.l.b16 %v265
      %v353 = vunpack.c.l.b16 %v266
      %v354 = vunpack.c.l.b16 %v267
      %v355 = vunpack.c.l.b16 %v268
      %v356 = vunpack.c.l.b16 %v269
      %v357 = vunpack.c.l.b16 %v270
      %v358 = vunpack.c.l.b16 %v271
      %v359 = vunpack.c.l.b16 %v272
      %v360 = vunpack.c.l.b16 %v273
      %v361 = vunpack.c.l.b16 %v274
      %v362 = vunpack.c.l.b16 %v275
      %v363 = vunpack.c.l.b16 %v276
      %v364 = vunpack.c.l.b16 %v277
      %v365 = vunpack.c.l.b16 %v278
      %v366 = vunpack.c.l.b16 %v279
      %v367 = vunpack.c.l.b16 %v280
      %v368 = vunpack.c.l.b16 %v281
      %v369 = vunpack.c.l.b16 %v282
      %v370 = vpack.c.b16 %v339, %v338
      %v371 = vpack.c.b16 %v341, %v340
      %v372 = vpack.c.b16 %v343, %v342
      %v373 = vpack.c.b16 %v345, %v344
      %v374 = vpack.c.b16 %v347, %v346
      %v375 = vpack.c.b16 %v349, %v348
      %v376 = vpack.c.b16 %v351, %v350
      %v377 = vpack.c.b16 %v353, %v352
      %v378 = vpack.c.b16 %v355, %v354
      %v379 = vpack.c.b16 %v357, %v356
      %v380 = vpack.c.b16 %v359, %v358
      %v381 = vpack.c.b16 %v361, %v360
      %v382 = vpack.c.b16 %v363, %v362
      %v383 = vpack.c.b16 %v365, %v364
      %v384 = vpack.c.b16 %v367, %v366
      %v385 = vpack.c.b16 %v369, %v368
      %v418 = vunpack.c.l.b16 %v283
      %v419 = vunpack.c.l.b16 %v284
      %v420 = vunpack.c.l.b16 %v285
      %v421 = vunpack.c.l.b16 %v286
      %v422 = vunpack.c.l.b16 %v287
      %v423 = vunpack.c.l.b16 %v288
      %v424 = vunpack.c.l.b16 %v289
      %v425 = vunpack.c.l.b16 %v290
      %v426 = vunpack.c.l.b16 %v291
      %v427 = vunpack.c.l.b16 %v292
      %v428 = vunpack.c.l.b16 %v293
      %v429 = vunpack.c.l.b16 %v294
      %v430 = vunpack.c.l.b16 %v295
      %v431 = vunpack.c.l.b16 %v296
      %v432 = vunpack.c.l.b16 %v297
      %v433 = vunpack.c.l.b16 %v298
      %v434 = vpack.c.b16 %v419, %v418
      %v435 = vpack.c.b16 %v421, %v420
      %v436 = vpack.c.b16 %v423, %v422
      %v437 = vpack.c.b16 %v425, %v424
      %v438 = vpack.c.b16 %v427, %v426
      %v439 = vpack.c.b16 %v429, %v428
      %v440 = vpack.c.b16 %v431, %v430
      %v441 = vpack.c.b16 %v433, %v432
      %450 = vmatprep.subr.bf16.mxu0 0
      %451 = vmatpush1.bf16.msra.mxu0 %v434
      %452 = vmatprep.subr.bf16.mxu0 0
      %453 = vmatpush1.bf16.msra.mxu0 %v435
      %454 = vmatprep.subr.bf16.mxu0 0
      %455 = vmatpush1.bf16.msra.mxu0 %v436
      %456 = vmatprep.subr.bf16.mxu0 0
      %457 = vmatpush1.bf16.msra.mxu0 %v437
      %458 = vmatprep.subr.bf16.mxu0 0
      %459 = vmatpush1.bf16.msra.mxu0 %v438
      %460 = vmatprep.subr.bf16.mxu0 0
      %461 = vmatpush1.bf16.msra.mxu0 %v439
      %462 = vmatprep.subr.bf16.mxu0 0
      %463 = vmatpush1.bf16.msra.mxu0 %v440
      %464 = vmatprep.subr.bf16.mxu0 0
      %465 = vmatpush1.bf16.msra.mxu0 %v441
      %466 = vmatprep.subr.bf16.mxu0 0
      %467 = vmatpush1.bf16.msra.mxu0 0
      %468 = vmatprep.subr.bf16.mxu0 0
      %469 = vmatpush1.bf16.msra.mxu0 0
      %470 = vmatprep.subr.bf16.mxu0 0
      %471 = vmatpush1.bf16.msra.mxu0 0
      %472 = vmatprep.subr.bf16.mxu0 0
      %473 = vmatpush1.bf16.msra.mxu0 0
      %474 = vmatprep.subr.bf16.mxu0 0
      %475 = vmatpush1.bf16.msra.mxu0 0
      %476 = vmatprep.subr.bf16.mxu0 0
      %477 = vmatpush1.bf16.msra.mxu0 0
      %478 = vmatprep.subr.bf16.mxu0 0
      %479 = vmatpush1.bf16.msra.mxu0 0
      %480 = vmatprep.subr.bf16.mxu0 0
      %481 = vmatpush1.bf16.msra.mxu0 0
      %482 = vmatprep.mubr.bf16.mxu0 0
      %483 = vmatmul.mubr.bf16.gmra.mrb[0].mxu0 %v370
      %v484 = vpop.f32.mrb[0].mxu0
      %v485 = vadd.f32 %v304, %v484
      %v486 = vpop.f32.mrb[0].mxu0
      %v487 = vpop.f32.mrb[0].mxu0
      %v488 = vadd.f32 %v304, %v487
      %v489 = vpop.f32.mrb[0].mxu0
      %490 = vmatprep.mubr.bf16.mxu0 0
      %491 = vmatmul.mubr.bf16.gmra.mrb[0].mxu0 %v371
      %v492 = vpop.f32.mrb[0].mxu0
      %v493 = vadd.f32 %v304, %v492
      %v494 = vpop.f32.mrb[0].mxu0
      %v495 = vpop.f32.mrb[0].mxu0
      %v496 = vadd.f32 %v304, %v495
      %v497 = vpop.f32.mrb[0].mxu0
      %498 = vmatprep.mubr.bf16.mxu0 0
      %499 = vmatmul.mubr.bf16.gmra.mrb[0].mxu0 %v372
      %v500 = vpop.f32.mrb[0].mxu0
      %v501 = vadd.f32 %v304, %v500
      %v502 = vpop.f32.mrb[0].mxu0
      %v503 = vpop.f32.mrb[0].mxu0
      %v504 = vadd.f32 %v304, %v503
      %v505 = vpop.f32.mrb[0].mxu0
      %506 = vmatprep.mubr.bf16.mxu0 0
      %507 = vmatmul.mubr.bf16.gmra.mrb[0].mxu0 %v373
      %v508 = vpop.f32.mrb[0].mxu0
      %v509 = vadd.f32 %v304, %v508
      %v510 = vpop.f32.mrb[0].mxu0
      %v511 = vpop.f32.mrb[0].mxu0
      %v512 = vadd.f32 %v304, %v511
      %v513 = vpop.f32.mrb[0].mxu0
      %514 = vmatprep.mubr.bf16.mxu0 0
      %515 = vmatmul.mubr.bf16.gmra.mrb[0].mxu0 %v374
      %v516 = vpop.f32.mrb[0].mxu0
      %v517 = vadd.f32 %v304, %v516
      %v518 = vpop.f32.mrb[0].mxu0
      %v519 = vpop.f32.mrb[0].mxu0
      %v520 = vadd.f32 %v304, %v519
      %v521 = vpop.f32.mrb[0].mxu0
      %522 = vmatprep.mubr.bf16.mxu0 0
      %523 = vmatmul.mubr.bf16.gmra.mrb[0].mxu0 %v375
      %v524 = vpop.f32.mrb[0].mxu0
      %v525 = vadd.f32 %v304, %v524
      %v526 = vpop.f32.mrb[0].mxu0
      %v527 = vpop.f32.mrb[0].mxu0
      %v528 = vadd.f32 %v304, %v527
      %v529 = vpop.f32.mrb[0].mxu0
      %530 = vmatprep.mubr.bf16.mxu0 0
      %531 = vmatmul.mubr.bf16.gmra.mrb[0].mxu0 %v376
      %v532 = vpop.f32.mrb[0].mxu0
      %v533 = vadd.f32 %v304, %v532
      %v534 = vpop.f32.mrb[0].mxu0
      %v535 = vpop.f32.mrb[0].mxu0
      %v536 = vadd.f32 %v304, %v535
      %v537 = vpop.f32.mrb[0].mxu0
      %538 = vmatprep.mubr.bf16.mxu0 0
      %539 = vmatmul.mubr.bf16.gmra.mrb[0].mxu0 %v377
      %v540 = vpop.f32.mrb[0].mxu0
      %v541 = vadd.f32 %v304, %v540
      %v542 = vpop.f32.mrb[0].mxu0
      %v543 = vpop.f32.mrb[0].mxu0
      %v544 = vadd.f32 %v304, %v543
      %v545 = vpop.f32.mrb[0].mxu0
      %546 = vmatprep.mubr.bf16.mxu0 0
      %547 = vmatmul.mubr.bf16.gmra.mrb[0].mxu0 %v378
      %v548 = vpop.f32.mrb[0].mxu0
      %v549 = vadd.f32 %v304, %v548
      %v550 = vpop.f32.mrb[0].mxu0
      %v551 = vpop.f32.mrb[0].mxu0
      %v552 = vadd.f32 %v304, %v551
      %v553 = vpop.f32.mrb[0].mxu0
      %554 = vmatprep.mubr.bf16.mxu0 0
      %555 = vmatmul.mubr.bf16.gmra.mrb[0].mxu0 %v379
      %v556 = vpop.f32.mrb[0].mxu0
      %v557 = vadd.f32 %v304, %v556
      %v558 = vpop.f32.mrb[0].mxu0
      %v559 = vpop.f32.mrb[0].mxu0
      %v560 = vadd.f32 %v304, %v559
      %v561 = vpop.f32.mrb[0].mxu0
      %562 = vmatprep.mubr.bf16.mxu0 0
      %563 = vmatmul.mubr.bf16.gmra.mrb[0].mxu0 %v380
      %v564 = vpop.f32.mrb[0].mxu0
      %v565 = vadd.f32 %v304, %v564
      %v566 = vpop.f32.mrb[0].mxu0
      %v567 = vpop.f32.mrb[0].mxu0
      %v568 = vadd.f32 %v304, %v567
      %v569 = vpop.f32.mrb[0].mxu0
      %570 = vmatprep.mubr.bf16.mxu0 0
      %571 = vmatmul.mubr.bf16.gmra.mrb[0].mxu0 %v381
      %v572 = vpop.f32.mrb[0].mxu0
      %v573 = vadd.f32 %v304, %v572
      %v574 = vpop.f32.mrb[0].mxu0
      %v575 = vpop.f32.mrb[0].mxu0
      %v576 = vadd.f32 %v304, %v575
      %v577 = vpop.f32.mrb[0].mxu0
      %578 = vmatprep.mubr.bf16.mxu0 0
      %579 = vmatmul.mubr.bf16.gmra.mrb[0].mxu0 %v382
      %v580 = vpop.f32.mrb[0].mxu0
      %v581 = vadd.f32 %v304, %v580
      %v582 = vpop.f32.mrb[0].mxu0
      %v583 = vpop.f32.mrb[0].mxu0
      %v584 = vadd.f32 %v304, %v583
      %v585 = vpop.f32.mrb[0].mxu0
      %586 = vmatprep.mubr.bf16.mxu0 0
      %587 = vmatmul.mubr.bf16.gmra.mrb[0].mxu0 %v383
      %v588 = vpop.f32.mrb[0].mxu0
      %v589 = vadd.f32 %v304, %v588
      %v590 = vpop.f32.mrb[0].mxu0
      %v591 = vpop.f32.mrb[0].mxu0
      %v592 = vadd.f32 %v304, %v591
      %v593 = vpop.f32.mrb[0].mxu0
      %594 = vmatprep.mubr.bf16.mxu0 0
      %595 = vmatmul.mubr.bf16.gmra.mrb[0].mxu0 %v384
      %v596 = vpop.f32.mrb[0].mxu0
      %v597 = vadd.f32 %v304, %v596
      %v598 = vpop.f32.mrb[0].mxu0
      %v599 = vpop.f32.mrb[0].mxu0
      %v600 = vadd.f32 %v304, %v599
      %v601 = vpop.f32.mrb[0].mxu0
      %602 = vmatprep.mubr.bf16.mxu0 0
      %603 = vmatmul.mubr.bf16.gmra.mrb[0].mxu0 %v385
      %v604 = vpop.f32.mrb[0].mxu0
      %v605 = vadd.f32 %v304, %v604
      %v606 = vpop.f32.mrb[0].mxu0
      %v607 = vpop.f32.mrb[0].mxu0
      %v608 = vadd.f32 %v304, %v607
      %v609 = vpop.f32.mrb[0].mxu0
      %610 = vdwg.mxu0
      %v611 = vxor.u32 %v485, 2147483648
      %v612 = vxor.u32 %v488, 2147483648
      %v613 = vxor.u32 %v493, 2147483648
      %v614 = vxor.u32 %v496, 2147483648
      %v615 = vxor.u32 %v501, 2147483648
      %v616 = vxor.u32 %v504, 2147483648
      %v617 = vxor.u32 %v509, 2147483648
      %v618 = vxor.u32 %v512, 2147483648
      %v619 = vxor.u32 %v517, 2147483648
      %v620 = vxor.u32 %v520, 2147483648
      %v621 = vxor.u32 %v525, 2147483648
      %v622 = vxor.u32 %v528, 2147483648
      %v623 = vxor.u32 %v533, 2147483648
      %v624 = vxor.u32 %v536, 2147483648
      %v625 = vxor.u32 %v541, 2147483648
      %v626 = vxor.u32 %v544, 2147483648
      %v627 = vxor.u32 %v549, 2147483648
      %v628 = vxor.u32 %v552, 2147483648
      %v629 = vxor.u32 %v557, 2147483648
      %v630 = vxor.u32 %v560, 2147483648
      %v631 = vxor.u32 %v565, 2147483648
      %v632 = vxor.u32 %v568, 2147483648
      %v633 = vxor.u32 %v573, 2147483648
      %v634 = vxor.u32 %v576, 2147483648
      %v635 = vxor.u32 %v581, 2147483648
      %v636 = vxor.u32 %v584, 2147483648
      %v637 = vxor.u32 %v589, 2147483648
      %v638 = vxor.u32 %v592, 2147483648
      %v639 = vxor.u32 %v597, 2147483648
      %v640 = vxor.u32 %v600, 2147483648
      %v641 = vxor.u32 %v605, 2147483648
      %v642 = vxor.u32 %v608, 2147483648
      %v643 = vmul.f32 %v611, 1.442695
      %v644 = vpow.pop %v643
      %v645 = vmul.f32 %v612, 1.442695
      %v646 = vpow.pop %v645
      %v647 = vmul.f32 %v613, 1.442695
      %v648 = vpow.pop %v647
      %v649 = vmul.f32 %v614, 1.442695
      %v650 = vpow.pop %v649
      %v651 = vmul.f32 %v615, 1.442695
      %v652 = vpow.pop %v651
      %v653 = vmul.f32 %v616, 1.442695
      %v654 = vpow.pop %v653
      %v655 = vmul.f32 %v617, 1.442695
      %v656 = vpow.pop %v655
      %v657 = vmul.f32 %v618, 1.442695
      %v658 = vpow.pop %v657
      %v659 = vmul.f32 %v619, 1.442695
      %v660 = vpow.pop %v659
      %v661 = vmul.f32 %v620, 1.442695
      %v662 = vpow.pop %v661
      %v663 = vmul.f32 %v621, 1.442695
      %v664 = vpow.pop %v663
      %v665 = vmul.f32 %v622, 1.442695
      %v666 = vpow.pop %v665
      %v667 = vmul.f32 %v623, 1.442695
      %v668 = vpow.pop %v667
      %v669 = vmul.f32 %v624, 1.442695
      %v670 = vpow.pop %v669
      %v671 = vmul.f32 %v625, 1.442695
      %v672 = vpow.pop %v671
      %v673 = vmul.f32 %v626, 1.442695
      %v674 = vpow.pop %v673
      %v675 = vmul.f32 %v627, 1.442695
      %v676 = vpow.pop %v675
      %v677 = vmul.f32 %v628, 1.442695
      %v678 = vpow.pop %v677
      %v679 = vmul.f32 %v629, 1.442695
      %v680 = vpow.pop %v679
      %v681 = vmul.f32 %v630, 1.442695
      %v682 = vpow.pop %v681
      %v683 = vmul.f32 %v631, 1.442695
      %v684 = vpow.pop %v683
      %v685 = vmul.f32 %v632, 1.442695
      %v686 = vpow.pop %v685
      %v687 = vmul.f32 %v633, 1.442695
      %v688 = vpow.pop %v687
      %v689 = vmul.f32 %v634, 1.442695
      %v690 = vpow.pop %v689
      %v691 = vmul.f32 %v635, 1.442695
      %v692 = vpow.pop %v691
      %v693 = vmul.f32 %v636, 1.442695
      %v694 = vpow.pop %v693
      %v695 = vmul.f32 %v637, 1.442695
      %v696 = vpow.pop %v695
      %v697 = vmul.f32 %v638, 1.442695
      %v698 = vpow.pop %v697
      %v699 = vmul.f32 %v639, 1.442695
      %v700 = vpow.pop %v699
      %v701 = vmul.f32 %v640, 1.442695
      %v702 = vpow.pop %v701
      %v703 = vmul.f32 %v641, 1.442695
      %v704 = vpow.pop %v703
      %v705 = vmul.f32 %v642, 1.442695
      %v706 = vpow.pop %v705
      %v707 = vadd.f32 %v644, 1.0
      %v708 = vadd.f32 %v646, 1.0
      %v709 = vadd.f32 %v648, 1.0
      %v710 = vadd.f32 %v650, 1.0
      %v711 = vadd.f32 %v652, 1.0
      %v712 = vadd.f32 %v654, 1.0
      %v713 = vadd.f32 %v656, 1.0
      %v714 = vadd.f32 %v658, 1.0
      %v715 = vadd.f32 %v660, 1.0
      %v716 = vadd.f32 %v662, 1.0
      %v717 = vadd.f32 %v664, 1.0
      %v718 = vadd.f32 %v666, 1.0
      %v719 = vadd.f32 %v668, 1.0
      %v720 = vadd.f32 %v670, 1.0
      %v721 = vadd.f32 %v672, 1.0
      %v722 = vadd.f32 %v674, 1.0
      %v723 = vadd.f32 %v676, 1.0
      %v724 = vadd.f32 %v678, 1.0
      %v725 = vadd.f32 %v680, 1.0
      %v726 = vadd.f32 %v682, 1.0
      %v727 = vadd.f32 %v684, 1.0
      %v728 = vadd.f32 %v686, 1.0
      %v729 = vadd.f32 %v688, 1.0
      %v730 = vadd.f32 %v690, 1.0
      %v731 = vadd.f32 %v692, 1.0
      %v732 = vadd.f32 %v694, 1.0
      %v733 = vadd.f32 %v696, 1.0
      %v734 = vadd.f32 %v698, 1.0
      %v735 = vadd.f32 %v700, 1.0
      %v736 = vadd.f32 %v702, 1.0
      %v737 = vadd.f32 %v704, 1.0
      %v738 = vadd.f32 %v706, 1.0
      %v739 = vrcp.pop %v707
      %v740 = vmul.f32 1.0, %v739
      %v741 = vrcp.pop %v708
      %v742 = vmul.f32 1.0, %v741
      %v743 = vrcp.pop %v709
      %v744 = vmul.f32 1.0, %v743
      %v745 = vrcp.pop %v710
      %v746 = vmul.f32 1.0, %v745
      %v747 = vrcp.pop %v711
      %v748 = vmul.f32 1.0, %v747
      %v749 = vrcp.pop %v712
      %v750 = vmul.f32 1.0, %v749
      %v751 = vrcp.pop %v713
      %v752 = vmul.f32 1.0, %v751
      %v753 = vrcp.pop %v714
      %v754 = vmul.f32 1.0, %v753
      %v755 = vrcp.pop %v715
      %v756 = vmul.f32 1.0, %v755
      %v757 = vrcp.pop %v716
      %v758 = vmul.f32 1.0, %v757
      %v759 = vrcp.pop %v717
      %v760 = vmul.f32 1.0, %v759
      %v761 = vrcp.pop %v718
      %v762 = vmul.f32 1.0, %v761
      %v763 = vrcp.pop %v719
      %v764 = vmul.f32 1.0, %v763
      %v765 = vrcp.pop %v720
      %v766 = vmul.f32 1.0, %v765
      %v767 = vrcp.pop %v721
      %v768 = vmul.f32 1.0, %v767
      %v769 = vrcp.pop %v722
      %v770 = vmul.f32 1.0, %v769
      %v771 = vrcp.pop %v723
      %v772 = vmul.f32 1.0, %v771
      %v773 = vrcp.pop %v724
      %v774 = vmul.f32 1.0, %v773
      %v775 = vrcp.pop %v725
      %v776 = vmul.f32 1.0, %v775
      %v777 = vrcp.pop %v726
      %v778 = vmul.f32 1.0, %v777
      %v779 = vrcp.pop %v727
      %v780 = vmul.f32 1.0, %v779
      %v781 = vrcp.pop %v728
      %v782 = vmul.f32 1.0, %v781
      %v783 = vrcp.pop %v729
      %v784 = vmul.f32 1.0, %v783
      %v785 = vrcp.pop %v730
      %v786 = vmul.f32 1.0, %v785
      %v787 = vrcp.pop %v731
      %v788 = vmul.f32 1.0, %v787
      %v789 = vrcp.pop %v732
      %v790 = vmul.f32 1.0, %v789
      %v791 = vrcp.pop %v733
      %v792 = vmul.f32 1.0, %v791
      %v793 = vrcp.pop %v734
      %v794 = vmul.f32 1.0, %v793
      %v795 = vrcp.pop %v735
      %v796 = vmul.f32 1.0, %v795
      %v797 = vrcp.pop %v736
      %v798 = vmul.f32 1.0, %v797
      %v799 = vrcp.pop %v737
      %v800 = vmul.f32 1.0, %v799
      %v801 = vrcp.pop %v738
      %v802 = vmul.f32 1.0, %v801
      %vm803 = vcmask 64512
      %804 = vst.msk [vmem:[#allocation2] sm:$0xff] %vm803, %v740
      %805 = vst.msk [vmem:[#allocation2 + $0x8] sm:$0xff] %vm803, %v742
      %806 = vst.msk [vmem:[#allocation2 + $0x10] sm:$0xff] %vm803, %v744
      %807 = vst.msk [vmem:[#allocation2 + $0x18] sm:$0xff] %vm803, %v746
      %808 = vst.msk [vmem:[#allocation2 + $0x20] sm:$0xff] %vm803, %v748
      %809 = vst.msk [vmem:[#allocation2 + $0x28] sm:$0xff] %vm803, %v750
      %810 = vst.msk [vmem:[#allocation2 + $0x30] sm:$0xff] %vm803, %v752
      %811 = vst.msk [vmem:[#allocation2 + $0x38] sm:$0xff] %vm803, %v754
      %812 = vst.msk [vmem:[#allocation2 + $0x40] sm:$0xff] %vm803, %v756
      %813 = vst.msk [vmem:[#allocation2 + $0x48] sm:$0xff] %vm803, %v758
      %814 = vst.msk [vmem:[#allocation2 + $0x50] sm:$0xff] %vm803, %v760
      %815 = vst.msk [vmem:[#allocation2 + $0x58] sm:$0xff] %vm803, %v762
      %816 = vst.msk [vmem:[#allocation2 + $0x60] sm:$0xff] %vm803, %v764
      %817 = vst.msk [vmem:[#allocation2 + $0x68] sm:$0xff] %vm803, %v766
      %818 = vst.msk [vmem:[#allocation2 + $0x70] sm:$0xff] %vm803, %v768
      %819 = vst.msk [vmem:[#allocation2 + $0x78] sm:$0xff] %vm803, %v770
      %820 = vst.msk [vmem:[#allocation2 + $0x80] sm:$0xff] %vm803, %v772
      %821 = vst.msk [vmem:[#allocation2 + $0x88] sm:$0xff] %vm803, %v774
      %822 = vst.msk [vmem:[#allocation2 + $0x90] sm:$0xff] %vm803, %v776
      %823 = vst.msk [vmem:[#allocation2 + $0x98] sm:$0xff] %vm803, %v778
      %824 = vst.msk [vmem:[#allocation2 + $0xa0] sm:$0xff] %vm803, %v780
      %825 = vst.msk [vmem:[#allocation2 + $0xa8] sm:$0xff] %vm803, %v782
      %826 = vst.msk [vmem:[#allocation2 + $0xb0] sm:$0xff] %vm803, %v784
      %827 = vst.msk [vmem:[#allocation2 + $0xb8] sm:$0xff] %vm803, %v786
      %828 = vst.msk [vmem:[#allocation2 + $0xc0] sm:$0xff] %vm803, %v788
      %829 = vst.msk [vmem:[#allocation2 + $0xc8] sm:$0xff] %vm803, %v790
      %830 = vst.msk [vmem:[#allocation2 + $0xd0] sm:$0xff] %vm803, %v792
      %831 = vst.msk [vmem:[#allocation2 + $0xd8] sm:$0xff] %vm803, %v794
      %832 = vst.msk [vmem:[#allocation2 + $0xe0] sm:$0xff] %vm803, %v796
      %833 = vst.msk [vmem:[#allocation2 + $0xe8] sm:$0xff] %vm803, %v798
      %834 = vst.msk [vmem:[#allocation2 + $0xf0] sm:$0xff] %vm803, %v800
      %835 = vst.msk [vmem:[#allocation2 + $0xf8] sm:$0xff] %vm803, %v802
      %836 = vst.msk [vmem:[#allocation2 + $0x100] sm:$0xff] %vm803, %v740
      %837 = vst.msk [vmem:[#allocation2 + $0x108] sm:$0xff] %vm803, %v742
      %838 = vst.msk [vmem:[#allocation2 + $0x110] sm:$0xff] %vm803, %v744
      %839 = vst.msk [vmem:[#allocation2 + $0x118] sm:$0xff] %vm803, %v746
      %840 = vst.msk [vmem:[#allocation2 + $0x120] sm:$0xff] %vm803, %v748
      %841 = vst.msk [vmem:[#allocation2 + $0x128] sm:$0xff] %vm803, %v750
      %842 = vst.msk [vmem:[#allocation2 + $0x130] sm:$0xff] %vm803, %v752
      %843 = vst.msk [vmem:[#allocation2 + $0x138] sm:$0xff] %vm803, %v754
      %844 = vst.msk [vmem:[#allocation2 + $0x140] sm:$0xff] %vm803, %v756
      %845 = vst.msk [vmem:[#allocation2 + $0x148] sm:$0xff] %vm803, %v758
      %846 = vst.msk [vmem:[#allocation2 + $0x150] sm:$0xff] %vm803, %v760
      %847 = vst.msk [vmem:[#allocation2 + $0x158] sm:$0xff] %vm803, %v762
      %848 = vst.msk [vmem:[#allocation2 + $0x160] sm:$0xff] %vm803, %v764
      %849 = vst.msk [vmem:[#allocation2 + $0x168] sm:$0xff] %vm803, %v766
      %850 = vst.msk [vmem:[#allocation2 + $0x170] sm:$0xff] %vm803, %v768
      %851 = vst.msk [vmem:[#allocation2 + $0x178] sm:$0xff] %vm803, %v770
      %852 = vst.msk [vmem:[#allocation2 + $0x180] sm:$0xff] %vm803, %v772
      %853 = vst.msk [vmem:[#allocation2 + $0x188] sm:$0xff] %vm803, %v774
      %854 = vst.msk [vmem:[#allocation2 + $0x190] sm:$0xff] %vm803, %v776
      %855 = vst.msk [vmem:[#allocation2 + $0x198] sm:$0xff] %vm803, %v778
      %856 = vst.msk [vmem:[#allocation2 + $0x1a0] sm:$0xff] %vm803, %v780
      %857 = vst.msk [vmem:[#allocation2 + $0x1a8] sm:$0xff] %vm803, %v782
      %858 = vst.msk [vmem:[#allocation2 + $0x1b0] sm:$0xff] %vm803, %v784
      %859 = vst.msk [vmem:[#allocation2 + $0x1b8] sm:$0xff] %vm803, %v786
      %860 = vst.msk [vmem:[#allocation2 + $0x1c0] sm:$0xff] %vm803, %v788
      %861 = vst.msk [vmem:[#allocation2 + $0x1c8] sm:$0xff] %vm803, %v790
      %862 = vst.msk [vmem:[#allocation2 + $0x1d0] sm:$0xff] %vm803, %v792
      %863 = vst.msk [vmem:[#allocation2 + $0x1d8] sm:$0xff] %vm803, %v794
      %864 = vst.msk [vmem:[#allocation2 + $0x1e0] sm:$0xff] %vm803, %v796
      %865 = vst.msk [vmem:[#allocation2 + $0x1e8] sm:$0xff] %vm803, %v798
      %866 = vst.msk [vmem:[#allocation2 + $0x1f0] sm:$0xff] %vm803, %v800
      %867 = vst.msk [vmem:[#allocation2 + $0x1f8] sm:$0xff] %vm803, %v802
      %v868 = vld [vmem:[#allocation2 + $0xef] sm:$0xff]
      %v869 = vld [vmem:[#allocation2 + $0xf7] sm:$0xff]
      %v870 = vld [vmem:[#allocation2 + $0xff] sm:$0xff]
      %v871 = vld [vmem:[#allocation2 + $0x107] sm:$0xff]
      %v872 = vld [vmem:[#allocation2 + $0x10f] sm:$0xff]
      %v873 = vld [vmem:[#allocation2 + $0x117] sm:$0xff]
      %v874 = vld [vmem:[#allocation2 + $0x11f] sm:$0xff]
      %v875 = vld [vmem:[#allocation2 + $0x127] sm:$0xff]
      %v876 = vld [vmem:[#allocation2 + $0x12f] sm:$0xff]
      %v877 = vld [vmem:[#allocation2 + $0x137] sm:$0xff]
      %v878 = vld [vmem:[#allocation2 + $0x13f] sm:$0xff]
      %v879 = vld [vmem:[#allocation2 + $0x147] sm:$0xff]
      %v880 = vld [vmem:[#allocation2 + $0x14f] sm:$0xff]
      %v881 = vld [vmem:[#allocation2 + $0x157] sm:$0xff]
      %v882 = vld [vmem:[#allocation2 + $0x15f] sm:$0xff]
      %v883 = vld [vmem:[#allocation2 + $0x167] sm:$0xff]
      %v884 = vld [vmem:[#allocation2 + $0x16f] sm:$0xff]
      %v885 = vld [vmem:[#allocation2 + $0x177] sm:$0xff]
      %v886 = vld [vmem:[#allocation2 + $0x17f] sm:$0xff]
      %v887 = vld [vmem:[#allocation2 + $0x187] sm:$0xff]
      %v888 = vld [vmem:[#allocation2 + $0x18f] sm:$0xff]
      %v889 = vld [vmem:[#allocation2 + $0x197] sm:$0xff]
      %v890 = vld [vmem:[#allocation2 + $0x19f] sm:$0xff]
      %v891 = vld [vmem:[#allocation2 + $0x1a7] sm:$0xff]
      %v892 = vld [vmem:[#allocation2 + $0x1af] sm:$0xff]
      %v893 = vld [vmem:[#allocation2 + $0x1b7] sm:$0xff]
      %v894 = vld [vmem:[#allocation2 + $0x1bf] sm:$0xff]
      %v895 = vld [vmem:[#allocation2 + $0x1c7] sm:$0xff]
      %v896 = vld [vmem:[#allocation2 + $0x1cf] sm:$0xff]
      %v897 = vld [vmem:[#allocation2 + $0x1d7] sm:$0xff]
      %v898 = vld [vmem:[#allocation2 + $0x1df] sm:$0xff]
      %v899 = vld [vmem:[#allocation2 + $0x1e7] sm:$0xff]
      %v900 = vunpack.c.l.bf16 %v251
      %v901 = vunpack.c.l.bf16 %v252
      %v902 = vunpack.c.l.bf16 %v253
      %v903 = vunpack.c.l.bf16 %v254
      %v904 = vunpack.c.l.bf16 %v255
      %v905 = vunpack.c.l.bf16 %v256
      %v906 = vunpack.c.l.bf16 %v257
      %v907 = vunpack.c.l.bf16 %v258
      %v908 = vunpack.c.l.bf16 %v259
      %v909 = vunpack.c.l.bf16 %v260
      %v910 = vunpack.c.l.bf16 %v261
      %v911 = vunpack.c.l.bf16 %v262
      %v912 = vunpack.c.l.bf16 %v263
      %v913 = vunpack.c.l.bf16 %v264
      %v914 = vunpack.c.l.bf16 %v265
      %v915 = vunpack.c.l.bf16 %v266
      %v916 = vunpack.c.l.bf16 %v267
      %v917 = vunpack.c.l.bf16 %v268
      %v918 = vunpack.c.l.bf16 %v269
      %v919 = vunpack.c.l.bf16 %v270
      %v920 = vunpack.c.l.bf16 %v271
      %v921 = vunpack.c.l.bf16 %v272
      %v922 = vunpack.c.l.bf16 %v273
      %v923 = vunpack.c.l.bf16 %v274
      %v924 = vunpack.c.l.bf16 %v275
      %v925 = vunpack.c.l.bf16 %v276
      %v926 = vunpack.c.l.bf16 %v277
      %v927 = vunpack.c.l.bf16 %v278
      %v928 = vunpack.c.l.bf16 %v279
      %v929 = vunpack.c.l.bf16 %v280
      %v930 = vunpack.c.l.bf16 %v281
      %v931 = vunpack.c.l.bf16 %v282
      %v932 = vmul.f32 %v868, %v900
      %v933 = vmul.f32 %v869, %v901
      %v934 = vmul.f32 %v870, %v902
      %v935 = vmul.f32 %v871, %v903
      %v936 = vmul.f32 %v872, %v904
      %v937 = vmul.f32 %v873, %v905
      %v938 = vmul.f32 %v874, %v906
      %v939 = vmul.f32 %v875, %v907
      %v940 = vmul.f32 %v876, %v908
      %v941 = vmul.f32 %v877, %v909
      %v942 = vmul.f32 %v878, %v910
      %v943 = vmul.f32 %v879, %v911
      %v944 = vmul.f32 %v880, %v912
      %v945 = vmul.f32 %v881, %v913
      %v946 = vmul.f32 %v882, %v914
      %v947 = vmul.f32 %v883, %v915
      %v948 = vmul.f32 %v884, %v916
      %v949 = vmul.f32 %v885, %v917
      %v950 = vmul.f32 %v886, %v918
      %v951 = vmul.f32 %v887, %v919
      %v952 = vmul.f32 %v888, %v920
      %v953 = vmul.f32 %v889, %v921
      %v954 = vmul.f32 %v890, %v922
      %v955 = vmul.f32 %v891, %v923
      %v956 = vmul.f32 %v892, %v924
      %v957 = vmul.f32 %v893, %v925
      %v958 = vmul.f32 %v894, %v926
      %v959 = vmul.f32 %v895, %v927
      %v960 = vmul.f32 %v896, %v928
      %v961 = vmul.f32 %v897, %v929
      %v962 = vmul.f32 %v898, %v930
      %v963 = vmul.f32 %v899, %v931
      %v964 = vld [vmem:[%s4] sm:$0xff]
      %v965 = vld [vmem:[#allocation2 + $0xf0] sm:$0xff]
      %v966 = vld [vmem:[#allocation2 + $0xf8] sm:$0xff]
      %v967 = vld [vmem:[#allocation2 + $0x100] sm:$0xff]
      %v968 = vld [vmem:[#allocation2 + $0x108] sm:$0xff]
      %v969 = vld [vmem:[#allocation2 + $0x110] sm:$0xff]
      %v970 = vld [vmem:[#allocation2 + $0x118] sm:$0xff]
      %v971 = vld [vmem:[#allocation2 + $0x120] sm:$0xff]
      %v972 = vld [vmem:[#allocation2 + $0x128] sm:$0xff]
      %v973 = vld [vmem:[#allocation2 + $0x130] sm:$0xff]
      %v974 = vld [vmem:[#allocation2 + $0x138] sm:$0xff]
      %v975 = vld [vmem:[#allocation2 + $0x140] sm:$0xff]
      %v976 = vld [vmem:[#allocation2 + $0x148] sm:$0xff]
      %v977 = vld [vmem:[#allocation2 + $0x150] sm:$0xff]
      %v978 = vld [vmem:[#allocation2 + $0x158] sm:$0xff]
      %v979 = vld [vmem:[#allocation2 + $0x160] sm:$0xff]
      %v980 = vld [vmem:[#allocation2 + $0x168] sm:$0xff]
      %v981 = vld [vmem:[#allocation2 + $0x170] sm:$0xff]
      %v982 = vld [vmem:[#allocation2 + $0x178] sm:$0xff]
      %v983 = vld [vmem:[#allocation2 + $0x180] sm:$0xff]
      %v984 = vld [vmem:[#allocation2 + $0x188] sm:$0xff]
      %v985 = vld [vmem:[#allocation2 + $0x190] sm:$0xff]
      %v986 = vld [vmem:[#allocation2 + $0x198] sm:$0xff]
      %v987 = vld [vmem:[#allocation2 + $0x1a0] sm:$0xff]
      %v988 = vld [vmem:[#allocation2 + $0x1a8] sm:$0xff]
      %v989 = vld [vmem:[#allocation2 + $0x1b0] sm:$0xff]
      %v990 = vld [vmem:[#allocation2 + $0x1b8] sm:$0xff]
      %v991 = vld [vmem:[#allocation2 + $0x1c0] sm:$0xff]
      %v992 = vld [vmem:[#allocation2 + $0x1c8] sm:$0xff]
      %v993 = vld [vmem:[#allocation2 + $0x1d0] sm:$0xff]
      %v994 = vld [vmem:[#allocation2 + $0x1d8] sm:$0xff]
      %v995 = vld [vmem:[#allocation2 + $0x1e0] sm:$0xff]
      %v996 = vld [vmem:[#allocation2 + $0x1e8] sm:$0xff]
      %1029 = vrot.lane.b32.xlu0 %v900, 120
      %v1030 = vpop.permute.xlu0 %1029
      %1031 = vrot.lane.b32.xlu0 %v901, 120
      %v1032 = vpop.permute.xlu0 %1031
      %1033 = vrot.lane.b32.xlu0 %v902, 120
      %v1034 = vpop.permute.xlu0 %1033
      %1035 = vrot.lane.b32.xlu0 %v903, 120
      %v1036 = vpop.permute.xlu0 %1035
      %1037 = vrot.lane.b32.xlu0 %v904, 120
      %v1038 = vpop.permute.xlu0 %1037
      %1039 = vrot.lane.b32.xlu0 %v905, 120
      %v1040 = vpop.permute.xlu0 %1039
      %1041 = vrot.lane.b32.xlu0 %v906, 120
      %v1042 = vpop.permute.xlu0 %1041
      %1043 = vrot.lane.b32.xlu0 %v907, 120
      %v1044 = vpop.permute.xlu0 %1043
      %1045 = vrot.lane.b32.xlu0 %v908, 120
      %v1046 = vpop.permute.xlu0 %1045
      %1047 = vrot.lane.b32.xlu0 %v909, 120
      %v1048 = vpop.permute.xlu0 %1047
      %1049 = vrot.lane.b32.xlu0 %v910, 120
      %v1050 = vpop.permute.xlu0 %1049
      %1051 = vrot.lane.b32.xlu0 %v911, 120
      %v1052 = vpop.permute.xlu0 %1051
      %1053 = vrot.lane.b32.xlu0 %v912, 120
      %v1054 = vpop.permute.xlu0 %1053
      %1055 = vrot.lane.b32.xlu0 %v913, 120
      %v1056 = vpop.permute.xlu0 %1055
      %1057 = vrot.lane.b32.xlu0 %v914, 120
      %v1058 = vpop.permute.xlu0 %1057
      %1059 = vrot.lane.b32.xlu0 %v915, 120
      %v1060 = vpop.permute.xlu0 %1059
      %1061 = vrot.lane.b32.xlu0 %v916, 120
      %v1062 = vpop.permute.xlu0 %1061
      %1063 = vrot.lane.b32.xlu0 %v917, 120
      %v1064 = vpop.permute.xlu0 %1063
      %1065 = vrot.lane.b32.xlu0 %v918, 120
      %v1066 = vpop.permute.xlu0 %1065
      %1067 = vrot.lane.b32.xlu0 %v919, 120
      %v1068 = vpop.permute.xlu0 %1067
      %1069 = vrot.lane.b32.xlu0 %v920, 120
      %v1070 = vpop.permute.xlu0 %1069
      %1071 = vrot.lane.b32.xlu0 %v921, 120
      %v1072 = vpop.permute.xlu0 %1071
      %1073 = vrot.lane.b32.xlu0 %v922, 120
      %v1074 = vpop.permute.xlu0 %1073
      %1075 = vrot.lane.b32.xlu0 %v923, 120
      %v1076 = vpop.permute.xlu0 %1075
      %1077 = vrot.lane.b32.xlu0 %v924, 120
      %v1078 = vpop.permute.xlu0 %1077
      %1079 = vrot.lane.b32.xlu0 %v925, 120
      %v1080 = vpop.permute.xlu0 %1079
      %1081 = vrot.lane.b32.xlu0 %v926, 120
      %v1082 = vpop.permute.xlu0 %1081
      %1083 = vrot.lane.b32.xlu0 %v927, 120
      %v1084 = vpop.permute.xlu0 %1083
      %1085 = vrot.lane.b32.xlu0 %v928, 120
      %v1086 = vpop.permute.xlu0 %1085
      %1087 = vrot.lane.b32.xlu0 %v929, 120
      %v1088 = vpop.permute.xlu0 %1087
      %1089 = vrot.lane.b32.xlu0 %v930, 120
      %v1090 = vpop.permute.xlu0 %1089
      %1091 = vrot.lane.b32.xlu0 %v931, 120
      %v1092 = vpop.permute.xlu0 %1091
      %v1125 = vmul.f32 %v965, %v1030
      %v1126 = vmul.f32 %v966, %v1032
      %v1127 = vmul.f32 %v967, %v1034
      %v1128 = vmul.f32 %v968, %v1036
      %v1129 = vmul.f32 %v969, %v1038
      %v1130 = vmul.f32 %v970, %v1040
      %v1131 = vmul.f32 %v971, %v1042
      %v1132 = vmul.f32 %v972, %v1044
      %v1133 = vmul.f32 %v973, %v1046
      %v1134 = vmul.f32 %v974, %v1048
      %v1135 = vmul.f32 %v975, %v1050
      %v1136 = vmul.f32 %v976, %v1052
      %v1137 = vmul.f32 %v977, %v1054
      %v1138 = vmul.f32 %v978, %v1056
      %v1139 = vmul.f32 %v979, %v1058
      %v1140 = vmul.f32 %v980, %v1060
      %v1141 = vmul.f32 %v981, %v1062
      %v1142 = vmul.f32 %v982, %v1064
      %v1143 = vmul.f32 %v983, %v1066
      %v1144 = vmul.f32 %v984, %v1068
      %v1145 = vmul.f32 %v985, %v1070
      %v1146 = vmul.f32 %v986, %v1072
      %v1147 = vmul.f32 %v987, %v1074
      %v1148 = vmul.f32 %v988, %v1076
      %v1149 = vmul.f32 %v989, %v1078
      %v1150 = vmul.f32 %v990, %v1080
      %v1151 = vmul.f32 %v991, %v1082
      %v1152 = vmul.f32 %v992, %v1084
      %v1153 = vmul.f32 %v993, %v1086
      %v1154 = vmul.f32 %v994, %v1088
      %v1155 = vmul.f32 %v995, %v1090
      %v1156 = vmul.f32 %v996, %v1092
      %s1157 = scalar_lea.vmem %s4, 8
      %v1158 = vld [vmem:[%s1157] sm:$0xff]
      %v1160 = vsel %vm803, %v1125, 0
      %v1163 = vsel %vm803, %v1126, 0
      %v1166 = vsel %vm803, %v1127, 0
      %v1169 = vsel %vm803, %v1128, 0
      %v1172 = vsel %vm803, %v1129, 0
      %v1175 = vsel %vm803, %v1130, 0
      %v1178 = vsel %vm803, %v1131, 0
      %v1181 = vsel %vm803, %v1132, 0
      %v1184 = vsel %vm803, %v1133, 0
      %v1187 = vsel %vm803, %v1134, 0
      %v1190 = vsel %vm803, %v1135, 0
      %v1193 = vsel %vm803, %v1136, 0
      %v1196 = vsel %vm803, %v1137, 0
      %v1199 = vsel %vm803, %v1138, 0
      %v1202 = vsel %vm803, %v1139, 0
      %v1205 = vsel %vm803, %v1140, 0
      %v1208 = vsel %vm803, %v1141, 0
      %v1211 = vsel %vm803, %v1142, 0
      %v1214 = vsel %vm803, %v1143, 0
      %v1217 = vsel %vm803, %v1144, 0
      %v1220 = vsel %vm803, %v1145, 0
      %v1223 = vsel %vm803, %v1146, 0
      %v1226 = vsel %vm803, %v1147, 0
      %v1229 = vsel %vm803, %v1148, 0
      %v1232 = vsel %vm803, %v1149, 0
      %v1235 = vsel %vm803, %v1150, 0
      %v1238 = vsel %vm803, %v1151, 0
      %v1241 = vsel %vm803, %v1152, 0
      %v1244 = vsel %vm803, %v1153, 0
      %v1247 = vsel %vm803, %v1154, 0
      %v1250 = vsel %vm803, %v1155, 0
      %v1253 = vsel %vm803, %v1156, 0
      %1255 = vmatprep.subr.mxu0 0.0
      %1256 = vmatpush1.msra.mxu0 %v1158
      %1257 = vmatprep.subr.mxu0 0.0
      %1258 = vmatpush1.msra.mxu0 0.0
      %1259 = vmatprep.subr.mxu0 0.0
      %1260 = vmatpush1.msra.mxu0 0.0
      %1261 = vmatprep.subr.mxu0 0.0
      %1262 = vmatpush1.msra.mxu0 0.0
      %1263 = vmatprep.subr.mxu0 0.0
      %1264 = vmatpush1.msra.mxu0 0.0
      %1265 = vmatprep.subr.mxu0 0.0
      %1266 = vmatpush1.msra.mxu0 0.0
      %1267 = vmatprep.subr.mxu0 0.0
      %1268 = vmatpush1.msra.mxu0 0.0
      %1269 = vmatprep.subr.mxu0 0.0
      %1270 = vmatpush1.msra.mxu0 0.0
      %1271 = vmatprep.subr.mxu0 0.0
      %1272 = vmatpush1.msra.mxu0 0.0
      %1273 = vmatprep.subr.mxu0 0.0
      %1274 = vmatpush1.msra.mxu0 0.0
      %1275 = vmatprep.subr.mxu0 0.0
      %1276 = vmatpush1.msra.mxu0 0.0
      %1277 = vmatprep.subr.mxu0 0.0
      %1278 = vmatpush1.msra.mxu0 0.0
      %1279 = vmatprep.subr.mxu0 0.0
      %1280 = vmatpush1.msra.mxu0 0.0
      %1281 = vmatprep.subr.mxu0 0.0
      %1282 = vmatpush1.msra.mxu0 0.0
      %1283 = vmatprep.subr.mxu0 0.0
      %1284 = vmatpush1.msra.mxu0 0.0
      %1285 = vmatprep.subr.mxu0 0.0
      %1286 = vmatpush1.msra.mxu0 0.0
      %1287 = vmatprep.subr.mxu0 0.0
      %1288 = vmatpush1.msra.mxu0 0.0
      %1289 = vmatprep.subr.mxu0 0.0
      %1290 = vmatpush1.msra.mxu0 0.0
      %1291 = vmatprep.subr.mxu0 0.0
      %1292 = vmatpush1.msra.mxu0 0.0
      %1293 = vmatprep.subr.mxu0 0.0
      %1294 = vmatpush1.msra.mxu0 0.0
      %1295 = vmatprep.subr.mxu0 0.0
      %1296 = vmatpush1.msra.mxu0 0.0
      %1297 = vmatprep.subr.mxu0 0.0
      %1298 = vmatpush1.msra.mxu0 0.0
      %1299 = vmatprep.subr.mxu0 0.0
      %1300 = vmatpush1.msra.mxu0 0.0
      %1301 = vmatprep.subr.mxu0 0.0
      %1302 = vmatpush1.msra.mxu0 0.0
      %1303 = vmatprep.subr.mxu0 0.0
      %1304 = vmatpush1.msra.mxu0 0.0
      %1305 = vmatprep.subr.mxu0 0.0
      %1306 = vmatpush1.msra.mxu0 0.0
      %1307 = vmatprep.subr.mxu0 0.0
      %1308 = vmatpush1.msra.mxu0 0.0
      %1309 = vmatprep.subr.mxu0 0.0
      %1310 = vmatpush1.msra.mxu0 0.0
      %1311 = vmatprep.subr.mxu0 0.0
      %1312 = vmatpush1.msra.mxu0 0.0
      %1313 = vmatprep.subr.mxu0 0.0
      %1314 = vmatpush1.msra.mxu0 0.0
      %1315 = vmatprep.subr.mxu0 0.0
      %1316 = vmatpush1.msra.mxu0 0.0
      %1317 = vmatprep.subr.mxu0 0.0
      %1318 = vmatpush1.msra.mxu0 0.0
      %1319 = vmatprep.mubr.f32.mxu0 0.0
      %1320 = vmatmul.mubr.f32.gmra.mrb[0].mxu0 %v1160
      %v1321 = vpop.f32.mrb[0].mxu0
      %v1322 = vadd.f32 0.0, %v1321
      %v1323 = vpop.f32.mrb[0].mxu0
      %1324 = vmatprep.mubr.f32.mxu0 0.0
      %1325 = vmatmul.mubr.f32.gmra.mrb[0].mxu0 %v1163
      %v1326 = vpop.f32.mrb[0].mxu0
      %v1327 = vadd.f32 0.0, %v1326
      %v1328 = vpop.f32.mrb[0].mxu0
      %1329 = vmatprep.mubr.f32.mxu0 0.0
      %1330 = vmatmul.mubr.f32.gmra.mrb[0].mxu0 %v1166
      %v1331 = vpop.f32.mrb[0].mxu0
      %v1332 = vadd.f32 0.0, %v1331
      %v1333 = vpop.f32.mrb[0].mxu0
      %1334 = vmatprep.mubr.f32.mxu0 0.0
      %1335 = vmatmul.mubr.f32.gmra.mrb[0].mxu0 %v1169
      %v1336 = vpop.f32.mrb[0].mxu0
      %v1337 = vadd.f32 0.0, %v1336
      %v1338 = vpop.f32.mrb[0].mxu0
      %1339 = vmatprep.mubr.f32.mxu0 0.0
      %1340 = vmatmul.mubr.f32.gmra.mrb[0].mxu0 %v1172
      %v1341 = vpop.f32.mrb[0].mxu0
      %v1342 = vadd.f32 0.0, %v1341
      %v1343 = vpop.f32.mrb[0].mxu0
      %1344 = vmatprep.mubr.f32.mxu0 0.0
      %1345 = vmatmul.mubr.f32.gmra.mrb[0].mxu0 %v1175
      %v1346 = vpop.f32.mrb[0].mxu0
      %v1347 = vadd.f32 0.0, %v1346
      %v1348 = vpop.f32.mrb[0].mxu0
      %1349 = vmatprep.mubr.f32.mxu0 0.0
      %1350 = vmatmul.mubr.f32.gmra.mrb[0].mxu0 %v1178
      %v1351 = vpop.f32.mrb[0].mxu0
      %v1352 = vadd.f32 0.0, %v1351
      %v1353 = vpop.f32.mrb[0].mxu0
      %1354 = vmatprep.mubr.f32.mxu0 0.0
      %1355 = vmatmul.mubr.f32.gmra.mrb[0].mxu0 %v1181
      %v1356 = vpop.f32.mrb[0].mxu0
      %v1357 = vadd.f32 0.0, %v1356
      %v1358 = vpop.f32.mrb[0].mxu0
      %1359 = vmatprep.mubr.f32.mxu0 0.0
      %1360 = vmatmul.mubr.f32.gmra.mrb[0].mxu0 %v1184
      %v1361 = vpop.f32.mrb[0].mxu0
      %v1362 = vadd.f32 0.0, %v1361
      %v1363 = vpop.f32.mrb[0].mxu0
      %1364 = vmatprep.mubr.f32.mxu0 0.0
      %1365 = vmatmul.mubr.f32.gmra.mrb[0].mxu0 %v1187
      %v1366 = vpop.f32.mrb[0].mxu0
      %v1367 = vadd.f32 0.0, %v1366
      %v1368 = vpop.f32.mrb[0].mxu0
      %1369 = vmatprep.mubr.f32.mxu0 0.0
      %1370 = vmatmul.mubr.f32.gmra.mrb[0].mxu0 %v1190
      %v1371 = vpop.f32.mrb[0].mxu0
      %v1372 = vadd.f32 0.0, %v1371
      %v1373 = vpop.f32.mrb[0].mxu0
      %1374 = vmatprep.mubr.f32.mxu0 0.0
      %1375 = vmatmul.mubr.f32.gmra.mrb[0].mxu0 %v1193
      %v1376 = vpop.f32.mrb[0].mxu0
      %v1377 = vadd.f32 0.0, %v1376
      %v1378 = vpop.f32.mrb[0].mxu0
      %1379 = vmatprep.mubr.f32.mxu0 0.0
      %1380 = vmatmul.mubr.f32.gmra.mrb[0].mxu0 %v1196
      %v1381 = vpop.f32.mrb[0].mxu0
      %v1382 = vadd.f32 0.0, %v1381
      %v1383 = vpop.f32.mrb[0].mxu0
      %1384 = vmatprep.mubr.f32.mxu0 0.0
      %1385 = vmatmul.mubr.f32.gmra.mrb[0].mxu0 %v1199
      %v1386 = vpop.f32.mrb[0].mxu0
      %v1387 = vadd.f32 0.0, %v1386
      %v1388 = vpop.f32.mrb[0].mxu0
      %1389 = vmatprep.mubr.f32.mxu0 0.0
      %1390 = vmatmul.mubr.f32.gmra.mrb[0].mxu0 %v1202
      %v1391 = vpop.f32.mrb[0].mxu0
      %v1392 = vadd.f32 0.0, %v1391
      %v1393 = vpop.f32.mrb[0].mxu0
      %1394 = vmatprep.mubr.f32.mxu0 0.0
      %1395 = vmatmul.mubr.f32.gmra.mrb[0].mxu0 %v1205
      %v1396 = vpop.f32.mrb[0].mxu0
      %v1397 = vadd.f32 0.0, %v1396
      %v1398 = vpop.f32.mrb[0].mxu0
      %1399 = vmatprep.mubr.f32.mxu0 0.0
      %1400 = vmatmul.mubr.f32.gmra.mrb[0].mxu0 %v1208
      %v1401 = vpop.f32.mrb[0].mxu0
      %v1402 = vadd.f32 0.0, %v1401
      %v1403 = vpop.f32.mrb[0].mxu0
      %1404 = vmatprep.mubr.f32.mxu0 0.0
      %1405 = vmatmul.mubr.f32.gmra.mrb[0].mxu0 %v1211
      %v1406 = vpop.f32.mrb[0].mxu0
      %v1407 = vadd.f32 0.0, %v1406
      %v1408 = vpop.f32.mrb[0].mxu0
      %1409 = vmatprep.mubr.f32.mxu0 0.0
      %1410 = vmatmul.mubr.f32.gmra.mrb[0].mxu0 %v1214
      %v1411 = vpop.f32.mrb[0].mxu0
      %v1412 = vadd.f32 0.0, %v1411
      %v1413 = vpop.f32.mrb[0].mxu0
      %1414 = vmatprep.mubr.f32.mxu0 0.0
      %1415 = vmatmul.mubr.f32.gmra.mrb[0].mxu0 %v1217
      %v1416 = vpop.f32.mrb[0].mxu0
      %v1417 = vadd.f32 0.0, %v1416
      %v1418 = vpop.f32.mrb[0].mxu0
      %1419 = vmatprep.mubr.f32.mxu0 0.0
      %1420 = vmatmul.mubr.f32.gmra.mrb[0].mxu0 %v1220
      %v1421 = vpop.f32.mrb[0].mxu0
      %v1422 = vadd.f32 0.0, %v1421
      %v1423 = vpop.f32.mrb[0].mxu0
      %1424 = vmatprep.mubr.f32.mxu0 0.0
      %1425 = vmatmul.mubr.f32.gmra.mrb[0].mxu0 %v1223
      %v1426 = vpop.f32.mrb[0].mxu0
      %v1427 = vadd.f32 0.0, %v1426
      %v1428 = vpop.f32.mrb[0].mxu0
      %1429 = vmatprep.mubr.f32.mxu0 0.0
      %1430 = vmatmul.mubr.f32.gmra.mrb[0].mxu0 %v1226
      %v1431 = vpop.f32.mrb[0].mxu0
      %v1432 = vadd.f32 0.0, %v1431
      %v1433 = vpop.f32.mrb[0].mxu0
      %1434 = vmatprep.mubr.f32.mxu0 0.0
      %1435 = vmatmul.mubr.f32.gmra.mrb[0].mxu0 %v1229
      %v1436 = vpop.f32.mrb[0].mxu0
      %v1437 = vadd.f32 0.0, %v1436
      %v1438 = vpop.f32.mrb[0].mxu0
      %1439 = vmatprep.mubr.f32.mxu0 0.0
      %1440 = vmatmul.mubr.f32.gmra.mrb[0].mxu0 %v1232
      %v1441 = vpop.f32.mrb[0].mxu0
      %v1442 = vadd.f32 0.0, %v1441
      %v1443 = vpop.f32.mrb[0].mxu0
      %1444 = vmatprep.mubr.f32.mxu0 0.0
      %1445 = vmatmul.mubr.f32.gmra.mrb[0].mxu0 %v1235
      %v1446 = vpop.f32.mrb[0].mxu0
      %v1447 = vadd.f32 0.0, %v1446
      %v1448 = vpop.f32.mrb[0].mxu0
      %1449 = vmatprep.mubr.f32.mxu0 0.0
      %1450 = vmatmul.mubr.f32.gmra.mrb[0].mxu0 %v1238
      %v1451 = vpop.f32.mrb[0].mxu0
      %v1452 = vadd.f32 0.0, %v1451
      %v1453 = vpop.f32.mrb[0].mxu0
      %1454 = vmatprep.mubr.f32.mxu0 0.0
      %1455 = vmatmul.mubr.f32.gmra.mrb[0].mxu0 %v1241
      %v1456 = vpop.f32.mrb[0].mxu0
      %v1457 = vadd.f32 0.0, %v1456
      %v1458 = vpop.f32.mrb[0].mxu0
      %1459 = vmatprep.mubr.f32.mxu0 0.0
      %1460 = vmatmul.mubr.f32.gmra.mrb[0].mxu0 %v1244
      %v1461 = vpop.f32.mrb[0].mxu0
      %v1462 = vadd.f32 0.0, %v1461
      %v1463 = vpop.f32.mrb[0].mxu0
      %1464 = vmatprep.mubr.f32.mxu0 0.0
      %1465 = vmatmul.mubr.f32.gmra.mrb[0].mxu0 %v1247
      %v1466 = vpop.f32.mrb[0].mxu0
      %v1467 = vadd.f32 0.0, %v1466
      %v1468 = vpop.f32.mrb[0].mxu0
      %1469 = vmatprep.mubr.f32.mxu0 0.0
      %1470 = vmatmul.mubr.f32.gmra.mrb[0].mxu0 %v1250
      %v1471 = vpop.f32.mrb[0].mxu0
      %v1472 = vadd.f32 0.0, %v1471
      %v1473 = vpop.f32.mrb[0].mxu0
      %1474 = vmatprep.mubr.f32.mxu0 0.0
      %1475 = vmatmul.mubr.f32.gmra.mrb[0].mxu0 %v1253
      %v1476 = vpop.f32.mrb[0].mxu0
      %v1477 = vadd.f32 0.0, %v1476
      %v1478 = vpop.f32.mrb[0].mxu0
      %1479 = vdwg.mxu0
      %v1481 = vsel %vm803, %v932, 0
      %v1484 = vsel %vm803, %v933, 0
      %v1487 = vsel %vm803, %v934, 0
      %v1490 = vsel %vm803, %v935, 0
      %v1493 = vsel %vm803, %v936, 0
      %v1496 = vsel %vm803, %v937, 0
      %v1499 = vsel %vm803, %v938, 0
      %v1502 = vsel %vm803, %v939, 0
      %v1505 = vsel %vm803, %v940, 0
      %v1508 = vsel %vm803, %v941, 0
      %v1511 = vsel %vm803, %v942, 0
      %v1514 = vsel %vm803, %v943, 0
      %v1517 = vsel %vm803, %v944, 0
      %v1520 = vsel %vm803, %v945, 0
      %v1523 = vsel %vm803, %v946, 0
      %v1526 = vsel %vm803, %v947, 0
      %v1529 = vsel %vm803, %v948, 0
      %v1532 = vsel %vm803, %v949, 0
      %v1535 = vsel %vm803, %v950, 0
      %v1538 = vsel %vm803, %v951, 0
      %v1541 = vsel %vm803, %v952, 0
      %v1544 = vsel %vm803, %v953, 0
      %v1547 = vsel %vm803, %v954, 0
      %v1550 = vsel %vm803, %v955, 0
      %v1553 = vsel %vm803, %v956, 0
      %v1556 = vsel %vm803, %v957, 0
      %v1559 = vsel %vm803, %v958, 0
      %v1562 = vsel %vm803, %v959, 0
      %v1565 = vsel %vm803, %v960, 0
      %v1568 = vsel %vm803, %v961, 0
      %v1571 = vsel %vm803, %v962, 0
      %v1574 = vsel %vm803, %v963, 0
      %1576 = vmatprep.subr.mxu0 0.0
      %1577 = vmatpush1.msra.mxu0 %v964
      %1578 = vmatprep.subr.mxu0 0.0
      %1579 = vmatpush1.msra.mxu0 0.0
      %1580 = vmatprep.subr.mxu0 0.0
      %1581 = vmatpush1.msra.mxu0 0.0
      %1582 = vmatprep.subr.mxu0 0.0
      %1583 = vmatpush1.msra.mxu0 0.0
      %1584 = vmatprep.subr.mxu0 0.0
      %1585 = vmatpush1.msra.mxu0 0.0
      %1586 = vmatprep.subr.mxu0 0.0
      %1587 = vmatpush1.msra.mxu0 0.0
      %1588 = vmatprep.subr.mxu0 0.0
      %1589 = vmatpush1.msra.mxu0 0.0
      %1590 = vmatprep.subr.mxu0 0.0
      %1591 = vmatpush1.msra.mxu0 0.0
      %1592 = vmatprep.subr.mxu0 0.0
      %1593 = vmatpush1.msra.mxu0 0.0
      %1594 = vmatprep.subr.mxu0 0.0
      %1595 = vmatpush1.msra.mxu0 0.0
      %1596 = vmatprep.subr.mxu0 0.0
      %1597 = vmatpush1.msra.mxu0 0.0
      %1598 = vmatprep.subr.mxu0 0.0
      %1599 = vmatpush1.msra.mxu0 0.0
      %1600 = vmatprep.subr.mxu0 0.0
      %1601 = vmatpush1.msra.mxu0 0.0
      %1602 = vmatprep.subr.mxu0 0.0
      %1603 = vmatpush1.msra.mxu0 0.0
      %1604 = vmatprep.subr.mxu0 0.0
      %1605 = vmatpush1.msra.mxu0 0.0
      %1606 = vmatprep.subr.mxu0 0.0
      %1607 = vmatpush1.msra.mxu0 0.0
      %1608 = vmatprep.subr.mxu0 0.0
      %1609 = vmatpush1.msra.mxu0 0.0
      %1610 = vmatprep.subr.mxu0 0.0
      %1611 = vmatpush1.msra.mxu0 0.0
      %1612 = vmatprep.subr.mxu0 0.0
      %1613 = vmatpush1.msra.mxu0 0.0
      %1614 = vmatprep.subr.mxu0 0.0
      %1615 = vmatpush1.msra.mxu0 0.0
      %1616 = vmatprep.subr.mxu0 0.0
      %1617 = vmatpush1.msra.mxu0 0.0
      %1618 = vmatprep.subr.mxu0 0.0
      %1619 = vmatpush1.msra.mxu0 0.0
      %1620 = vmatprep.subr.mxu0 0.0
      %1621 = vmatpush1.msra.mxu0 0.0
      %1622 = vmatprep.subr.mxu0 0.0
      %1623 = vmatpush1.msra.mxu0 0.0
      %1624 = vmatprep.subr.mxu0 0.0
      %1625 = vmatpush1.msra.mxu0 0.0
      %1626 = vmatprep.subr.mxu0 0.0
      %1627 = vmatpush1.msra.mxu0 0.0
      %1628 = vmatprep.subr.mxu0 0.0
      %1629 = vmatpush1.msra.mxu0 0.0
      %1630 = vmatprep.subr.mxu0 0.0
      %1631 = vmatpush1.msra.mxu0 0.0
      %1632 = vmatprep.subr.mxu0 0.0
      %1633 = vmatpush1.msra.mxu0 0.0
      %1634 = vmatprep.subr.mxu0 0.0
      %1635 = vmatpush1.msra.mxu0 0.0
      %1636 = vmatprep.subr.mxu0 0.0
      %1637 = vmatpush1.msra.mxu0 0.0
      %1638 = vmatprep.subr.mxu0 0.0
      %1639 = vmatpush1.msra.mxu0 0.0
      %1640 = vmatprep.mubr.f32.mxu0 0.0
      %1641 = vmatmul.mubr.f32.gmra.mrb[0].mxu0 %v1481
      %v1642 = vpop.f32.mrb[0].mxu0
      %v1643 = vadd.f32 %v1322, %v1642
      %v1644 = vpop.f32.mrb[0].mxu0
      %1645 = vmatprep.mubr.f32.mxu0 0.0
      %1646 = vmatmul.mubr.f32.gmra.mrb[0].mxu0 %v1484
      %v1647 = vpop.f32.mrb[0].mxu0
      %v1648 = vadd.f32 %v1327, %v1647
      %v1649 = vpop.f32.mrb[0].mxu0
      %1650 = vmatprep.mubr.f32.mxu0 0.0
      %1651 = vmatmul.mubr.f32.gmra.mrb[0].mxu0 %v1487
      %v1652 = vpop.f32.mrb[0].mxu0
      %v1653 = vadd.f32 %v1332, %v1652
      %v1654 = vpop.f32.mrb[0].mxu0
      %1655 = vmatprep.mubr.f32.mxu0 0.0
      %1656 = vmatmul.mubr.f32.gmra.mrb[0].mxu0 %v1490
      %v1657 = vpop.f32.mrb[0].mxu0
      %v1658 = vadd.f32 %v1337, %v1657
      %v1659 = vpop.f32.mrb[0].mxu0
      %1660 = vmatprep.mubr.f32.mxu0 0.0
      %1661 = vmatmul.mubr.f32.gmra.mrb[0].mxu0 %v1493
      %v1662 = vpop.f32.mrb[0].mxu0
      %v1663 = vadd.f32 %v1342, %v1662
      %v1664 = vpop.f32.mrb[0].mxu0
      %1665 = vmatprep.mubr.f32.mxu0 0.0
      %1666 = vmatmul.mubr.f32.gmra.mrb[0].mxu0 %v1496
      %v1667 = vpop.f32.mrb[0].mxu0
      %v1668 = vadd.f32 %v1347, %v1667
      %v1669 = vpop.f32.mrb[0].mxu0
      %1670 = vmatprep.mubr.f32.mxu0 0.0
      %1671 = vmatmul.mubr.f32.gmra.mrb[0].mxu0 %v1499
      %v1672 = vpop.f32.mrb[0].mxu0
      %v1673 = vadd.f32 %v1352, %v1672
      %v1674 = vpop.f32.mrb[0].mxu0
      %1675 = vmatprep.mubr.f32.mxu0 0.0
      %1676 = vmatmul.mubr.f32.gmra.mrb[0].mxu0 %v1502
      %v1677 = vpop.f32.mrb[0].mxu0
      %v1678 = vadd.f32 %v1357, %v1677
      %v1679 = vpop.f32.mrb[0].mxu0
      %1680 = vmatprep.mubr.f32.mxu0 0.0
      %1681 = vmatmul.mubr.f32.gmra.mrb[0].mxu0 %v1505
      %v1682 = vpop.f32.mrb[0].mxu0
      %v1683 = vadd.f32 %v1362, %v1682
      %v1684 = vpop.f32.mrb[0].mxu0
      %1685 = vmatprep.mubr.f32.mxu0 0.0
      %1686 = vmatmul.mubr.f32.gmra.mrb[0].mxu0 %v1508
      %v1687 = vpop.f32.mrb[0].mxu0
      %v1688 = vadd.f32 %v1367, %v1687
      %v1689 = vpop.f32.mrb[0].mxu0
      %1690 = vmatprep.mubr.f32.mxu0 0.0
      %1691 = vmatmul.mubr.f32.gmra.mrb[0].mxu0 %v1511
      %v1692 = vpop.f32.mrb[0].mxu0
      %v1693 = vadd.f32 %v1372, %v1692
      %v1694 = vpop.f32.mrb[0].mxu0
      %1695 = vmatprep.mubr.f32.mxu0 0.0
      %1696 = vmatmul.mubr.f32.gmra.mrb[0].mxu0 %v1514
      %v1697 = vpop.f32.mrb[0].mxu0
      %v1698 = vadd.f32 %v1377, %v1697
      %v1699 = vpop.f32.mrb[0].mxu0
      %1700 = vmatprep.mubr.f32.mxu0 0.0
      %1701 = vmatmul.mubr.f32.gmra.mrb[0].mxu0 %v1517
      %v1702 = vpop.f32.mrb[0].mxu0
      %v1703 = vadd.f32 %v1382, %v1702
      %v1704 = vpop.f32.mrb[0].mxu0
      %1705 = vmatprep.mubr.f32.mxu0 0.0
      %1706 = vmatmul.mubr.f32.gmra.mrb[0].mxu0 %v1520
      %v1707 = vpop.f32.mrb[0].mxu0
      %v1708 = vadd.f32 %v1387, %v1707
      %v1709 = vpop.f32.mrb[0].mxu0
      %1710 = vmatprep.mubr.f32.mxu0 0.0
      %1711 = vmatmul.mubr.f32.gmra.mrb[0].mxu0 %v1523
      %v1712 = vpop.f32.mrb[0].mxu0
      %v1713 = vadd.f32 %v1392, %v1712
      %v1714 = vpop.f32.mrb[0].mxu0
      %1715 = vmatprep.mubr.f32.mxu0 0.0
      %1716 = vmatmul.mubr.f32.gmra.mrb[0].mxu0 %v1526
      %v1717 = vpop.f32.mrb[0].mxu0
      %v1718 = vadd.f32 %v1397, %v1717
      %v1719 = vpop.f32.mrb[0].mxu0
      %1720 = vmatprep.mubr.f32.mxu0 0.0
      %1721 = vmatmul.mubr.f32.gmra.mrb[0].mxu0 %v1529
      %v1722 = vpop.f32.mrb[0].mxu0
      %v1723 = vadd.f32 %v1402, %v1722
      %v1724 = vpop.f32.mrb[0].mxu0
      %1725 = vmatprep.mubr.f32.mxu0 0.0
      %1726 = vmatmul.mubr.f32.gmra.mrb[0].mxu0 %v1532
      %v1727 = vpop.f32.mrb[0].mxu0
      %v1728 = vadd.f32 %v1407, %v1727
      %v1729 = vpop.f32.mrb[0].mxu0
      %1730 = vmatprep.mubr.f32.mxu0 0.0
      %1731 = vmatmul.mubr.f32.gmra.mrb[0].mxu0 %v1535
      %v1732 = vpop.f32.mrb[0].mxu0
      %v1733 = vadd.f32 %v1412, %v1732
      %v1734 = vpop.f32.mrb[0].mxu0
      %1735 = vmatprep.mubr.f32.mxu0 0.0
      %1736 = vmatmul.mubr.f32.gmra.mrb[0].mxu0 %v1538
      %v1737 = vpop.f32.mrb[0].mxu0
      %v1738 = vadd.f32 %v1417, %v1737
      %v1739 = vpop.f32.mrb[0].mxu0
      %1740 = vmatprep.mubr.f32.mxu0 0.0
      %1741 = vmatmul.mubr.f32.gmra.mrb[0].mxu0 %v1541
      %v1742 = vpop.f32.mrb[0].mxu0
      %v1743 = vadd.f32 %v1422, %v1742
      %v1744 = vpop.f32.mrb[0].mxu0
      %1745 = vmatprep.mubr.f32.mxu0 0.0
      %1746 = vmatmul.mubr.f32.gmra.mrb[0].mxu0 %v1544
      %v1747 = vpop.f32.mrb[0].mxu0
      %v1748 = vadd.f32 %v1427, %v1747
      %v1749 = vpop.f32.mrb[0].mxu0
      %1750 = vmatprep.mubr.f32.mxu0 0.0
      %1751 = vmatmul.mubr.f32.gmra.mrb[0].mxu0 %v1547
      %v1752 = vpop.f32.mrb[0].mxu0
      %v1753 = vadd.f32 %v1432, %v1752
      %v1754 = vpop.f32.mrb[0].mxu0
      %1755 = vmatprep.mubr.f32.mxu0 0.0
      %1756 = vmatmul.mubr.f32.gmra.mrb[0].mxu0 %v1550
      %v1757 = vpop.f32.mrb[0].mxu0
      %v1758 = vadd.f32 %v1437, %v1757
      %v1759 = vpop.f32.mrb[0].mxu0
      %1760 = vmatprep.mubr.f32.mxu0 0.0
      %1761 = vmatmul.mubr.f32.gmra.mrb[0].mxu0 %v1553
      %v1762 = vpop.f32.mrb[0].mxu0
      %v1763 = vadd.f32 %v1442, %v1762
      %v1764 = vpop.f32.mrb[0].mxu0
      %1765 = vmatprep.mubr.f32.mxu0 0.0
      %1766 = vmatmul.mubr.f32.gmra.mrb[0].mxu0 %v1556
      %v1767 = vpop.f32.mrb[0].mxu0
      %v1768 = vadd.f32 %v1447, %v1767
      %v1769 = vpop.f32.mrb[0].mxu0
      %1770 = vmatprep.mubr.f32.mxu0 0.0
      %1771 = vmatmul.mubr.f32.gmra.mrb[0].mxu0 %v1559
      %v1772 = vpop.f32.mrb[0].mxu0
      %v1773 = vadd.f32 %v1452, %v1772
      %v1774 = vpop.f32.mrb[0].mxu0
      %1775 = vmatprep.mubr.f32.mxu0 0.0
      %1776 = vmatmul.mubr.f32.gmra.mrb[0].mxu0 %v1562
      %v1777 = vpop.f32.mrb[0].mxu0
      %v1778 = vadd.f32 %v1457, %v1777
      %v1779 = vpop.f32.mrb[0].mxu0
      %1780 = vmatprep.mubr.f32.mxu0 0.0
      %1781 = vmatmul.mubr.f32.gmra.mrb[0].mxu0 %v1565
      %v1782 = vpop.f32.mrb[0].mxu0
      %v1783 = vadd.f32 %v1462, %v1782
      %v1784 = vpop.f32.mrb[0].mxu0
      %1785 = vmatprep.mubr.f32.mxu0 0.0
      %1786 = vmatmul.mubr.f32.gmra.mrb[0].mxu0 %v1568
      %v1787 = vpop.f32.mrb[0].mxu0
      %v1788 = vadd.f32 %v1467, %v1787
      %v1789 = vpop.f32.mrb[0].mxu0
      %1790 = vmatprep.mubr.f32.mxu0 0.0
      %1791 = vmatmul.mubr.f32.gmra.mrb[0].mxu0 %v1571
      %v1792 = vpop.f32.mrb[0].mxu0
      %v1793 = vadd.f32 %v1472, %v1792
      %v1794 = vpop.f32.mrb[0].mxu0
      %1795 = vmatprep.mubr.f32.mxu0 0.0
      %1796 = vmatmul.mubr.f32.gmra.mrb[0].mxu0 %v1574
      %v1797 = vpop.f32.mrb[0].mxu0
      %v1798 = vadd.f32 %v1477, %v1797
      %v1799 = vpop.f32.mrb[0].mxu0
      %1800 = vdwg.mxu0
      %v1801 = vld [vmem:[#allocation2 + $0xf1] sm:$0xff]
      %v1802 = vld [vmem:[#allocation2 + $0xf9] sm:$0xff]
      %v1803 = vld [vmem:[#allocation2 + $0x101] sm:$0xff]
      %v1804 = vld [vmem:[#allocation2 + $0x109] sm:$0xff]
      %v1805 = vld [vmem:[#allocation2 + $0x111] sm:$0xff]
      %v1806 = vld [vmem:[#allocation2 + $0x119] sm:$0xff]
      %v1807 = vld [vmem:[#allocation2 + $0x121] sm:$0xff]
      %v1808 = vld [vmem:[#allocation2 + $0x129] sm:$0xff]
      %v1809 = vld [vmem:[#allocation2 + $0x131] sm:$0xff]
      %v1810 = vld [vmem:[#allocation2 + $0x139] sm:$0xff]
      %v1811 = vld [vmem:[#allocation2 + $0x141] sm:$0xff]
      %v1812 = vld [vmem:[#allocation2 + $0x149] sm:$0xff]
      %v1813 = vld [vmem:[#allocation2 + $0x151] sm:$0xff]
      %v1814 = vld [vmem:[#allocation2 + $0x159] sm:$0xff]
      %v1815 = vld [vmem:[#allocation2 + $0x161] sm:$0xff]
      %v1816 = vld [vmem:[#allocation2 + $0x169] sm:$0xff]
      %v1817 = vld [vmem:[#allocation2 + $0x171] sm:$0xff]
      %v1818 = vld [vmem:[#allocation2 + $0x179] sm:$0xff]
      %v1819 = vld [vmem:[#allocation2 + $0x181] sm:$0xff]
      %v1820 = vld [vmem:[#allocation2 + $0x189] sm:$0xff]
      %v1821 = vld [vmem:[#allocation2 + $0x191] sm:$0xff]
      %v1822 = vld [vmem:[#allocation2 + $0x199] sm:$0xff]
      %v1823 = vld [vmem:[#allocation2 + $0x1a1] sm:$0xff]
      %v1824 = vld [vmem:[#allocation2 + $0x1a9] sm:$0xff]
      %v1825 = vld [vmem:[#allocation2 + $0x1b1] sm:$0xff]
      %v1826 = vld [vmem:[#allocation2 + $0x1b9] sm:$0xff]
      %v1827 = vld [vmem:[#allocation2 + $0x1c1] sm:$0xff]
      %v1828 = vld [vmem:[#allocation2 + $0x1c9] sm:$0xff]
      %v1829 = vld [vmem:[#allocation2 + $0x1d1] sm:$0xff]
      %v1830 = vld [vmem:[#allocation2 + $0x1d9] sm:$0xff]
      %v1831 = vld [vmem:[#allocation2 + $0x1e1] sm:$0xff]
      %v1832 = vld [vmem:[#allocation2 + $0x1e9] sm:$0xff]
      %1833 = vrot.lane.b32.xlu0 %v900, 112
      %v1834 = vpop.permute.xlu0 %1833
      %1835 = vrot.lane.b32.xlu0 %v901, 112
      %v1836 = vpop.permute.xlu0 %1835
      %1837 = vrot.lane.b32.xlu0 %v902, 112
      %v1838 = vpop.permute.xlu0 %1837
      %1839 = vrot.lane.b32.xlu0 %v903, 112
      %v1840 = vpop.permute.xlu0 %1839
      %1841 = vrot.lane.b32.xlu0 %v904, 112
      %v1842 = vpop.permute.xlu0 %1841
      %1843 = vrot.lane.b32.xlu0 %v905, 112
      %v1844 = vpop.permute.xlu0 %1843
      %1845 = vrot.lane.b32.xlu0 %v906, 112
      %v1846 = vpop.permute.xlu0 %1845
      %1847 = vrot.lane.b32.xlu0 %v907, 112
      %v1848 = vpop.permute.xlu0 %1847
      %1849 = vrot.lane.b32.xlu0 %v908, 112
      %v1850 = vpop.permute.xlu0 %1849
      %1851 = vrot.lane.b32.xlu0 %v909, 112
      %v1852 = vpop.permute.xlu0 %1851
      %1853 = vrot.lane.b32.xlu0 %v910, 112
      %v1854 = vpop.permute.xlu0 %1853
      %1855 = vrot.lane.b32.xlu0 %v911, 112
      %v1856 = vpop.permute.xlu0 %1855
      %1857 = vrot.lane.b32.xlu0 %v912, 112
      %v1858 = vpop.permute.xlu0 %1857
      %1859 = vrot.lane.b32.xlu0 %v913, 112
      %v1860 = vpop.permute.xlu0 %1859
      %1861 = vrot.lane.b32.xlu0 %v914, 112
      %v1862 = vpop.permute.xlu0 %1861
      %1863 = vrot.lane.b32.xlu0 %v915, 112
      %v1864 = vpop.permute.xlu0 %1863
      %1865 = vrot.lane.b32.xlu0 %v916, 112
      %v1866 = vpop.permute.xlu0 %1865
      %1867 = vrot.lane.b32.xlu0 %v917, 112
      %v1868 = vpop.permute.xlu0 %1867
      %1869 = vrot.lane.b32.xlu0 %v918, 112
      %v1870 = vpop.permute.xlu0 %1869
      %1871 = vrot.lane.b32.xlu0 %v919, 112
      %v1872 = vpop.permute.xlu0 %1871
      %1873 = vrot.lane.b32.xlu0 %v920, 112
      %v1874 = vpop.permute.xlu0 %1873
      %1875 = vrot.lane.b32.xlu0 %v921, 112
      %v1876 = vpop.permute.xlu0 %1875
      %1877 = vrot.lane.b32.xlu0 %v922, 112
      %v1878 = vpop.permute.xlu0 %1877
      %1879 = vrot.lane.b32.xlu0 %v923, 112
      %v1880 = vpop.permute.xlu0 %1879
      %1881 = vrot.lane.b32.xlu0 %v924, 112
      %v1882 = vpop.permute.xlu0 %1881
      %1883 = vrot.lane.b32.xlu0 %v925, 112
      %v1884 = vpop.permute.xlu0 %1883
      %1885 = vrot.lane.b32.xlu0 %v926, 112
      %v1886 = vpop.permute.xlu0 %1885
      %1887 = vrot.lane.b32.xlu0 %v927, 112
      %v1888 = vpop.permute.xlu0 %1887
      %1889 = vrot.lane.b32.xlu0 %v928, 112
      %v1890 = vpop.permute.xlu0 %1889
      %1891 = vrot.lane.b32.xlu0 %v929, 112
      %v1892 = vpop.permute.xlu0 %1891
      %1893 = vrot.lane.b32.xlu0 %v930, 112
      %v1894 = vpop.permute.xlu0 %1893
      %1895 = vrot.lane.b32.xlu0 %v931, 112
      %v1896 = vpop.permute.xlu0 %1895
      %v1929 = vmul.f32 %v1801, %v1834
      %v1930 = vmul.f32 %v1802, %v1836
      %v1931 = vmul.f32 %v1803, %v1838
      %v1932 = vmul.f32 %v1804, %v1840
      %v1933 = vmul.f32 %v1805, %v1842
      %v1934 = vmul.f32 %v1806, %v1844
      %v1935 = vmul.f32 %v1807, %v1846
      %v1936 = vmul.f32 %v1808, %v1848
      %v1937 = vmul.f32 %v1809, %v1850
      %v1938 = vmul.f32 %v1810, %v1852
      %v1939 = vmul.f32 %v1811, %v1854
      %v1940 = vmul.f32 %v1812, %v1856
      %v1941 = vmul.f32 %v1813, %v1858
      %v1942 = vmul.f32 %v1814, %v1860
      %v1943 = vmul.f32 %v1815, %v1862
      %v1944 = vmul.f32 %v1816, %v1864
      %v1945 = vmul.f32 %v1817, %v1866
      %v1946 = vmul.f32 %v1818, %v1868
      %v1947 = vmul.f32 %v1819, %v1870
      %v1948 = vmul.f32 %v1820, %v1872
      %v1949 = vmul.f32 %v1821, %v1874
      %v1950 = vmul.f32 %v1822, %v1876
      %v1951 = vmul.f32 %v1823, %v1878
      %v1952 = vmul.f32 %v1824, %v1880
      %v1953 = vmul.f32 %v1825, %v1882
      %v1954 = vmul.f32 %v1826, %v1884
      %v1955 = vmul.f32 %v1827, %v1886
      %v1956 = vmul.f32 %v1828, %v1888
      %v1957 = vmul.f32 %v1829, %v1890
      %v1958 = vmul.f32 %v1830, %v1892
      %v1959 = vmul.f32 %v1831, %v1894
      %v1960 = vmul.f32 %v1832, %v1896
      %s1961 = scalar_lea.vmem %s4, 16
      %v1962 = vld [vmem:[%s1961] sm:$0xff]
      %v1964 = vsel %vm803, %v1929, 0
      %v1967 = vsel %vm803, %v1930, 0
      %v1970 = vsel %vm803, %v1931, 0
      %v1973 = vsel %vm803, %v1932, 0
      %v1976 = vsel %vm803, %v1933, 0
      %v1979 = vsel %vm803, %v1934, 0
      %v1982 = vsel %vm803, %v1935, 0
      %v1985 = vsel %vm803, %v1936, 0
      %v1988 = vsel %vm803, %v1937, 0
      %v1991 = vsel %vm803, %v1938, 0
      %v1994 = vsel %vm803, %v1939, 0
      %v1997 = vsel %vm803, %v1940, 0
      %v2000 = vsel %vm803, %v1941, 0
      %v2003 = vsel %vm803, %v1942, 0
      %v2006 = vsel %vm803, %v1943, 0
      %v2009 = vsel %vm803, %v1944, 0
      %v2012 = vsel %vm803, %v1945, 0
      %v2015 = vsel %vm803, %v1946, 0
      %v2018 = vsel %vm803, %v1947, 0
      %v2021 = vsel %vm803, %v1948, 0
      %v2024 = vsel %vm803, %v1949, 0
      %v2027 = vsel %vm803, %v1950, 0
      %v2030 = vsel %vm803, %v1951, 0
      %v2033 = vsel %vm803, %v1952, 0
      %v2036 = vsel %vm803, %v1953, 0
      %v2039 = vsel %vm803, %v1954, 0
      %v2042 = vsel %vm803, %v1955, 0
      %v2045 = vsel %vm803, %v1956, 0
      %v2048 = vsel %vm803, %v1957, 0
      %v2051 = vsel %vm803, %v1958, 0
      %v2054 = vsel %vm803, %v1959, 0
      %v2057 = vsel %vm803, %v1960, 0
      %2059 = vmatprep.subr.mxu0 0.0
      %2060 = vmatpush1.msra.mxu0 %v1962
      %2061 = vmatprep.subr.mxu0 0.0
      %2062 = vmatpush1.msra.mxu0 0.0
      %2063 = vmatprep.subr.mxu0 0.0
      %2064 = vmatpush1.msra.mxu0 0.0
      %2065 = vmatprep.subr.mxu0 0.0
      %2066 = vmatpush1.msra.mxu0 0.0
      %2067 = vmatprep.subr.mxu0 0.0
      %2068 = vmatpush1.msra.mxu0 0.0
      %2069 = vmatprep.subr.mxu0 0.0
      %2070 = vmatpush1.msra.mxu0 0.0
      %2071 = vmatprep.subr.mxu0 0.0
      %2072 = vmatpush1.msra.mxu0 0.0
      %2073 = vmatprep.subr.mxu0 0.0
      %2074 = vmatpush1.msra.mxu0 0.0
      %2075 = vmatprep.subr.mxu0 0.0
      %2076 = vmatpush1.msra.mxu0 0.0
      %2077 = vmatprep.subr.mxu0 0.0
      %2078 = vmatpush1.msra.mxu0 0.0
      %2079 = vmatprep.subr.mxu0 0.0
      %2080 = vmatpush1.msra.mxu0 0.0
      %2081 = vmatprep.subr.mxu0 0.0
      %2082 = vmatpush1.msra.mxu0 0.0
      %2083 = vmatprep.subr.mxu0 0.0
      %2084 = vmatpush1.msra.mxu0 0.0
      %2085 = vmatprep.subr.mxu0 0.0
      %2086 = vmatpush1.msra.mxu0 0.0
      %2087 = vmatprep.subr.mxu0 0.0
      %2088 = vmatpush1.msra.mxu0 0.0
      %2089 = vmatprep.subr.mxu0 0.0
      %2090 = vmatpush1.msra.mxu0 0.0
      %2091 = vmatprep.subr.mxu0 0.0
      %2092 = vmatpush1.msra.mxu0 0.0
      %2093 = vmatprep.subr.mxu0 0.0
      %2094 = vmatpush1.msra.mxu0 0.0
      %2095 = vmatprep.subr.mxu0 0.0
      %2096 = vmatpush1.msra.mxu0 0.0
      %2097 = vmatprep.subr.mxu0 0.0
      %2098 = vmatpush1.msra.mxu0 0.0
      %2099 = vmatprep.subr.mxu0 0.0
      %2100 = vmatpush1.msra.mxu0 0.0
      %2101 = vmatprep.subr.mxu0 0.0
      %2102 = vmatpush1.msra.mxu0 0.0
      %2103 = vmatprep.subr.mxu0 0.0
      %2104 = vmatpush1.msra.mxu0 0.0
      %2105 = vmatprep.subr.mxu0 0.0
      %2106 = vmatpush1.msra.mxu0 0.0
      %2107 = vmatprep.subr.mxu0 0.0
      %2108 = vmatpush1.msra.mxu0 0.0
      %2109 = vmatprep.subr.mxu0 0.0
      %2110 = vmatpush1.msra.mxu0 0.0
      %2111 = vmatprep.subr.mxu0 0.0
      %2112 = vmatpush1.msra.mxu0 0.0
      %2113 = vmatprep.subr.mxu0 0.0
      %2114 = vmatpush1.msra.mxu0 0.0
      %2115 = vmatprep.subr.mxu0 0.0
      %2116 = vmatpush1.msra.mxu0 0.0
      %2117 = vmatprep.subr.mxu0 0.0
      %2118 = vmatpush1.msra.mxu0 0.0
      %2119 = vmatprep.subr.mxu0 0.0
      %2120 = vmatpush1.msra.mxu0 0.0
      %2121 = vmatprep.subr.mxu0 0.0
      %2122 = vmatpush1.msra.mxu0 0.0
      %2123 = vmatprep.mubr.f32.mxu0 0.0
      %2124 = vmatmul.mubr.f32.gmra.mrb[0].mxu0 %v1964
      %v2125 = vpop.f32.mrb[0].mxu0
      %v2126 = vadd.f32 0.0, %v2125
      %v2127 = vpop.f32.mrb[0].mxu0
      %2128 = vmatprep.mubr.f32.mxu0 0.0
      %2129 = vmatmul.mubr.f32.gmra.mrb[0].mxu0 %v1967
      %v2130 = vpop.f32.mrb[0].mxu0
      %v2131 = vadd.f32 0.0, %v2130
      %v2132 = vpop.f32.mrb[0].mxu0
      %2133 = vmatprep.mubr.f32.mxu0 0.0
      %2134 = vmatmul.mubr.f32.gmra.mrb[0].mxu0 %v1970
      %v2135 = vpop.f32.mrb[0].mxu0
      %v2136 = vadd.f32 0.0, %v2135
      %v2137 = vpop.f32.mrb[0].mxu0
      %2138 = vmatprep.mubr.f32.mxu0 0.0
      %2139 = vmatmul.mubr.f32.gmra.mrb[0].mxu0 %v1973
      %v2140 = vpop.f32.mrb[0].mxu0
      %v2141 = vadd.f32 0.0, %v2140
      %v2142 = vpop.f32.mrb[0].mxu0
      %2143 = vmatprep.mubr.f32.mxu0 0.0
      %2144 = vmatmul.mubr.f32.gmra.mrb[0].mxu0 %v1976
      %v2145 = vpop.f32.mrb[0].mxu0
      %v2146 = vadd.f32 0.0, %v2145
      %v2147 = vpop.f32.mrb[0].mxu0
      %2148 = vmatprep.mubr.f32.mxu0 0.0
      %2149 = vmatmul.mubr.f32.gmra.mrb[0].mxu0 %v1979
      %v2150 = vpop.f32.mrb[0].mxu0
      %v2151 = vadd.f32 0.0, %v2150
      %v2152 = vpop.f32.mrb[0].mxu0
      %2153 = vmatprep.mubr.f32.mxu0 0.0
      %2154 = vmatmul.mubr.f32.gmra.mrb[0].mxu0 %v1982
      %v2155 = vpop.f32.mrb[0].mxu0
      %v2156 = vadd.f32 0.0, %v2155
      %v2157 = vpop.f32.mrb[0].mxu0
      %2158 = vmatprep.mubr.f32.mxu0 0.0
      %2159 = vmatmul.mubr.f32.gmra.mrb[0].mxu0 %v1985
      %v2160 = vpop.f32.mrb[0].mxu0
      %v2161 = vadd.f32 0.0, %v2160
      %v2162 = vpop.f32.mrb[0].mxu0
      %2163 = vmatprep.mubr.f32.mxu0 0.0
      %2164 = vmatmul.mubr.f32.gmra.mrb[0].mxu0 %v1988
      %v2165 = vpop.f32.mrb[0].mxu0
      %v2166 = vadd.f32 0.0, %v2165
      %v2167 = vpop.f32.mrb[0].mxu0
      %2168 = vmatprep.mubr.f32.mxu0 0.0
      %2169 = vmatmul.mubr.f32.gmra.mrb[0].mxu0 %v1991
      %v2170 = vpop.f32.mrb[0].mxu0
      %v2171 = vadd.f32 0.0, %v2170
      %v2172 = vpop.f32.mrb[0].mxu0
      %2173 = vmatprep.mubr.f32.mxu0 0.0
      %2174 = vmatmul.mubr.f32.gmra.mrb[0].mxu0 %v1994
      %v2175 = vpop.f32.mrb[0].mxu0
      %v2176 = vadd.f32 0.0, %v2175
      %v2177 = vpop.f32.mrb[0].mxu0
      %2178 = vmatprep.mubr.f32.mxu0 0.0
      %2179 = vmatmul.mubr.f32.gmra.mrb[0].mxu0 %v1997
      %v2180 = vpop.f32.mrb[0].mxu0
      %v2181 = vadd.f32 0.0, %v2180
      %v2182 = vpop.f32.mrb[0].mxu0
      %2183 = vmatprep.mubr.f32.mxu0 0.0
      %2184 = vmatmul.mubr.f32.gmra.mrb[0].mxu0 %v2000
      %v2185 = vpop.f32.mrb[0].mxu0
      %v2186 = vadd.f32 0.0, %v2185
      %v2187 = vpop.f32.mrb[0].mxu0
      %2188 = vmatprep.mubr.f32.mxu0 0.0
      %2189 = vmatmul.mubr.f32.gmra.mrb[0].mxu0 %v2003
      %v2190 = vpop.f32.mrb[0].mxu0
      %v2191 = vadd.f32 0.0, %v2190
      %v2192 = vpop.f32.mrb[0].mxu0
      %2193 = vmatprep.mubr.f32.mxu0 0.0
      %2194 = vmatmul.mubr.f32.gmra.mrb[0].mxu0 %v2006
      %v2195 = vpop.f32.mrb[0].mxu0
      %v2196 = vadd.f32 0.0, %v2195
      %v2197 = vpop.f32.mrb[0].mxu0
      %2198 = vmatprep.mubr.f32.mxu0 0.0
      %2199 = vmatmul.mubr.f32.gmra.mrb[0].mxu0 %v2009
      %v2200 = vpop.f32.mrb[0].mxu0
      %v2201 = vadd.f32 0.0, %v2200
      %v2202 = vpop.f32.mrb[0].mxu0
      %2203 = vmatprep.mubr.f32.mxu0 0.0
      %2204 = vmatmul.mubr.f32.gmra.mrb[0].mxu0 %v2012
      %v2205 = vpop.f32.mrb[0].mxu0
      %v2206 = vadd.f32 0.0, %v2205
      %v2207 = vpop.f32.mrb[0].mxu0
      %2208 = vmatprep.mubr.f32.mxu0 0.0
      %2209 = vmatmul.mubr.f32.gmra.mrb[0].mxu0 %v2015
      %v2210 = vpop.f32.mrb[0].mxu0
      %v2211 = vadd.f32 0.0, %v2210
      %v2212 = vpop.f32.mrb[0].mxu0
      %2213 = vmatprep.mubr.f32.mxu0 0.0
      %2214 = vmatmul.mubr.f32.gmra.mrb[0].mxu0 %v2018
      %v2215 = vpop.f32.mrb[0].mxu0
      %v2216 = vadd.f32 0.0, %v2215
      %v2217 = vpop.f32.mrb[0].mxu0
      %2218 = vmatprep.mubr.f32.mxu0 0.0
      %2219 = vmatmul.mubr.f32.gmra.mrb[0].mxu0 %v2021
      %v2220 = vpop.f32.mrb[0].mxu0
      %v2221 = vadd.f32 0.0, %v2220
      %v2222 = vpop.f32.mrb[0].mxu0
      %2223 = vmatprep.mubr.f32.mxu0 0.0
      %2224 = vmatmul.mubr.f32.gmra.mrb[0].mxu0 %v2024
      %v2225 = vpop.f32.mrb[0].mxu0
      %v2226 = vadd.f32 0.0, %v2225
      %v2227 = vpop.f32.mrb[0].mxu0
      %2228 = vmatprep.mubr.f32.mxu0 0.0
      %2229 = vmatmul.mubr.f32.gmra.mrb[0].mxu0 %v2027
      %v2230 = vpop.f32.mrb[0].mxu0
      %v2231 = vadd.f32 0.0, %v2230
      %v2232 = vpop.f32.mrb[0].mxu0
      %2233 = vmatprep.mubr.f32.mxu0 0.0
      %2234 = vmatmul.mubr.f32.gmra.mrb[0].mxu0 %v2030
      %v2235 = vpop.f32.mrb[0].mxu0
      %v2236 = vadd.f32 0.0, %v2235
      %v2237 = vpop.f32.mrb[0].mxu0
      %2238 = vmatprep.mubr.f32.mxu0 0.0
      %2239 = vmatmul.mubr.f32.gmra.mrb[0].mxu0 %v2033
      %v2240 = vpop.f32.mrb[0].mxu0
      %v2241 = vadd.f32 0.0, %v2240
      %v2242 = vpop.f32.mrb[0].mxu0
      %2243 = vmatprep.mubr.f32.mxu0 0.0
      %2244 = vmatmul.mubr.f32.gmra.mrb[0].mxu0 %v2036
      %v2245 = vpop.f32.mrb[0].mxu0
      %v2246 = vadd.f32 0.0, %v2245
      %v2247 = vpop.f32.mrb[0].mxu0
      %2248 = vmatprep.mubr.f32.mxu0 0.0
      %2249 = vmatmul.mubr.f32.gmra.mrb[0].mxu0 %v2039
      %v2250 = vpop.f32.mrb[0].mxu0
      %v2251 = vadd.f32 0.0, %v2250
      %v2252 = vpop.f32.mrb[0].mxu0
      %2253 = vmatprep.mubr.f32.mxu0 0.0
      %2254 = vmatmul.mubr.f32.gmra.mrb[0].mxu0 %v2042
      %v2255 = vpop.f32.mrb[0].mxu0
      %v2256 = vadd.f32 0.0, %v2255
      %v2257 = vpop.f32.mrb[0].mxu0
      %2258 = vmatprep.mubr.f32.mxu0 0.0
      %2259 = vmatmul.mubr.f32.gmra.mrb[0].mxu0 %v2045
      %v2260 = vpop.f32.mrb[0].mxu0
      %v2261 = vadd.f32 0.0, %v2260
      %v2262 = vpop.f32.mrb[0].mxu0
      %2263 = vmatprep.mubr.f32.mxu0 0.0
      %2264 = vmatmul.mubr.f32.gmra.mrb[0].mxu0 %v2048
      %v2265 = vpop.f32.mrb[0].mxu0
      %v2266 = vadd.f32 0.0, %v2265
      %v2267 = vpop.f32.mrb[0].mxu0
      %2268 = vmatprep.mubr.f32.mxu0 0.0
      %2269 = vmatmul.mubr.f32.gmra.mrb[0].mxu0 %v2051
      %v2270 = vpop.f32.mrb[0].mxu0
      %v2271 = vadd.f32 0.0, %v2270
      %v2272 = vpop.f32.mrb[0].mxu0
      %2273 = vmatprep.mubr.f32.mxu0 0.0
      %2274 = vmatmul.mubr.f32.gmra.mrb[0].mxu0 %v2054
      %v2275 = vpop.f32.mrb[0].mxu0
      %v2276 = vadd.f32 0.0, %v2275
      %v2277 = vpop.f32.mrb[0].mxu0
      %2278 = vmatprep.mubr.f32.mxu0 0.0
      %2279 = vmatmul.mubr.f32.gmra.mrb[0].mxu0 %v2057
      %v2280 = vpop.f32.mrb[0].mxu0
      %v2281 = vadd.f32 0.0, %v2280
      %v2282 = vpop.f32.mrb[0].mxu0
      %2283 = vdwg.mxu0
      %v2284 = vadd.f32 %v1643, %v2126
      %v2285 = vadd.f32 %v1648, %v2131
      %v2286 = vadd.f32 %v1653, %v2136
      %v2287 = vadd.f32 %v1658, %v2141
      %v2288 = vadd.f32 %v1663, %v2146
      %v2289 = vadd.f32 %v1668, %v2151
      %v2290 = vadd.f32 %v1673, %v2156
      %v2291 = vadd.f32 %v1678, %v2161
      %v2292 = vadd.f32 %v1683, %v2166
      %v2293 = vadd.f32 %v1688, %v2171
      %v2294 = vadd.f32 %v1693, %v2176
      %v2295 = vadd.f32 %v1698, %v2181
      %v2296 = vadd.f32 %v1703, %v2186
      %v2297 = vadd.f32 %v1708, %v2191
      %v2298 = vadd.f32 %v1713, %v2196
      %v2299 = vadd.f32 %v1718, %v2201
      %v2300 = vadd.f32 %v1723, %v2206
      %v2301 = vadd.f32 %v1728, %v2211
      %v2302 = vadd.f32 %v1733, %v2216
      %v2303 = vadd.f32 %v1738, %v2221
      %v2304 = vadd.f32 %v1743, %v2226
      %v2305 = vadd.f32 %v1748, %v2231
      %v2306 = vadd.f32 %v1753, %v2236
      %v2307 = vadd.f32 %v1758, %v2241
      %v2308 = vadd.f32 %v1763, %v2246
      %v2309 = vadd.f32 %v1768, %v2251
      %v2310 = vadd.f32 %v1773, %v2256
      %v2311 = vadd.f32 %v1778, %v2261
      %v2312 = vadd.f32 %v1783, %v2266
      %v2313 = vadd.f32 %v1788, %v2271
      %v2314 = vadd.f32 %v1793, %v2276
      %v2315 = vadd.f32 %v1798, %v2281
      %v2316 = vld [vmem:[#allocation2 + $0xff] sm:$0xff]
      %v2317 = vld [vmem:[#allocation2 + $0x107] sm:$0xff]
      %v2318 = vld [vmem:[#allocation2 + $0x10f] sm:$0xff]
      %v2319 = vld [vmem:[#allocation2 + $0x117] sm:$0xff]
      %v2320 = vld [vmem:[#allocation2 + $0x11f] sm:$0xff]
      %v2321 = vld [vmem:[#allocation2 + $0x127] sm:$0xff]
      %v2322 = vld [vmem:[#allocation2 + $0x12f] sm:$0xff]
      %v2323 = vld [vmem:[#allocation2 + $0x137] sm:$0xff]
      %v2324 = vld [vmem:[#allocation2 + $0x13f] sm:$0xff]
      %v2325 = vld [vmem:[#allocation2 + $0x147] sm:$0xff]
      %v2326 = vld [vmem:[#allocation2 + $0x14f] sm:$0xff]
      %v2327 = vld [vmem:[#allocation2 + $0x157] sm:$0xff]
      %v2328 = vld [vmem:[#allocation2 + $0x15f] sm:$0xff]
      %v2329 = vld [vmem:[#allocation2 + $0x167] sm:$0xff]
      %v2330 = vld [vmem:[#allocation2 + $0x16f] sm:$0xff]
      %v2331 = vld [vmem:[#allocation2 + $0x177] sm:$0xff]
      %v2332 = vld [vmem:[#allocation2 + $0x17f] sm:$0xff]
      %v2333 = vld [vmem:[#allocation2 + $0x187] sm:$0xff]
      %v2334 = vld [vmem:[#allocation2 + $0x18f] sm:$0xff]
      %v2335 = vld [vmem:[#allocation2 + $0x197] sm:$0xff]
      %v2336 = vld [vmem:[#allocation2 + $0x19f] sm:$0xff]
      %v2337 = vld [vmem:[#allocation2 + $0x1a7] sm:$0xff]
      %v2338 = vld [vmem:[#allocation2 + $0x1af] sm:$0xff]
      %v2339 = vld [vmem:[#allocation2 + $0x1b7] sm:$0xff]
      %v2340 = vld [vmem:[#allocation2 + $0x1bf] sm:$0xff]
      %v2341 = vld [vmem:[#allocation2 + $0x1c7] sm:$0xff]
      %v2342 = vld [vmem:[#allocation2 + $0x1cf] sm:$0xff]
      %v2343 = vld [vmem:[#allocation2 + $0x1d7] sm:$0xff]
      %v2344 = vld [vmem:[#allocation2 + $0x1df] sm:$0xff]
      %v2345 = vld [vmem:[#allocation2 + $0x1e7] sm:$0xff]
      %v2346 = vld [vmem:[#allocation2 + $0x1ef] sm:$0xff]
      %v2347 = vld [vmem:[#allocation2 + $0x1f7] sm:$0xff]
      %2348 = vrot.lane.b32.xlu0 %v900, 104
      %v2349 = vpop.permute.xlu0 %2348
      %2350 = vrot.lane.b32.xlu0 %v901, 104
      %v2351 = vpop.permute.xlu0 %2350
      %2352 = vrot.lane.b32.xlu0 %v902, 104
      %v2353 = vpop.permute.xlu0 %2352
      %2354 = vrot.lane.b32.xlu0 %v903, 104
      %v2355 = vpop.permute.xlu0 %2354
      %2356 = vrot.lane.b32.xlu0 %v904, 104
      %v2357 = vpop.permute.xlu0 %2356
      %2358 = vrot.lane.b32.xlu0 %v905, 104
      %v2359 = vpop.permute.xlu0 %2358
      %2360 = vrot.lane.b32.xlu0 %v906, 104
      %v2361 = vpop.permute.xlu0 %2360
      %2362 = vrot.lane.b32.xlu0 %v907, 104
      %v2363 = vpop.permute.xlu0 %2362
      %2364 = vrot.lane.b32.xlu0 %v908, 104
      %v2365 = vpop.permute.xlu0 %2364
      %2366 = vrot.lane.b32.xlu0 %v909, 104
      %v2367 = vpop.permute.xlu0 %2366
      %2368 = vrot.lane.b32.xlu0 %v910, 104
      %v2369 = vpop.permute.xlu0 %2368
      %2370 = vrot.lane.b32.xlu0 %v911, 104
      %v2371 = vpop.permute.xlu0 %2370
      %2372 = vrot.lane.b32.xlu0 %v912, 104
      %v2373 = vpop.permute.xlu0 %2372
      %2374 = vrot.lane.b32.xlu0 %v913, 104
      %v2375 = vpop.permute.xlu0 %2374
      %2376 = vrot.lane.b32.xlu0 %v914, 104
      %v2377 = vpop.permute.xlu0 %2376
      %2378 = vrot.lane.b32.xlu0 %v915, 104
      %v2379 = vpop.permute.xlu0 %2378
      %2380 = vrot.lane.b32.xlu0 %v916, 104
      %v2381 = vpop.permute.xlu0 %2380
      %2382 = vrot.lane.b32.xlu0 %v917, 104
      %v2383 = vpop.permute.xlu0 %2382
      %2384 = vrot.lane.b32.xlu0 %v918, 104
      %v2385 = vpop.permute.xlu0 %2384
      %2386 = vrot.lane.b32.xlu0 %v919, 104
      %v2387 = vpop.permute.xlu0 %2386
      %2388 = vrot.lane.b32.xlu0 %v920, 104
      %v2389 = vpop.permute.xlu0 %2388
      %2390 = vrot.lane.b32.xlu0 %v921, 104
      %v2391 = vpop.permute.xlu0 %2390
      %2392 = vrot.lane.b32.xlu0 %v922, 104
      %v2393 = vpop.permute.xlu0 %2392
      %2394 = vrot.lane.b32.xlu0 %v923, 104
      %v2395 = vpop.permute.xlu0 %2394
      %2396 = vrot.lane.b32.xlu0 %v924, 104
      %v2397 = vpop.permute.xlu0 %2396
      %2398 = vrot.lane.b32.xlu0 %v925, 104
      %v2399 = vpop.permute.xlu0 %2398
      %2400 = vrot.lane.b32.xlu0 %v926, 104
      %v2401 = vpop.permute.xlu0 %2400
      %2402 = vrot.lane.b32.xlu0 %v927, 104
      %v2403 = vpop.permute.xlu0 %2402
      %2404 = vrot.lane.b32.xlu0 %v928, 104
      %v2405 = vpop.permute.xlu0 %2404
      %2406 = vrot.lane.b32.xlu0 %v929, 104
      %v2407 = vpop.permute.xlu0 %2406
      %2408 = vrot.lane.b32.xlu0 %v930, 104
      %v2409 = vpop.permute.xlu0 %2408
      %2410 = vrot.lane.b32.xlu0 %v931, 104
      %v2411 = vpop.permute.xlu0 %2410
      %v2444 = vmul.f32 %v2316, %v2349
      %v2445 = vmul.f32 %v2317, %v2351
      %v2446 = vmul.f32 %v2318, %v2353
      %v2447 = vmul.f32 %v2319, %v2355
      %v2448 = vmul.f32 %v2320, %v2357
      %v2449 = vmul.f32 %v2321, %v2359
      %v2450 = vmul.f32 %v2322, %v2361
      %v2451 = vmul.f32 %v2323, %v2363
      %v2452 = vmul.f32 %v2324, %v2365
      %v2453 = vmul.f32 %v2325, %v2367
      %v2454 = vmul.f32 %v2326, %v2369
      %v2455 = vmul.f32 %v2327, %v2371
      %v2456 = vmul.f32 %v2328, %v2373
      %v2457 = vmul.f32 %v2329, %v2375
      %v2458 = vmul.f32 %v2330, %v2377
      %v2459 = vmul.f32 %v2331, %v2379
      %v2460 = vmul.f32 %v2332, %v2381
      %v2461 = vmul.f32 %v2333, %v2383
      %v2462 = vmul.f32 %v2334, %v2385
      %v2463 = vmul.f32 %v2335, %v2387
      %v2464 = vmul.f32 %v2336, %v2389
      %v2465 = vmul.f32 %v2337, %v2391
      %v2466 = vmul.f32 %v2338, %v2393
      %v2467 = vmul.f32 %v2339, %v2395
      %v2468 = vmul.f32 %v2340, %v2397
      %v2469 = vmul.f32 %v2341, %v2399
      %v2470 = vmul.f32 %v2342, %v2401
      %v2471 = vmul.f32 %v2343, %v2403
      %v2472 = vmul.f32 %v2344, %v2405
      %v2473 = vmul.f32 %v2345, %v2407
      %v2474 = vmul.f32 %v2346, %v2409
      %v2475 = vmul.f32 %v2347, %v2411
      %s2476 = scalar_lea.vmem %s4, 24
      %v2477 = vld [vmem:[%s2476] sm:$0xff]
      %v2479 = vsel %vm803, %v2444, 0
      %v2482 = vsel %vm803, %v2445, 0
      %v2485 = vsel %vm803, %v2446, 0
      %v2488 = vsel %vm803, %v2447, 0
      %v2491 = vsel %vm803, %v2448, 0
      %v2494 = vsel %vm803, %v2449, 0
      %v2497 = vsel %vm803, %v2450, 0
      %v2500 = vsel %vm803, %v2451, 0
      %v2503 = vsel %vm803, %v2452, 0
      %v2506 = vsel %vm803, %v2453, 0
      %v2509 = vsel %vm803, %v2454, 0
      %v2512 = vsel %vm803, %v2455, 0
      %v2515 = vsel %vm803, %v2456, 0
      %v2518 = vsel %vm803, %v2457, 0
      %v2521 = vsel %vm803, %v2458, 0
      %v2524 = vsel %vm803, %v2459, 0
      %v2527 = vsel %vm803, %v2460, 0
      %v2530 = vsel %vm803, %v2461, 0
      %v2533 = vsel %vm803, %v2462, 0
      %v2536 = vsel %vm803, %v2463, 0
      %v2539 = vsel %vm803, %v2464, 0
      %v2542 = vsel %vm803, %v2465, 0
      %v2545 = vsel %vm803, %v2466, 0
      %v2548 = vsel %vm803, %v2467, 0
      %v2551 = vsel %vm803, %v2468, 0
      %v2554 = vsel %vm803, %v2469, 0
      %v2557 = vsel %vm803, %v2470, 0
      %v2560 = vsel %vm803, %v2471, 0
      %v2563 = vsel %vm803, %v2472, 0
      %v2566 = vsel %vm803, %v2473, 0
      %v2569 = vsel %vm803, %v2474, 0
      %v2572 = vsel %vm803, %v2475, 0
      %2574 = vmatprep.subr.mxu0 0.0
      %2575 = vmatpush1.msra.mxu0 %v2477
      %2576 = vmatprep.subr.mxu0 0.0
      %2577 = vmatpush1.msra.mxu0 0.0
      %2578 = vmatprep.subr.mxu0 0.0
      %2579 = vmatpush1.msra.mxu0 0.0
      %2580 = vmatprep.subr.mxu0 0.0
      %2581 = vmatpush1.msra.mxu0 0.0
      %2582 = vmatprep.subr.mxu0 0.0
      %2583 = vmatpush1.msra.mxu0 0.0
      %2584 = vmatprep.subr.mxu0 0.0
      %2585 = vmatpush1.msra.mxu0 0.0
      %2586 = vmatprep.subr.mxu0 0.0
      %2587 = vmatpush1.msra.mxu0 0.0
      %2588 = vmatprep.subr.mxu0 0.0
      %2589 = vmatpush1.msra.mxu0 0.0
      %2590 = vmatprep.subr.mxu0 0.0
      %2591 = vmatpush1.msra.mxu0 0.0
      %2592 = vmatprep.subr.mxu0 0.0
      %2593 = vmatpush1.msra.mxu0 0.0
      %2594 = vmatprep.subr.mxu0 0.0
      %2595 = vmatpush1.msra.mxu0 0.0
      %2596 = vmatprep.subr.mxu0 0.0
      %2597 = vmatpush1.msra.mxu0 0.0
      %2598 = vmatprep.subr.mxu0 0.0
      %2599 = vmatpush1.msra.mxu0 0.0
      %2600 = vmatprep.subr.mxu0 0.0
      %2601 = vmatpush1.msra.mxu0 0.0
      %2602 = vmatprep.subr.mxu0 0.0
      %2603 = vmatpush1.msra.mxu0 0.0
      %2604 = vmatprep.subr.mxu0 0.0
      %2605 = vmatpush1.msra.mxu0 0.0
      %2606 = vmatprep.subr.mxu0 0.0
      %2607 = vmatpush1.msra.mxu0 0.0
      %2608 = vmatprep.subr.mxu0 0.0
      %2609 = vmatpush1.msra.mxu0 0.0
      %2610 = vmatprep.subr.mxu0 0.0
      %2611 = vmatpush1.msra.mxu0 0.0
      %2612 = vmatprep.subr.mxu0 0.0
      %2613 = vmatpush1.msra.mxu0 0.0
      %2614 = vmatprep.subr.mxu0 0.0
      %2615 = vmatpush1.msra.mxu0 0.0
      %2616 = vmatprep.subr.mxu0 0.0
      %2617 = vmatpush1.msra.mxu0 0.0
      %2618 = vmatprep.subr.mxu0 0.0
      %2619 = vmatpush1.msra.mxu0 0.0
      %2620 = vmatprep.subr.mxu0 0.0
      %2621 = vmatpush1.msra.mxu0 0.0
      %2622 = vmatprep.subr.mxu0 0.0
      %2623 = vmatpush1.msra.mxu0 0.0
      %2624 = vmatprep.subr.mxu0 0.0
      %2625 = vmatpush1.msra.mxu0 0.0
      %2626 = vmatprep.subr.mxu0 0.0
      %2627 = vmatpush1.msra.mxu0 0.0
      %2628 = vmatprep.subr.mxu0 0.0
      %2629 = vmatpush1.msra.mxu0 0.0
      %2630 = vmatprep.subr.mxu0 0.0
      %2631 = vmatpush1.msra.mxu0 0.0
      %2632 = vmatprep.subr.mxu0 0.0
      %2633 = vmatpush1.msra.mxu0 0.0
      %2634 = vmatprep.subr.mxu0 0.0
      %2635 = vmatpush1.msra.mxu0 0.0
      %2636 = vmatprep.subr.mxu0 0.0
      %2637 = vmatpush1.msra.mxu0 0.0
      %2638 = vmatprep.mubr.f32.mxu0 0.0
      %2639 = vmatmul.mubr.f32.gmra.mrb[0].mxu0 %v2479
      %v2640 = vpop.f32.mrb[0].mxu0
      %v2641 = vadd.f32 0.0, %v2640
      %v2642 = vpop.f32.mrb[0].mxu0
      %2643 = vmatprep.mubr.f32.mxu0 0.0
      %2644 = vmatmul.mubr.f32.gmra.mrb[0].mxu0 %v2482
      %v2645 = vpop.f32.mrb[0].mxu0
      %v2646 = vadd.f32 0.0, %v2645
      %v2647 = vpop.f32.mrb[0].mxu0
      %2648 = vmatprep.mubr.f32.mxu0 0.0
      %2649 = vmatmul.mubr.f32.gmra.mrb[0].mxu0 %v2485
      %v2650 = vpop.f32.mrb[0].mxu0
      %v2651 = vadd.f32 0.0, %v2650
      %v2652 = vpop.f32.mrb[0].mxu0
      %2653 = vmatprep.mubr.f32.mxu0 0.0
      %2654 = vmatmul.mubr.f32.gmra.mrb[0].mxu0 %v2488
      %v2655 = vpop.f32.mrb[0].mxu0
      %v2656 = vadd.f32 0.0, %v2655
      %v2657 = vpop.f32.mrb[0].mxu0
      %2658 = vmatprep.mubr.f32.mxu0 0.0
      %2659 = vmatmul.mubr.f32.gmra.mrb[0].mxu0 %v2491
      %v2660 = vpop.f32.mrb[0].mxu0
      %v2661 = vadd.f32 0.0, %v2660
      %v2662 = vpop.f32.mrb[0].mxu0
      %2663 = vmatprep.mubr.f32.mxu0 0.0
      %2664 = vmatmul.mubr.f32.gmra.mrb[0].mxu0 %v2494
      %v2665 = vpop.f32.mrb[0].mxu0
      %v2666 = vadd.f32 0.0, %v2665
      %v2667 = vpop.f32.mrb[0].mxu0
      %2668 = vmatprep.mubr.f32.mxu0 0.0
      %2669 = vmatmul.mubr.f32.gmra.mrb[0].mxu0 %v2497
      %v2670 = vpop.f32.mrb[0].mxu0
      %v2671 = vadd.f32 0.0, %v2670
      %v2672 = vpop.f32.mrb[0].mxu0
      %2673 = vmatprep.mubr.f32.mxu0 0.0
      %2674 = vmatmul.mubr.f32.gmra.mrb[0].mxu0 %v2500
      %v2675 = vpop.f32.mrb[0].mxu0
      %v2676 = vadd.f32 0.0, %v2675
      %v2677 = vpop.f32.mrb[0].mxu0
      %2678 = vmatprep.mubr.f32.mxu0 0.0
      %2679 = vmatmul.mubr.f32.gmra.mrb[0].mxu0 %v2503
      %v2680 = vpop.f32.mrb[0].mxu0
      %v2681 = vadd.f32 0.0, %v2680
      %v2682 = vpop.f32.mrb[0].mxu0
      %2683 = vmatprep.mubr.f32.mxu0 0.0
      %2684 = vmatmul.mubr.f32.gmra.mrb[0].mxu0 %v2506
      %v2685 = vpop.f32.mrb[0].mxu0
      %v2686 = vadd.f32 0.0, %v2685
      %v2687 = vpop.f32.mrb[0].mxu0
      %2688 = vmatprep.mubr.f32.mxu0 0.0
      %2689 = vmatmul.mubr.f32.gmra.mrb[0].mxu0 %v2509
      %v2690 = vpop.f32.mrb[0].mxu0
      %v2691 = vadd.f32 0.0, %v2690
      %v2692 = vpop.f32.mrb[0].mxu0
      %2693 = vmatprep.mubr.f32.mxu0 0.0
      %2694 = vmatmul.mubr.f32.gmra.mrb[0].mxu0 %v2512
      %v2695 = vpop.f32.mrb[0].mxu0
      %v2696 = vadd.f32 0.0, %v2695
      %v2697 = vpop.f32.mrb[0].mxu0
      %2698 = vmatprep.mubr.f32.mxu0 0.0
      %2699 = vmatmul.mubr.f32.gmra.mrb[0].mxu0 %v2515
      %v2700 = vpop.f32.mrb[0].mxu0
      %v2701 = vadd.f32 0.0, %v2700
      %v2702 = vpop.f32.mrb[0].mxu0
      %2703 = vmatprep.mubr.f32.mxu0 0.0
      %2704 = vmatmul.mubr.f32.gmra.mrb[0].mxu0 %v2518
      %v2705 = vpop.f32.mrb[0].mxu0
      %v2706 = vadd.f32 0.0, %v2705
      %v2707 = vpop.f32.mrb[0].mxu0
      %2708 = vmatprep.mubr.f32.mxu0 0.0
      %2709 = vmatmul.mubr.f32.gmra.mrb[0].mxu0 %v2521
      %v2710 = vpop.f32.mrb[0].mxu0
      %v2711 = vadd.f32 0.0, %v2710
      %v2712 = vpop.f32.mrb[0].mxu0
      %2713 = vmatprep.mubr.f32.mxu0 0.0
      %2714 = vmatmul.mubr.f32.gmra.mrb[0].mxu0 %v2524
      %v2715 = vpop.f32.mrb[0].mxu0
      %v2716 = vadd.f32 0.0, %v2715
      %v2717 = vpop.f32.mrb[0].mxu0
      %2718 = vmatprep.mubr.f32.mxu0 0.0
      %2719 = vmatmul.mubr.f32.gmra.mrb[0].mxu0 %v2527
      %v2720 = vpop.f32.mrb[0].mxu0
      %v2721 = vadd.f32 0.0, %v2720
      %v2722 = vpop.f32.mrb[0].mxu0
      %2723 = vmatprep.mubr.f32.mxu0 0.0
      %2724 = vmatmul.mubr.f32.gmra.mrb[0].mxu0 %v2530
      %v2725 = vpop.f32.mrb[0].mxu0
      %v2726 = vadd.f32 0.0, %v2725
      %v2727 = vpop.f32.mrb[0].mxu0
      %2728 = vmatprep.mubr.f32.mxu0 0.0
      %2729 = vmatmul.mubr.f32.gmra.mrb[0].mxu0 %v2533
      %v2730 = vpop.f32.mrb[0].mxu0
      %v2731 = vadd.f32 0.0, %v2730
      %v2732 = vpop.f32.mrb[0].mxu0
      %2733 = vmatprep.mubr.f32.mxu0 0.0
      %2734 = vmatmul.mubr.f32.gmra.mrb[0].mxu0 %v2536
      %v2735 = vpop.f32.mrb[0].mxu0
      %v2736 = vadd.f32 0.0, %v2735
      %v2737 = vpop.f32.mrb[0].mxu0
      %2738 = vmatprep.mubr.f32.mxu0 0.0
      %2739 = vmatmul.mubr.f32.gmra.mrb[0].mxu0 %v2539
      %v2740 = vpop.f32.mrb[0].mxu0
      %v2741 = vadd.f32 0.0, %v2740
      %v2742 = vpop.f32.mrb[0].mxu0
      %2743 = vmatprep.mubr.f32.mxu0 0.0
      %2744 = vmatmul.mubr.f32.gmra.mrb[0].mxu0 %v2542
      %v2745 = vpop.f32.mrb[0].mxu0
      %v2746 = vadd.f32 0.0, %v2745
      %v2747 = vpop.f32.mrb[0].mxu0
      %2748 = vmatprep.mubr.f32.mxu0 0.0
      %2749 = vmatmul.mubr.f32.gmra.mrb[0].mxu0 %v2545
      %v2750 = vpop.f32.mrb[0].mxu0
      %v2751 = vadd.f32 0.0, %v2750
      %v2752 = vpop.f32.mrb[0].mxu0
      %2753 = vmatprep.mubr.f32.mxu0 0.0
      %2754 = vmatmul.mubr.f32.gmra.mrb[0].mxu0 %v2548
      %v2755 = vpop.f32.mrb[0].mxu0
      %v2756 = vadd.f32 0.0, %v2755
      %v2757 = vpop.f32.mrb[0].mxu0
      %2758 = vmatprep.mubr.f32.mxu0 0.0
      %2759 = vmatmul.mubr.f32.gmra.mrb[0].mxu0 %v2551
      %v2760 = vpop.f32.mrb[0].mxu0
      %v2761 = vadd.f32 0.0, %v2760
      %v2762 = vpop.f32.mrb[0].mxu0
      %2763 = vmatprep.mubr.f32.mxu0 0.0
      %2764 = vmatmul.mubr.f32.gmra.mrb[0].mxu0 %v2554
      %v2765 = vpop.f32.mrb[0].mxu0
      %v2766 = vadd.f32 0.0, %v2765
      %v2767 = vpop.f32.mrb[0].mxu0
      %2768 = vmatprep.mubr.f32.mxu0 0.0
      %2769 = vmatmul.mubr.f32.gmra.mrb[0].mxu0 %v2557
      %v2770 = vpop.f32.mrb[0].mxu0
      %v2771 = vadd.f32 0.0, %v2770
      %v2772 = vpop.f32.mrb[0].mxu0
      %2773 = vmatprep.mubr.f32.mxu0 0.0
      %2774 = vmatmul.mubr.f32.gmra.mrb[0].mxu0 %v2560
      %v2775 = vpop.f32.mrb[0].mxu0
      %v2776 = vadd.f32 0.0, %v2775
      %v2777 = vpop.f32.mrb[0].mxu0
      %2778 = vmatprep.mubr.f32.mxu0 0.0
      %2779 = vmatmul.mubr.f32.gmra.mrb[0].mxu0 %v2563
      %v2780 = vpop.f32.mrb[0].mxu0
      %v2781 = vadd.f32 0.0, %v2780
      %v2782 = vpop.f32.mrb[0].mxu0
      %2783 = vmatprep.mubr.f32.mxu0 0.0
      %2784 = vmatmul.mubr.f32.gmra.mrb[0].mxu0 %v2566
      %v2785 = vpop.f32.mrb[0].mxu0
      %v2786 = vadd.f32 0.0, %v2785
      %v2787 = vpop.f32.mrb[0].mxu0
      %2788 = vmatprep.mubr.f32.mxu0 0.0
      %2789 = vmatmul.mubr.f32.gmra.mrb[0].mxu0 %v2569
      %v2790 = vpop.f32.mrb[0].mxu0
      %v2791 = vadd.f32 0.0, %v2790
      %v2792 = vpop.f32.mrb[0].mxu0
      %2793 = vmatprep.mubr.f32.mxu0 0.0
      %2794 = vmatmul.mubr.f32.gmra.mrb[0].mxu0 %v2572
      %v2795 = vpop.f32.mrb[0].mxu0
      %v2796 = vadd.f32 0.0, %v2795
      %v2797 = vpop.f32.mrb[0].mxu0
      %2798 = vdwg.mxu0
      %v2799 = vadd.f32 %v2284, %v2641
      %v2800 = vadd.f32 %v2285, %v2646
      %v2801 = vadd.f32 %v2286, %v2651
      %v2802 = vadd.f32 %v2287, %v2656
      %v2803 = vadd.f32 %v2288, %v2661
      %v2804 = vadd.f32 %v2289, %v2666
      %v2805 = vadd.f32 %v2290, %v2671
      %v2806 = vadd.f32 %v2291, %v2676
      %v2807 = vadd.f32 %v2292, %v2681
      %v2808 = vadd.f32 %v2293, %v2686
      %v2809 = vadd.f32 %v2294, %v2691
      %v2810 = vadd.f32 %v2295, %v2696
      %v2811 = vadd.f32 %v2296, %v2701
      %v2812 = vadd.f32 %v2297, %v2706
      %v2813 = vadd.f32 %v2298, %v2711
      %v2814 = vadd.f32 %v2299, %v2716
      %v2815 = vadd.f32 %v2300, %v2721
      %v2816 = vadd.f32 %v2301, %v2726
      %v2817 = vadd.f32 %v2302, %v2731
      %v2818 = vadd.f32 %v2303, %v2736
      %v2819 = vadd.f32 %v2304, %v2741
      %v2820 = vadd.f32 %v2305, %v2746
      %v2821 = vadd.f32 %v2306, %v2751
      %v2822 = vadd.f32 %v2307, %v2756
      %v2823 = vadd.f32 %v2308, %v2761
      %v2824 = vadd.f32 %v2309, %v2766
      %v2825 = vadd.f32 %v2310, %v2771
      %v2826 = vadd.f32 %v2311, %v2776
      %v2827 = vadd.f32 %v2312, %v2781
      %v2828 = vadd.f32 %v2313, %v2786
      %v2829 = vadd.f32 %v2314, %v2791
      %v2830 = vadd.f32 %v2315, %v2796
      %v2831 = vld [vmem:[#allocation2] sm:$0xff]
      %v2832 = vld [vmem:[#allocation2 + $0x8] sm:$0xff]
      %v2833 = vld [vmem:[#allocation2 + $0x10] sm:$0xff]
      %v2834 = vld [vmem:[#allocation2 + $0x18] sm:$0xff]
      %v2835 = vld [vmem:[#allocation2 + $0x20] sm:$0xff]
      %v2836 = vld [vmem:[#allocation2 + $0x28] sm:$0xff]
      %v2837 = vld [vmem:[#allocation2 + $0x30] sm:$0xff]
      %v2838 = vld [vmem:[#allocation2 + $0x38] sm:$0xff]
      %v2839 = vld [vmem:[#allocation2 + $0x40] sm:$0xff]
      %v2840 = vld [vmem:[#allocation2 + $0x48] sm:$0xff]
      %v2841 = vld [vmem:[#allocation2 + $0x50] sm:$0xff]
      %v2842 = vld [vmem:[#allocation2 + $0x58] sm:$0xff]
      %v2843 = vld [vmem:[#allocation2 + $0x60] sm:$0xff]
      %v2844 = vld [vmem:[#allocation2 + $0x68] sm:$0xff]
      %v2845 = vld [vmem:[#allocation2 + $0x70] sm:$0xff]
      %v2846 = vld [vmem:[#allocation2 + $0x78] sm:$0xff]
      %v2847 = vld [vmem:[#allocation2 + $0x80] sm:$0xff]
      %v2848 = vld [vmem:[#allocation2 + $0x88] sm:$0xff]
      %v2849 = vld [vmem:[#allocation2 + $0x90] sm:$0xff]
      %v2850 = vld [vmem:[#allocation2 + $0x98] sm:$0xff]
      %v2851 = vld [vmem:[#allocation2 + $0xa0] sm:$0xff]
      %v2852 = vld [vmem:[#allocation2 + $0xa8] sm:$0xff]
      %v2853 = vld [vmem:[#allocation2 + $0xb0] sm:$0xff]
      %v2854 = vld [vmem:[#allocation2 + $0xb8] sm:$0xff]
      %v2855 = vld [vmem:[#allocation2 + $0xc0] sm:$0xff]
      %v2856 = vld [vmem:[#allocation2 + $0xc8] sm:$0xff]
      %v2857 = vld [vmem:[#allocation2 + $0xd0] sm:$0xff]
      %v2858 = vld [vmem:[#allocation2 + $0xd8] sm:$0xff]
      %v2859 = vld [vmem:[#allocation2 + $0xe0] sm:$0xff]
      %v2860 = vld [vmem:[#allocation2 + $0xe8] sm:$0xff]
      %v2861 = vld [vmem:[#allocation2 + $0xf0] sm:$0xff]
      %v2862 = vld [vmem:[#allocation2 + $0xf8] sm:$0xff]
      %2863 = vrot.lane.b32.xlu0 %v900, 96
      %v2864 = vpop.permute.xlu0 %2863
      %2865 = vrot.lane.b32.xlu0 %v901, 96
      %v2866 = vpop.permute.xlu0 %2865
      %2867 = vrot.lane.b32.xlu0 %v902, 96
      %v2868 = vpop.permute.xlu0 %2867
      %2869 = vrot.lane.b32.xlu0 %v903, 96
      %v2870 = vpop.permute.xlu0 %2869
      %2871 = vrot.lane.b32.xlu0 %v904, 96
      %v2872 = vpop.permute.xlu0 %2871
      %2873 = vrot.lane.b32.xlu0 %v905, 96
      %v2874 = vpop.permute.xlu0 %2873
      %2875 = vrot.lane.b32.xlu0 %v906, 96
      %v2876 = vpop.permute.xlu0 %2875
      %2877 = vrot.lane.b32.xlu0 %v907, 96
      %v2878 = vpop.permute.xlu0 %2877
      %2879 = vrot.lane.b32.xlu0 %v908, 96
      %v2880 = vpop.permute.xlu0 %2879
      %2881 = vrot.lane.b32.xlu0 %v909, 96
      %v2882 = vpop.permute.xlu0 %2881
      %2883 = vrot.lane.b32.xlu0 %v910, 96
      %v2884 = vpop.permute.xlu0 %2883
      %2885 = vrot.lane.b32.xlu0 %v911, 96
      %v2886 = vpop.permute.xlu0 %2885
      %2887 = vrot.lane.b32.xlu0 %v912, 96
      %v2888 = vpop.permute.xlu0 %2887
      %2889 = vrot.lane.b32.xlu0 %v913, 96
      %v2890 = vpop.permute.xlu0 %2889
      %2891 = vrot.lane.b32.xlu0 %v914, 96
      %v2892 = vpop.permute.xlu0 %2891
      %2893 = vrot.lane.b32.xlu0 %v915, 96
      %v2894 = vpop.permute.xlu0 %2893
      %2895 = vrot.lane.b32.xlu0 %v916, 96
      %v2896 = vpop.permute.xlu0 %2895
      %2897 = vrot.lane.b32.xlu0 %v917, 96
      %v2898 = vpop.permute.xlu0 %2897
      %2899 = vrot.lane.b32.xlu0 %v918, 96
      %v2900 = vpop.permute.xlu0 %2899
      %2901 = vrot.lane.b32.xlu0 %v919, 96
      %v2902 = vpop.permute.xlu0 %2901
      %2903 = vrot.lane.b32.xlu0 %v920, 96
      %v2904 = vpop.permute.xlu0 %2903
      %2905 = vrot.lane.b32.xlu0 %v921, 96
      %v2906 = vpop.permute.xlu0 %2905
      %2907 = vrot.lane.b32.xlu0 %v922, 96
      %v2908 = vpop.permute.xlu0 %2907
      %2909 = vrot.lane.b32.xlu0 %v923, 96
      %v2910 = vpop.permute.xlu0 %2909
      %2911 = vrot.lane.b32.xlu0 %v924, 96
      %v2912 = vpop.permute.xlu0 %2911
      %2913 = vrot.lane.b32.xlu0 %v925, 96
      %v2914 = vpop.permute.xlu0 %2913
      %2915 = vrot.lane.b32.xlu0 %v926, 96
      %v2916 = vpop.permute.xlu0 %2915
      %2917 = vrot.lane.b32.xlu0 %v927, 96
      %v2918 = vpop.permute.xlu0 %2917
      %2919 = vrot.lane.b32.xlu0 %v928, 96
      %v2920 = vpop.permute.xlu0 %2919
      %2921 = vrot.lane.b32.xlu0 %v929, 96
      %v2922 = vpop.permute.xlu0 %2921
      %2923 = vrot.lane.b32.xlu0 %v930, 96
      %v2924 = vpop.permute.xlu0 %2923
      %2925 = vrot.lane.b32.xlu0 %v931, 96
      %v2926 = vpop.permute.xlu0 %2925
      %v2959 = vmul.f32 %v2831, %v2864
      %v2960 = vmul.f32 %v2832, %v2866
      %v2961 = vmul.f32 %v2833, %v2868
      %v2962 = vmul.f32 %v2834, %v2870
      %v2963 = vmul.f32 %v2835, %v2872
      %v2964 = vmul.f32 %v2836, %v2874
      %v2965 = vmul.f32 %v2837, %v2876
      %v2966 = vmul.f32 %v2838, %v2878
      %v2967 = vmul.f32 %v2839, %v2880
      %v2968 = vmul.f32 %v2840, %v2882
      %v2969 = vmul.f32 %v2841, %v2884
      %v2970 = vmul.f32 %v2842, %v2886
      %v2971 = vmul.f32 %v2843, %v2888
      %v2972 = vmul.f32 %v2844, %v2890
      %v2973 = vmul.f32 %v2845, %v2892
      %v2974 = vmul.f32 %v2846, %v2894
      %v2975 = vmul.f32 %v2847, %v2896
      %v2976 = vmul.f32 %v2848, %v2898
      %v2977 = vmul.f32 %v2849, %v2900
      %v2978 = vmul.f32 %v2850, %v2902
      %v2979 = vmul.f32 %v2851, %v2904
      %v2980 = vmul.f32 %v2852, %v2906
      %v2981 = vmul.f32 %v2853, %v2908
      %v2982 = vmul.f32 %v2854, %v2910
      %v2983 = vmul.f32 %v2855, %v2912
      %v2984 = vmul.f32 %v2856, %v2914
      %v2985 = vmul.f32 %v2857, %v2916
      %v2986 = vmul.f32 %v2858, %v2918
      %v2987 = vmul.f32 %v2859, %v2920
      %v2988 = vmul.f32 %v2860, %v2922
      %v2989 = vmul.f32 %v2861, %v2924
      %v2990 = vmul.f32 %v2862, %v2926
      %s2991 = scalar_lea.vmem %s4, 32
      %v2992 = vld [vmem:[%s2991] sm:$0xff]
      %v2994 = vsel %vm803, %v2959, 0
      %v2997 = vsel %vm803, %v2960, 0
      %v3000 = vsel %vm803, %v2961, 0
      %v3003 = vsel %vm803, %v2962, 0
      %v3006 = vsel %vm803, %v2963, 0
      %v3009 = vsel %vm803, %v2964, 0
      %v3012 = vsel %vm803, %v2965, 0
      %v3015 = vsel %vm803, %v2966, 0
      %v3018 = vsel %vm803, %v2967, 0
      %v3021 = vsel %vm803, %v2968, 0
      %v3024 = vsel %vm803, %v2969, 0
      %v3027 = vsel %vm803, %v2970, 0
      %v3030 = vsel %vm803, %v2971, 0
      %v3033 = vsel %vm803, %v2972, 0
      %v3036 = vsel %vm803, %v2973, 0
      %v3039 = vsel %vm803, %v2974, 0
      %v3042 = vsel %vm803, %v2975, 0
      %v3045 = vsel %vm803, %v2976, 0
      %v3048 = vsel %vm803, %v2977, 0
      %v3051 = vsel %vm803, %v2978, 0
      %v3054 = vsel %vm803, %v2979, 0
      %v3057 = vsel %vm803, %v2980, 0
      %v3060 = vsel %vm803, %v2981, 0
      %v3063 = vsel %vm803, %v2982, 0
      %v3066 = vsel %vm803, %v2983, 0
      %v3069 = vsel %vm803, %v2984, 0
      %v3072 = vsel %vm803, %v2985, 0
      %v3075 = vsel %vm803, %v2986, 0
      %v3078 = vsel %vm803, %v2987, 0
      %v3081 = vsel %vm803, %v2988, 0
      %v3084 = vsel %vm803, %v2989, 0
      %v3087 = vsel %vm803, %v2990, 0
      %3089 = vmatprep.subr.mxu0 0.0
      %3090 = vmatpush1.msra.mxu0 %v2992
      %3091 = vmatprep.subr.mxu0 0.0
      %3092 = vmatpush1.msra.mxu0 0.0
      %3093 = vmatprep.subr.mxu0 0.0
      %3094 = vmatpush1.msra.mxu0 0.0
      %3095 = vmatprep.subr.mxu0 0.0
      %3096 = vmatpush1.msra.mxu0 0.0
      %3097 = vmatprep.subr.mxu0 0.0
      %3098 = vmatpush1.msra.mxu0 0.0
      %3099 = vmatprep.subr.mxu0 0.0
      %3100 = vmatpush1.msra.mxu0 0.0
      %3101 = vmatprep.subr.mxu0 0.0
      %3102 = vmatpush1.msra.mxu0 0.0
      %3103 = vmatprep.subr.mxu0 0.0
      %3104 = vmatpush1.msra.mxu0 0.0
      %3105 = vmatprep.subr.mxu0 0.0
      %3106 = vmatpush1.msra.mxu0 0.0
      %3107 = vmatprep.subr.mxu0 0.0
      %3108 = vmatpush1.msra.mxu0 0.0
      %3109 = vmatprep.subr.mxu0 0.0
      %3110 = vmatpush1.msra.mxu0 0.0
      %3111 = vmatprep.subr.mxu0 0.0
      %3112 = vmatpush1.msra.mxu0 0.0
      %3113 = vmatprep.subr.mxu0 0.0
      %3114 = vmatpush1.msra.mxu0 0.0
      %3115 = vmatprep.subr.mxu0 0.0
      %3116 = vmatpush1.msra.mxu0 0.0
      %3117 = vmatprep.subr.mxu0 0.0
      %3118 = vmatpush1.msra.mxu0 0.0
      %3119 = vmatprep.subr.mxu0 0.0
      %3120 = vmatpush1.msra.mxu0 0.0
      %3121 = vmatprep.subr.mxu0 0.0
      %3122 = vmatpush1.msra.mxu0 0.0
      %3123 = vmatprep.subr.mxu0 0.0
      %3124 = vmatpush1.msra.mxu0 0.0
      %3125 = vmatprep.subr.mxu0 0.0
      %3126 = vmatpush1.msra.mxu0 0.0
      %3127 = vmatprep.subr.mxu0 0.0
      %3128 = vmatpush1.msra.mxu0 0.0
      %3129 = vmatprep.subr.mxu0 0.0
      %3130 = vmatpush1.msra.mxu0 0.0
      %3131 = vmatprep.subr.mxu0 0.0
      %3132 = vmatpush1.msra.mxu0 0.0
      %3133 = vmatprep.subr.mxu0 0.0
      %3134 = vmatpush1.msra.mxu0 0.0
      %3135 = vmatprep.subr.mxu0 0.0
      %3136 = vmatpush1.msra.mxu0 0.0
      %3137 = vmatprep.subr.mxu0 0.0
      %3138 = vmatpush1.msra.mxu0 0.0
      %3139 = vmatprep.subr.mxu0 0.0
      %3140 = vmatpush1.msra.mxu0 0.0
      %3141 = vmatprep.subr.mxu0 0.0
      %3142 = vmatpush1.msra.mxu0 0.0
      %3143 = vmatprep.subr.mxu0 0.0
      %3144 = vmatpush1.msra.mxu0 0.0
      %3145 = vmatprep.subr.mxu0 0.0
      %3146 = vmatpush1.msra.mxu0 0.0
      %3147 = vmatprep.subr.mxu0 0.0
      %3148 = vmatpush1.msra.mxu0 0.0
      %3149 = vmatprep.subr.mxu0 0.0
      %3150 = vmatpush1.msra.mxu0 0.0
      %3151 = vmatprep.subr.mxu0 0.0
      %3152 = vmatpush1.msra.mxu0 0.0
      %3153 = vmatprep.mubr.f32.mxu0 0.0
      %3154 = vmatmul.mubr.f32.gmra.mrb[0].mxu0 %v2994
      %v3155 = vpop.f32.mrb[0].mxu0
      %v3156 = vadd.f32 0.0, %v3155
      %v3157 = vpop.f32.mrb[0].mxu0
      %3158 = vmatprep.mubr.f32.mxu0 0.0
      %3159 = vmatmul.mubr.f32.gmra.mrb[0].mxu0 %v2997
      %v3160 = vpop.f32.mrb[0].mxu0
      %v3161 = vadd.f32 0.0, %v3160
      %v3162 = vpop.f32.mrb[0].mxu0
      %3163 = vmatprep.mubr.f32.mxu0 0.0
      %3164 = vmatmul.mubr.f32.gmra.mrb[0].mxu0 %v3000
      %v3165 = vpop.f32.mrb[0].mxu0
      %v3166 = vadd.f32 0.0, %v3165
      %v3167 = vpop.f32.mrb[0].mxu0
      %3168 = vmatprep.mubr.f32.mxu0 0.0
      %3169 = vmatmul.mubr.f32.gmra.mrb[0].mxu0 %v3003
      %v3170 = vpop.f32.mrb[0].mxu0
      %v3171 = vadd.f32 0.0, %v3170
      %v3172 = vpop.f32.mrb[0].mxu0
      %3173 = vmatprep.mubr.f32.mxu0 0.0
      %3174 = vmatmul.mubr.f32.gmra.mrb[0].mxu0 %v3006
      %v3175 = vpop.f32.mrb[0].mxu0
      %v3176 = vadd.f32 0.0, %v3175
      %v3177 = vpop.f32.mrb[0].mxu0
      %3178 = vmatprep.mubr.f32.mxu0 0.0
      %3179 = vmatmul.mubr.f32.gmra.mrb[0].mxu0 %v3009
      %v3180 = vpop.f32.mrb[0].mxu0
      %v3181 = vadd.f32 0.0, %v3180
      %v3182 = vpop.f32.mrb[0].mxu0
      %3183 = vmatprep.mubr.f32.mxu0 0.0
      %3184 = vmatmul.mubr.f32.gmra.mrb[0].mxu0 %v3012
      %v3185 = vpop.f32.mrb[0].mxu0
      %v3186 = vadd.f32 0.0, %v3185
      %v3187 = vpop.f32.mrb[0].mxu0
      %3188 = vmatprep.mubr.f32.mxu0 0.0
      %3189 = vmatmul.mubr.f32.gmra.mrb[0].mxu0 %v3015
      %v3190 = vpop.f32.mrb[0].mxu0
      %v3191 = vadd.f32 0.0, %v3190
      %v3192 = vpop.f32.mrb[0].mxu0
      %3193 = vmatprep.mubr.f32.mxu0 0.0
      %3194 = vmatmul.mubr.f32.gmra.mrb[0].mxu0 %v3018
      %v3195 = vpop.f32.mrb[0].mxu0
      %v3196 = vadd.f32 0.0, %v3195
      %v3197 = vpop.f32.mrb[0].mxu0
      %3198 = vmatprep.mubr.f32.mxu0 0.0
      %3199 = vmatmul.mubr.f32.gmra.mrb[0].mxu0 %v3021
      %v3200 = vpop.f32.mrb[0].mxu0
      %v3201 = vadd.f32 0.0, %v3200
      %v3202 = vpop.f32.mrb[0].mxu0
      %3203 = vmatprep.mubr.f32.mxu0 0.0
      %3204 = vmatmul.mubr.f32.gmra.mrb[0].mxu0 %v3024
      %v3205 = vpop.f32.mrb[0].mxu0
      %v3206 = vadd.f32 0.0, %v3205
      %v3207 = vpop.f32.mrb[0].mxu0
      %3208 = vmatprep.mubr.f32.mxu0 0.0
      %3209 = vmatmul.mubr.f32.gmra.mrb[0].mxu0 %v3027
      %v3210 = vpop.f32.mrb[0].mxu0
      %v3211 = vadd.f32 0.0, %v3210
      %v3212 = vpop.f32.mrb[0].mxu0
      %3213 = vmatprep.mubr.f32.mxu0 0.0
      %3214 = vmatmul.mubr.f32.gmra.mrb[0].mxu0 %v3030
      %v3215 = vpop.f32.mrb[0].mxu0
      %v3216 = vadd.f32 0.0, %v3215
      %v3217 = vpop.f32.mrb[0].mxu0
      %3218 = vmatprep.mubr.f32.mxu0 0.0
      %3219 = vmatmul.mubr.f32.gmra.mrb[0].mxu0 %v3033
      %v3220 = vpop.f32.mrb[0].mxu0
      %v3221 = vadd.f32 0.0, %v3220
      %v3222 = vpop.f32.mrb[0].mxu0
      %3223 = vmatprep.mubr.f32.mxu0 0.0
      %3224 = vmatmul.mubr.f32.gmra.mrb[0].mxu0 %v3036
      %v3225 = vpop.f32.mrb[0].mxu0
      %v3226 = vadd.f32 0.0, %v3225
      %v3227 = vpop.f32.mrb[0].mxu0
      %3228 = vmatprep.mubr.f32.mxu0 0.0
      %3229 = vmatmul.mubr.f32.gmra.mrb[0].mxu0 %v3039
      %v3230 = vpop.f32.mrb[0].mxu0
      %v3231 = vadd.f32 0.0, %v3230
      %v3232 = vpop.f32.mrb[0].mxu0
      %3233 = vmatprep.mubr.f32.mxu0 0.0
      %3234 = vmatmul.mubr.f32.gmra.mrb[0].mxu0 %v3042
      %v3235 = vpop.f32.mrb[0].mxu0
      %v3236 = vadd.f32 0.0, %v3235
      %v3237 = vpop.f32.mrb[0].mxu0
      %3238 = vmatprep.mubr.f32.mxu0 0.0
      %3239 = vmatmul.mubr.f32.gmra.mrb[0].mxu0 %v3045
      %v3240 = vpop.f32.mrb[0].mxu0
      %v3241 = vadd.f32 0.0, %v3240
      %v3242 = vpop.f32.mrb[0].mxu0
      %3243 = vmatprep.mubr.f32.mxu0 0.0
      %3244 = vmatmul.mubr.f32.gmra.mrb[0].mxu0 %v3048
      %v3245 = vpop.f32.mrb[0].mxu0
      %v3246 = vadd.f32 0.0, %v3245
      %v3247 = vpop.f32.mrb[0].mxu0
      %3248 = vmatprep.mubr.f32.mxu0 0.0
      %3249 = vmatmul.mubr.f32.gmra.mrb[0].mxu0 %v3051
      %v3250 = vpop.f32.mrb[0].mxu0
      %v3251 = vadd.f32 0.0, %v3250
      %v3252 = vpop.f32.mrb[0].mxu0
      %3253 = vmatprep.mubr.f32.mxu0 0.0
      %3254 = vmatmul.mubr.f32.gmra.mrb[0].mxu0 %v3054
      %v3255 = vpop.f32.mrb[0].mxu0
      %v3256 = vadd.f32 0.0, %v3255
      %v3257 = vpop.f32.mrb[0].mxu0
      %3258 = vmatprep.mubr.f32.mxu0 0.0
      %3259 = vmatmul.mubr.f32.gmra.mrb[0].mxu0 %v3057
      %v3260 = vpop.f32.mrb[0].mxu0
      %v3261 = vadd.f32 0.0, %v3260
      %v3262 = vpop.f32.mrb[0].mxu0
      %3263 = vmatprep.mubr.f32.mxu0 0.0
      %3264 = vmatmul.mubr.f32.gmra.mrb[0].mxu0 %v3060
      %v3265 = vpop.f32.mrb[0].mxu0
      %v3266 = vadd.f32 0.0, %v3265
      %v3267 = vpop.f32.mrb[0].mxu0
      %3268 = vmatprep.mubr.f32.mxu0 0.0
      %3269 = vmatmul.mubr.f32.gmra.mrb[0].mxu0 %v3063
      %v3270 = vpop.f32.mrb[0].mxu0
      %v3271 = vadd.f32 0.0, %v3270
      %v3272 = vpop.f32.mrb[0].mxu0
      %3273 = vmatprep.mubr.f32.mxu0 0.0
      %3274 = vmatmul.mubr.f32.gmra.mrb[0].mxu0 %v3066
      %v3275 = vpop.f32.mrb[0].mxu0
      %v3276 = vadd.f32 0.0, %v3275
      %v3277 = vpop.f32.mrb[0].mxu0
      %3278 = vmatprep.mubr.f32.mxu0 0.0
      %3279 = vmatmul.mubr.f32.gmra.mrb[0].mxu0 %v3069
      %v3280 = vpop.f32.mrb[0].mxu0
      %v3281 = vadd.f32 0.0, %v3280
      %v3282 = vpop.f32.mrb[0].mxu0
      %3283 = vmatprep.mubr.f32.mxu0 0.0
      %3284 = vmatmul.mubr.f32.gmra.mrb[0].mxu0 %v3072
      %v3285 = vpop.f32.mrb[0].mxu0
      %v3286 = vadd.f32 0.0, %v3285
      %v3287 = vpop.f32.mrb[0].mxu0
      %3288 = vmatprep.mubr.f32.mxu0 0.0
      %3289 = vmatmul.mubr.f32.gmra.mrb[0].mxu0 %v3075
      %v3290 = vpop.f32.mrb[0].mxu0
      %v3291 = vadd.f32 0.0, %v3290
      %v3292 = vpop.f32.mrb[0].mxu0
      %3293 = vmatprep.mubr.f32.mxu0 0.0
      %3294 = vmatmul.mubr.f32.gmra.mrb[0].mxu0 %v3078
      %v3295 = vpop.f32.mrb[0].mxu0
      %v3296 = vadd.f32 0.0, %v3295
      %v3297 = vpop.f32.mrb[0].mxu0
      %3298 = vmatprep.mubr.f32.mxu0 0.0
      %3299 = vmatmul.mubr.f32.gmra.mrb[0].mxu0 %v3081
      %v3300 = vpop.f32.mrb[0].mxu0
      %v3301 = vadd.f32 0.0, %v3300
      %v3302 = vpop.f32.mrb[0].mxu0
      %3303 = vmatprep.mubr.f32.mxu0 0.0
      %3304 = vmatmul.mubr.f32.gmra.mrb[0].mxu0 %v3084
      %v3305 = vpop.f32.mrb[0].mxu0
      %v3306 = vadd.f32 0.0, %v3305
      %v3307 = vpop.f32.mrb[0].mxu0
      %3308 = vmatprep.mubr.f32.mxu0 0.0
      %3309 = vmatmul.mubr.f32.gmra.mrb[0].mxu0 %v3087
      %v3310 = vpop.f32.mrb[0].mxu0
      %v3311 = vadd.f32 0.0, %v3310
      %v3312 = vpop.f32.mrb[0].mxu0
      %3313 = vdwg.mxu0
      %v3314 = vadd.f32 %v2799, %v3156
      %v3315 = vadd.f32 %v2800, %v3161
      %v3316 = vadd.f32 %v2801, %v3166
      %v3317 = vadd.f32 %v2802, %v3171
      %v3318 = vadd.f32 %v2803, %v3176
      %v3319 = vadd.f32 %v2804, %v3181
      %v3320 = vadd.f32 %v2805, %v3186
      %v3321 = vadd.f32 %v2806, %v3191
      %v3322 = vadd.f32 %v2807, %v3196
      %v3323 = vadd.f32 %v2808, %v3201
      %v3324 = vadd.f32 %v2809, %v3206
      %v3325 = vadd.f32 %v2810, %v3211
      %v3326 = vadd.f32 %v2811, %v3216
      %v3327 = vadd.f32 %v2812, %v3221
      %v3328 = vadd.f32 %v2813, %v3226
      %v3329 = vadd.f32 %v2814, %v3231
      %v3330 = vadd.f32 %v2815, %v3236
      %v3331 = vadd.f32 %v2816, %v3241
      %v3332 = vadd.f32 %v2817, %v3246
      %v3333 = vadd.f32 %v2818, %v3251
      %v3334 = vadd.f32 %v2819, %v3256
      %v3335 = vadd.f32 %v2820, %v3261
      %v3336 = vadd.f32 %v2821, %v3266
      %v3337 = vadd.f32 %v2822, %v3271
      %v3338 = vadd.f32 %v2823, %v3276
      %v3339 = vadd.f32 %v2824, %v3281
      %v3340 = vadd.f32 %v2825, %v3286
      %v3341 = vadd.f32 %v2826, %v3291
      %v3342 = vadd.f32 %v2827, %v3296
      %v3343 = vadd.f32 %v2828, %v3301
      %v3344 = vadd.f32 %v2829, %v3306
      %v3345 = vadd.f32 %v2830, %v3311
      %v3346 = vld [vmem:[#allocation2 + $0x1] sm:$0xff]
      %v3347 = vld [vmem:[#allocation2 + $0x9] sm:$0xff]
      %v3348 = vld [vmem:[#allocation2 + $0x11] sm:$0xff]
      %v3349 = vld [vmem:[#allocation2 + $0x19] sm:$0xff]
      %v3350 = vld [vmem:[#allocation2 + $0x21] sm:$0xff]
      %v3351 = vld [vmem:[#allocation2 + $0x29] sm:$0xff]
      %v3352 = vld [vmem:[#allocation2 + $0x31] sm:$0xff]
      %v3353 = vld [vmem:[#allocation2 + $0x39] sm:$0xff]
      %v3354 = vld [vmem:[#allocation2 + $0x41] sm:$0xff]
      %v3355 = vld [vmem:[#allocation2 + $0x49] sm:$0xff]
      %v3356 = vld [vmem:[#allocation2 + $0x51] sm:$0xff]
      %v3357 = vld [vmem:[#allocation2 + $0x59] sm:$0xff]
      %v3358 = vld [vmem:[#allocation2 + $0x61] sm:$0xff]
      %v3359 = vld [vmem:[#allocation2 + $0x69] sm:$0xff]
      %v3360 = vld [vmem:[#allocation2 + $0x71] sm:$0xff]
      %v3361 = vld [vmem:[#allocation2 + $0x79] sm:$0xff]
      %v3362 = vld [vmem:[#allocation2 + $0x81] sm:$0xff]
      %v3363 = vld [vmem:[#allocation2 + $0x89] sm:$0xff]
      %v3364 = vld [vmem:[#allocation2 + $0x91] sm:$0xff]
      %v3365 = vld [vmem:[#allocation2 + $0x99] sm:$0xff]
      %v3366 = vld [vmem:[#allocation2 + $0xa1] sm:$0xff]
      %v3367 = vld [vmem:[#allocation2 + $0xa9] sm:$0xff]
      %v3368 = vld [vmem:[#allocation2 + $0xb1] sm:$0xff]
      %v3369 = vld [vmem:[#allocation2 + $0xb9] sm:$0xff]
      %v3370 = vld [vmem:[#allocation2 + $0xc1] sm:$0xff]
      %v3371 = vld [vmem:[#allocation2 + $0xc9] sm:$0xff]
      %v3372 = vld [vmem:[#allocation2 + $0xd1] sm:$0xff]
      %v3373 = vld [vmem:[#allocation2 + $0xd9] sm:$0xff]
      %v3374 = vld [vmem:[#allocation2 + $0xe1] sm:$0xff]
      %v3375 = vld [vmem:[#allocation2 + $0xe9] sm:$0xff]
      %v3376 = vld [vmem:[#allocation2 + $0xf1] sm:$0xff]
      %v3377 = vld [vmem:[#allocation2 + $0xf9] sm:$0xff]
      %3378 = vrot.lane.b32.xlu0 %v900, 88
      %v3379 = vpop.permute.xlu0 %3378
      %3380 = vrot.lane.b32.xlu0 %v901, 88
      %v3381 = vpop.permute.xlu0 %3380
      %3382 = vrot.lane.b32.xlu0 %v902, 88
      %v3383 = vpop.permute.xlu0 %3382
      %3384 = vrot.lane.b32.xlu0 %v903, 88
      %v3385 = vpop.permute.xlu0 %3384
      %3386 = vrot.lane.b32.xlu0 %v904, 88
      %v3387 = vpop.permute.xlu0 %3386
      %3388 = vrot.lane.b32.xlu0 %v905, 88
      %v3389 = vpop.permute.xlu0 %3388
      %3390 = vrot.lane.b32.xlu0 %v906, 88
      %v3391 = vpop.permute.xlu0 %3390
      %3392 = vrot.lane.b32.xlu0 %v907, 88
      %v3393 = vpop.permute.xlu0 %3392
      %3394 = vrot.lane.b32.xlu0 %v908, 88
      %v3395 = vpop.permute.xlu0 %3394
      %3396 = vrot.lane.b32.xlu0 %v909, 88
      %v3397 = vpop.permute.xlu0 %3396
      %3398 = vrot.lane.b32.xlu0 %v910, 88
      %v3399 = vpop.permute.xlu0 %3398
      %3400 = vrot.lane.b32.xlu0 %v911, 88
      %v3401 = vpop.permute.xlu0 %3400
      %3402 = vrot.lane.b32.xlu0 %v912, 88
      %v3403 = vpop.permute.xlu0 %3402
      %3404 = vrot.lane.b32.xlu0 %v913, 88
      %v3405 = vpop.permute.xlu0 %3404
      %3406 = vrot.lane.b32.xlu0 %v914, 88
      %v3407 = vpop.permute.xlu0 %3406
      %3408 = vrot.lane.b32.xlu0 %v915, 88
      %v3409 = vpop.permute.xlu0 %3408
      %3410 = vrot.lane.b32.xlu0 %v916, 88
      %v3411 = vpop.permute.xlu0 %3410
      %3412 = vrot.lane.b32.xlu0 %v917, 88
      %v3413 = vpop.permute.xlu0 %3412
      %3414 = vrot.lane.b32.xlu0 %v918, 88
      %v3415 = vpop.permute.xlu0 %3414
      %3416 = vrot.lane.b32.xlu0 %v919, 88
      %v3417 = vpop.permute.xlu0 %3416
      %3418 = vrot.lane.b32.xlu0 %v920, 88
      %v3419 = vpop.permute.xlu0 %3418
      %3420 = vrot.lane.b32.xlu0 %v921, 88
      %v3421 = vpop.permute.xlu0 %3420
      %3422 = vrot.lane.b32.xlu0 %v922, 88
      %v3423 = vpop.permute.xlu0 %3422
      %3424 = vrot.lane.b32.xlu0 %v923, 88
      %v3425 = vpop.permute.xlu0 %3424
      %3426 = vrot.lane.b32.xlu0 %v924, 88
      %v3427 = vpop.permute.xlu0 %3426
      %3428 = vrot.lane.b32.xlu0 %v925, 88
      %v3429 = vpop.permute.xlu0 %3428
      %3430 = vrot.lane.b32.xlu0 %v926, 88
      %v3431 = vpop.permute.xlu0 %3430
      %3432 = vrot.lane.b32.xlu0 %v927, 88
      %v3433 = vpop.permute.xlu0 %3432
      %3434 = vrot.lane.b32.xlu0 %v928, 88
      %v3435 = vpop.permute.xlu0 %3434
      %3436 = vrot.lane.b32.xlu0 %v929, 88
      %v3437 = vpop.permute.xlu0 %3436
      %3438 = vrot.lane.b32.xlu0 %v930, 88
      %v3439 = vpop.permute.xlu0 %3438
      %3440 = vrot.lane.b32.xlu0 %v931, 88
      %v3441 = vpop.permute.xlu0 %3440
      %v3474 = vmul.f32 %v3346, %v3379
      %v3475 = vmul.f32 %v3347, %v3381
      %v3476 = vmul.f32 %v3348, %v3383
      %v3477 = vmul.f32 %v3349, %v3385
      %v3478 = vmul.f32 %v3350, %v3387
      %v3479 = vmul.f32 %v3351, %v3389
      %v3480 = vmul.f32 %v3352, %v3391
      %v3481 = vmul.f32 %v3353, %v3393
      %v3482 = vmul.f32 %v3354, %v3395
      %v3483 = vmul.f32 %v3355, %v3397
      %v3484 = vmul.f32 %v3356, %v3399
      %v3485 = vmul.f32 %v3357, %v3401
      %v3486 = vmul.f32 %v3358, %v3403
      %v3487 = vmul.f32 %v3359, %v3405
      %v3488 = vmul.f32 %v3360, %v3407
      %v3489 = vmul.f32 %v3361, %v3409
      %v3490 = vmul.f32 %v3362, %v3411
      %v3491 = vmul.f32 %v3363, %v3413
      %v3492 = vmul.f32 %v3364, %v3415
      %v3493 = vmul.f32 %v3365, %v3417
      %v3494 = vmul.f32 %v3366, %v3419
      %v3495 = vmul.f32 %v3367, %v3421
      %v3496 = vmul.f32 %v3368, %v3423
      %v3497 = vmul.f32 %v3369, %v3425
      %v3498 = vmul.f32 %v3370, %v3427
      %v3499 = vmul.f32 %v3371, %v3429
      %v3500 = vmul.f32 %v3372, %v3431
      %v3501 = vmul.f32 %v3373, %v3433
      %v3502 = vmul.f32 %v3374, %v3435
      %v3503 = vmul.f32 %v3375, %v3437
      %v3504 = vmul.f32 %v3376, %v3439
      %v3505 = vmul.f32 %v3377, %v3441
      %s3506 = scalar_lea.vmem %s4, 40
      %v3507 = vld [vmem:[%s3506] sm:$0xff]
      %v3509 = vsel %vm803, %v3474, 0
      %v3512 = vsel %vm803, %v3475, 0
      %v3515 = vsel %vm803, %v3476, 0
      %v3518 = vsel %vm803, %v3477, 0
      %v3521 = vsel %vm803, %v3478, 0
      %v3524 = vsel %vm803, %v3479, 0
      %v3527 = vsel %vm803, %v3480, 0
      %v3530 = vsel %vm803, %v3481, 0
      %v3533 = vsel %vm803, %v3482, 0
      %v3536 = vsel %vm803, %v3483, 0
      %v3539 = vsel %vm803, %v3484, 0
      %v3542 = vsel %vm803, %v3485, 0
      %v3545 = vsel %vm803, %v3486, 0
      %v3548 = vsel %vm803, %v3487, 0
      %v3551 = vsel %vm803, %v3488, 0
      %v3554 = vsel %vm803, %v3489, 0
      %v3557 = vsel %vm803, %v3490, 0
      %v3560 = vsel %vm803, %v3491, 0
      %v3563 = vsel %vm803, %v3492, 0
      %v3566 = vsel %vm803, %v3493, 0
      %v3569 = vsel %vm803, %v3494, 0
      %v3572 = vsel %vm803, %v3495, 0
      %v3575 = vsel %vm803, %v3496, 0
      %v3578 = vsel %vm803, %v3497, 0
      %v3581 = vsel %vm803, %v3498, 0
      %v3584 = vsel %vm803, %v3499, 0
      %v3587 = vsel %vm803, %v3500, 0
      %v3590 = vsel %vm803, %v3501, 0
      %v3593 = vsel %vm803, %v3502, 0
      %v3596 = vsel %vm803, %v3503, 0
      %v3599 = vsel %vm803, %v3504, 0
      %v3602 = vsel %vm803, %v3505, 0
      %3604 = vmatprep.subr.mxu0 0.0
      %3605 = vmatpush1.msra.mxu0 %v3507
      %3606 = vmatprep.subr.mxu0 0.0
      %3607 = vmatpush1.msra.mxu0 0.0
      %3608 = vmatprep.subr.mxu0 0.0
      %3609 = vmatpush1.msra.mxu0 0.0
      %3610 = vmatprep.subr.mxu0 0.0
      %3611 = vmatpush1.msra.mxu0 0.0
      %3612 = vmatprep.subr.mxu0 0.0
      %3613 = vmatpush1.msra.mxu0 0.0
      %3614 = vmatprep.subr.mxu0 0.0
      %3615 = vmatpush1.msra.mxu0 0.0
      %3616 = vmatprep.subr.mxu0 0.0
      %3617 = vmatpush1.msra.mxu0 0.0
      %3618 = vmatprep.subr.mxu0 0.0
      %3619 = vmatpush1.msra.mxu0 0.0
      %3620 = vmatprep.subr.mxu0 0.0
      %3621 = vmatpush1.msra.mxu0 0.0
      %3622 = vmatprep.subr.mxu0 0.0
      %3623 = vmatpush1.msra.mxu0 0.0
      %3624 = vmatprep.subr.mxu0 0.0
      %3625 = vmatpush1.msra.mxu0 0.0
      %3626 = vmatprep.subr.mxu0 0.0
      %3627 = vmatpush1.msra.mxu0 0.0
      %3628 = vmatprep.subr.mxu0 0.0
      %3629 = vmatpush1.msra.mxu0 0.0
      %3630 = vmatprep.subr.mxu0 0.0
      %3631 = vmatpush1.msra.mxu0 0.0
      %3632 = vmatprep.subr.mxu0 0.0
      %3633 = vmatpush1.msra.mxu0 0.0
      %3634 = vmatprep.subr.mxu0 0.0
      %3635 = vmatpush1.msra.mxu0 0.0
      %3636 = vmatprep.subr.mxu0 0.0
      %3637 = vmatpush1.msra.mxu0 0.0
      %3638 = vmatprep.subr.mxu0 0.0
      %3639 = vmatpush1.msra.mxu0 0.0
      %3640 = vmatprep.subr.mxu0 0.0
      %3641 = vmatpush1.msra.mxu0 0.0
      %3642 = vmatprep.subr.mxu0 0.0
      %3643 = vmatpush1.msra.mxu0 0.0
      %3644 = vmatprep.subr.mxu0 0.0
      %3645 = vmatpush1.msra.mxu0 0.0
      %3646 = vmatprep.subr.mxu0 0.0
      %3647 = vmatpush1.msra.mxu0 0.0
      %3648 = vmatprep.subr.mxu0 0.0
      %3649 = vmatpush1.msra.mxu0 0.0
      %3650 = vmatprep.subr.mxu0 0.0
      %3651 = vmatpush1.msra.mxu0 0.0
      %3652 = vmatprep.subr.mxu0 0.0
      %3653 = vmatpush1.msra.mxu0 0.0
      %3654 = vmatprep.subr.mxu0 0.0
      %3655 = vmatpush1.msra.mxu0 0.0
      %3656 = vmatprep.subr.mxu0 0.0
      %3657 = vmatpush1.msra.mxu0 0.0
      %3658 = vmatprep.subr.mxu0 0.0
      %3659 = vmatpush1.msra.mxu0 0.0
      %3660 = vmatprep.subr.mxu0 0.0
      %3661 = vmatpush1.msra.mxu0 0.0
      %3662 = vmatprep.subr.mxu0 0.0
      %3663 = vmatpush1.msra.mxu0 0.0
      %3664 = vmatprep.subr.mxu0 0.0
      %3665 = vmatpush1.msra.mxu0 0.0
      %3666 = vmatprep.subr.mxu0 0.0
      %3667 = vmatpush1.msra.mxu0 0.0
      %3668 = vmatprep.mubr.f32.mxu0 0.0
      %3669 = vmatmul.mubr.f32.gmra.mrb[0].mxu0 %v3509
      %v3670 = vpop.f32.mrb[0].mxu0
      %v3671 = vadd.f32 0.0, %v3670
      %v3672 = vpop.f32.mrb[0].mxu0
      %3673 = vmatprep.mubr.f32.mxu0 0.0
      %3674 = vmatmul.mubr.f32.gmra.mrb[0].mxu0 %v3512
      %v3675 = vpop.f32.mrb[0].mxu0
      %v3676 = vadd.f32 0.0, %v3675
      %v3677 = vpop.f32.mrb[0].mxu0
      %3678 = vmatprep.mubr.f32.mxu0 0.0
      %3679 = vmatmul.mubr.f32.gmra.mrb[0].mxu0 %v3515
      %v3680 = vpop.f32.mrb[0].mxu0
      %v3681 = vadd.f32 0.0, %v3680
      %v3682 = vpop.f32.mrb[0].mxu0
      %3683 = vmatprep.mubr.f32.mxu0 0.0
      %3684 = vmatmul.mubr.f32.gmra.mrb[0].mxu0 %v3518
      %v3685 = vpop.f32.mrb[0].mxu0
      %v3686 = vadd.f32 0.0, %v3685
      %v3687 = vpop.f32.mrb[0].mxu0
      %3688 = vmatprep.mubr.f32.mxu0 0.0
      %3689 = vmatmul.mubr.f32.gmra.mrb[0].mxu0 %v3521
      %v3690 = vpop.f32.mrb[0].mxu0
      %v3691 = vadd.f32 0.0, %v3690
      %v3692 = vpop.f32.mrb[0].mxu0
      %3693 = vmatprep.mubr.f32.mxu0 0.0
      %3694 = vmatmul.mubr.f32.gmra.mrb[0].mxu0 %v3524
      %v3695 = vpop.f32.mrb[0].mxu0
      %v3696 = vadd.f32 0.0, %v3695
      %v3697 = vpop.f32.mrb[0].mxu0
      %3698 = vmatprep.mubr.f32.mxu0 0.0
      %3699 = vmatmul.mubr.f32.gmra.mrb[0].mxu0 %v3527
      %v3700 = vpop.f32.mrb[0].mxu0
      %v3701 = vadd.f32 0.0, %v3700
      %v3702 = vpop.f32.mrb[0].mxu0
      %3703 = vmatprep.mubr.f32.mxu0 0.0
      %3704 = vmatmul.mubr.f32.gmra.mrb[0].mxu0 %v3530
      %v3705 = vpop.f32.mrb[0].mxu0
      %v3706 = vadd.f32 0.0, %v3705
      %v3707 = vpop.f32.mrb[0].mxu0
      %3708 = vmatprep.mubr.f32.mxu0 0.0
      %3709 = vmatmul.mubr.f32.gmra.mrb[0].mxu0 %v3533
      %v3710 = vpop.f32.mrb[0].mxu0
      %v3711 = vadd.f32 0.0, %v3710
      %v3712 = vpop.f32.mrb[0].mxu0
      %3713 = vmatprep.mubr.f32.mxu0 0.0
      %3714 = vmatmul.mubr.f32.gmra.mrb[0].mxu0 %v3536
      %v3715 = vpop.f32.mrb[0].mxu0
      %v3716 = vadd.f32 0.0, %v3715
      %v3717 = vpop.f32.mrb[0].mxu0
      %3718 = vmatprep.mubr.f32.mxu0 0.0
      %3719 = vmatmul.mubr.f32.gmra.mrb[0].mxu0 %v3539
      %v3720 = vpop.f32.mrb[0].mxu0
      %v3721 = vadd.f32 0.0, %v3720
      %v3722 = vpop.f32.mrb[0].mxu0
      %3723 = vmatprep.mubr.f32.mxu0 0.0
      %3724 = vmatmul.mubr.f32.gmra.mrb[0].mxu0 %v3542
      %v3725 = vpop.f32.mrb[0].mxu0
      %v3726 = vadd.f32 0.0, %v3725
      %v3727 = vpop.f32.mrb[0].mxu0
      %3728 = vmatprep.mubr.f32.mxu0 0.0
      %3729 = vmatmul.mubr.f32.gmra.mrb[0].mxu0 %v3545
      %v3730 = vpop.f32.mrb[0].mxu0
      %v3731 = vadd.f32 0.0, %v3730
      %v3732 = vpop.f32.mrb[0].mxu0
      %3733 = vmatprep.mubr.f32.mxu0 0.0
      %3734 = vmatmul.mubr.f32.gmra.mrb[0].mxu0 %v3548
      %v3735 = vpop.f32.mrb[0].mxu0
      %v3736 = vadd.f32 0.0, %v3735
      %v3737 = vpop.f32.mrb[0].mxu0
      %3738 = vmatprep.mubr.f32.mxu0 0.0
      %3739 = vmatmul.mubr.f32.gmra.mrb[0].mxu0 %v3551
      %v3740 = vpop.f32.mrb[0].mxu0
      %v3741 = vadd.f32 0.0, %v3740
      %v3742 = vpop.f32.mrb[0].mxu0
      %3743 = vmatprep.mubr.f32.mxu0 0.0
      %3744 = vmatmul.mubr.f32.gmra.mrb[0].mxu0 %v3554
      %v3745 = vpop.f32.mrb[0].mxu0
      %v3746 = vadd.f32 0.0, %v3745
      %v3747 = vpop.f32.mrb[0].mxu0
      %3748 = vmatprep.mubr.f32.mxu0 0.0
      %3749 = vmatmul.mubr.f32.gmra.mrb[0].mxu0 %v3557
      %v3750 = vpop.f32.mrb[0].mxu0
      %v3751 = vadd.f32 0.0, %v3750
      %v3752 = vpop.f32.mrb[0].mxu0
      %3753 = vmatprep.mubr.f32.mxu0 0.0
      %3754 = vmatmul.mubr.f32.gmra.mrb[0].mxu0 %v3560
      %v3755 = vpop.f32.mrb[0].mxu0
      %v3756 = vadd.f32 0.0, %v3755
      %v3757 = vpop.f32.mrb[0].mxu0
      %3758 = vmatprep.mubr.f32.mxu0 0.0
      %3759 = vmatmul.mubr.f32.gmra.mrb[0].mxu0 %v3563
      %v3760 = vpop.f32.mrb[0].mxu0
      %v3761 = vadd.f32 0.0, %v3760
      %v3762 = vpop.f32.mrb[0].mxu0
      %3763 = vmatprep.mubr.f32.mxu0 0.0
      %3764 = vmatmul.mubr.f32.gmra.mrb[0].mxu0 %v3566
      %v3765 = vpop.f32.mrb[0].mxu0
      %v3766 = vadd.f32 0.0, %v3765
      %v3767 = vpop.f32.mrb[0].mxu0
      %3768 = vmatprep.mubr.f32.mxu0 0.0
      %3769 = vmatmul.mubr.f32.gmra.mrb[0].mxu0 %v3569
      %v3770 = vpop.f32.mrb[0].mxu0
      %v3771 = vadd.f32 0.0, %v3770
      %v3772 = vpop.f32.mrb[0].mxu0
      %3773 = vmatprep.mubr.f32.mxu0 0.0
      %3774 = vmatmul.mubr.f32.gmra.mrb[0].mxu0 %v3572
      %v3775 = vpop.f32.mrb[0].mxu0
      %v3776 = vadd.f32 0.0, %v3775
      %v3777 = vpop.f32.mrb[0].mxu0
      %3778 = vmatprep.mubr.f32.mxu0 0.0
      %3779 = vmatmul.mubr.f32.gmra.mrb[0].mxu0 %v3575
      %v3780 = vpop.f32.mrb[0].mxu0
      %v3781 = vadd.f32 0.0, %v3780
      %v3782 = vpop.f32.mrb[0].mxu0
      %3783 = vmatprep.mubr.f32.mxu0 0.0
      %3784 = vmatmul.mubr.f32.gmra.mrb[0].mxu0 %v3578
      %v3785 = vpop.f32.mrb[0].mxu0
      %v3786 = vadd.f32 0.0, %v3785
      %v3787 = vpop.f32.mrb[0].mxu0
      %3788 = vmatprep.mubr.f32.mxu0 0.0
      %3789 = vmatmul.mubr.f32.gmra.mrb[0].mxu0 %v3581
      %v3790 = vpop.f32.mrb[0].mxu0
      %v3791 = vadd.f32 0.0, %v3790
      %v3792 = vpop.f32.mrb[0].mxu0
      %3793 = vmatprep.mubr.f32.mxu0 0.0
      %3794 = vmatmul.mubr.f32.gmra.mrb[0].mxu0 %v3584
      %v3795 = vpop.f32.mrb[0].mxu0
      %v3796 = vadd.f32 0.0, %v3795
      %v3797 = vpop.f32.mrb[0].mxu0
      %3798 = vmatprep.mubr.f32.mxu0 0.0
      %3799 = vmatmul.mubr.f32.gmra.mrb[0].mxu0 %v3587
      %v3800 = vpop.f32.mrb[0].mxu0
      %v3801 = vadd.f32 0.0, %v3800
      %v3802 = vpop.f32.mrb[0].mxu0
      %3803 = vmatprep.mubr.f32.mxu0 0.0
      %3804 = vmatmul.mubr.f32.gmra.mrb[0].mxu0 %v3590
      %v3805 = vpop.f32.mrb[0].mxu0
      %v3806 = vadd.f32 0.0, %v3805
      %v3807 = vpop.f32.mrb[0].mxu0
      %3808 = vmatprep.mubr.f32.mxu0 0.0
      %3809 = vmatmul.mubr.f32.gmra.mrb[0].mxu0 %v3593
      %v3810 = vpop.f32.mrb[0].mxu0
      %v3811 = vadd.f32 0.0, %v3810
      %v3812 = vpop.f32.mrb[0].mxu0
      %3813 = vmatprep.mubr.f32.mxu0 0.0
      %3814 = vmatmul.mubr.f32.gmra.mrb[0].mxu0 %v3596
      %v3815 = vpop.f32.mrb[0].mxu0
      %v3816 = vadd.f32 0.0, %v3815
      %v3817 = vpop.f32.mrb[0].mxu0
      %3818 = vmatprep.mubr.f32.mxu0 0.0
      %3819 = vmatmul.mubr.f32.gmra.mrb[0].mxu0 %v3599
      %v3820 = vpop.f32.mrb[0].mxu0
      %v3821 = vadd.f32 0.0, %v3820
      %v3822 = vpop.f32.mrb[0].mxu0
      %3823 = vmatprep.mubr.f32.mxu0 0.0
      %3824 = vmatmul.mubr.f32.gmra.mrb[0].mxu0 %v3602
      %v3825 = vpop.f32.mrb[0].mxu0
      %v3826 = vadd.f32 0.0, %v3825
      %v3827 = vpop.f32.mrb[0].mxu0
      %3828 = vdwg.mxu0
      %v3829 = vadd.f32 %v3314, %v3671
      %v3830 = vadd.f32 %v3315, %v3676
      %v3831 = vadd.f32 %v3316, %v3681
      %v3832 = vadd.f32 %v3317, %v3686
      %v3833 = vadd.f32 %v3318, %v3691
      %v3834 = vadd.f32 %v3319, %v3696
      %v3835 = vadd.f32 %v3320, %v3701
      %v3836 = vadd.f32 %v3321, %v3706
      %v3837 = vadd.f32 %v3322, %v3711
      %v3838 = vadd.f32 %v3323, %v3716
      %v3839 = vadd.f32 %v3324, %v3721
      %v3840 = vadd.f32 %v3325, %v3726
      %v3841 = vadd.f32 %v3326, %v3731
      %v3842 = vadd.f32 %v3327, %v3736
      %v3843 = vadd.f32 %v3328, %v3741
      %v3844 = vadd.f32 %v3329, %v3746
      %v3845 = vadd.f32 %v3330, %v3751
      %v3846 = vadd.f32 %v3331, %v3756
      %v3847 = vadd.f32 %v3332, %v3761
      %v3848 = vadd.f32 %v3333, %v3766
      %v3849 = vadd.f32 %v3334, %v3771
      %v3850 = vadd.f32 %v3335, %v3776
      %v3851 = vadd.f32 %v3336, %v3781
      %v3852 = vadd.f32 %v3337, %v3786
      %v3853 = vadd.f32 %v3338, %v3791
      %v3854 = vadd.f32 %v3339, %v3796
      %v3855 = vadd.f32 %v3340, %v3801
      %v3856 = vadd.f32 %v3341, %v3806
      %v3857 = vadd.f32 %v3342, %v3811
      %v3858 = vadd.f32 %v3343, %v3816
      %v3859 = vadd.f32 %v3344, %v3821
      %v3860 = vadd.f32 %v3345, %v3826
      %v3861 = vld [vmem:[#allocation2 + $0xf] sm:$0xff]
      %v3862 = vld [vmem:[#allocation2 + $0x17] sm:$0xff]
      %v3863 = vld [vmem:[#allocation2 + $0x1f] sm:$0xff]
      %v3864 = vld [vmem:[#allocation2 + $0x27] sm:$0xff]
      %v3865 = vld [vmem:[#allocation2 + $0x2f] sm:$0xff]
      %v3866 = vld [vmem:[#allocation2 + $0x37] sm:$0xff]
      %v3867 = vld [vmem:[#allocation2 + $0x3f] sm:$0xff]
      %v3868 = vld [vmem:[#allocation2 + $0x47] sm:$0xff]
      %v3869 = vld [vmem:[#allocation2 + $0x4f] sm:$0xff]
      %v3870 = vld [vmem:[#allocation2 + $0x57] sm:$0xff]
      %v3871 = vld [vmem:[#allocation2 + $0x5f] sm:$0xff]
      %v3872 = vld [vmem:[#allocation2 + $0x67] sm:$0xff]
      %v3873 = vld [vmem:[#allocation2 + $0x6f] sm:$0xff]
      %v3874 = vld [vmem:[#allocation2 + $0x77] sm:$0xff]
      %v3875 = vld [vmem:[#allocation2 + $0x7f] sm:$0xff]
      %v3876 = vld [vmem:[#allocation2 + $0x87] sm:$0xff]
      %v3877 = vld [vmem:[#allocation2 + $0x8f] sm:$0xff]
      %v3878 = vld [vmem:[#allocation2 + $0x97] sm:$0xff]
      %v3879 = vld [vmem:[#allocation2 + $0x9f] sm:$0xff]
      %v3880 = vld [vmem:[#allocation2 + $0xa7] sm:$0xff]
      %v3881 = vld [vmem:[#allocation2 + $0xaf] sm:$0xff]
      %v3882 = vld [vmem:[#allocation2 + $0xb7] sm:$0xff]
      %v3883 = vld [vmem:[#allocation2 + $0xbf] sm:$0xff]
      %v3884 = vld [vmem:[#allocation2 + $0xc7] sm:$0xff]
      %v3885 = vld [vmem:[#allocation2 + $0xcf] sm:$0xff]
      %v3886 = vld [vmem:[#allocation2 + $0xd7] sm:$0xff]
      %v3887 = vld [vmem:[#allocation2 + $0xdf] sm:$0xff]
      %v3888 = vld [vmem:[#allocation2 + $0xe7] sm:$0xff]
      %v3889 = vld [vmem:[#allocation2 + $0xef] sm:$0xff]
      %v3890 = vld [vmem:[#allocation2 + $0xf7] sm:$0xff]
      %v3891 = vld [vmem:[#allocation2 + $0xff] sm:$0xff]
      %v3892 = vld [vmem:[#allocation2 + $0x107] sm:$0xff]
      %3893 = vrot.lane.b32.xlu0 %v900, 80
      %v3894 = vpop.permute.xlu0 %3893
      %3895 = vrot.lane.b32.xlu0 %v901, 80
      %v3896 = vpop.permute.xlu0 %3895
      %3897 = vrot.lane.b32.xlu0 %v902, 80
      %v3898 = vpop.permute.xlu0 %3897
      %3899 = vrot.lane.b32.xlu0 %v903, 80
      %v3900 = vpop.permute.xlu0 %3899
      %3901 = vrot.lane.b32.xlu0 %v904, 80
      %v3902 = vpop.permute.xlu0 %3901
      %3903 = vrot.lane.b32.xlu0 %v905, 80
      %v3904 = vpop.permute.xlu0 %3903
      %3905 = vrot.lane.b32.xlu0 %v906, 80
      %v3906 = vpop.permute.xlu0 %3905
      %3907 = vrot.lane.b32.xlu0 %v907, 80
      %v3908 = vpop.permute.xlu0 %3907
      %3909 = vrot.lane.b32.xlu0 %v908, 80
      %v3910 = vpop.permute.xlu0 %3909
      %3911 = vrot.lane.b32.xlu0 %v909, 80
      %v3912 = vpop.permute.xlu0 %3911
      %3913 = vrot.lane.b32.xlu0 %v910, 80
      %v3914 = vpop.permute.xlu0 %3913
      %3915 = vrot.lane.b32.xlu0 %v911, 80
      %v3916 = vpop.permute.xlu0 %3915
      %3917 = vrot.lane.b32.xlu0 %v912, 80
      %v3918 = vpop.permute.xlu0 %3917
      %3919 = vrot.lane.b32.xlu0 %v913, 80
      %v3920 = vpop.permute.xlu0 %3919
      %3921 = vrot.lane.b32.xlu0 %v914, 80
      %v3922 = vpop.permute.xlu0 %3921
      %3923 = vrot.lane.b32.xlu0 %v915, 80
      %v3924 = vpop.permute.xlu0 %3923
      %3925 = vrot.lane.b32.xlu0 %v916, 80
      %v3926 = vpop.permute.xlu0 %3925
      %3927 = vrot.lane.b32.xlu0 %v917, 80
      %v3928 = vpop.permute.xlu0 %3927
      %3929 = vrot.lane.b32.xlu0 %v918, 80
      %v3930 = vpop.permute.xlu0 %3929
      %3931 = vrot.lane.b32.xlu0 %v919, 80
      %v3932 = vpop.permute.xlu0 %3931
      %3933 = vrot.lane.b32.xlu0 %v920, 80
      %v3934 = vpop.permute.xlu0 %3933
      %3935 = vrot.lane.b32.xlu0 %v921, 80
      %v3936 = vpop.permute.xlu0 %3935
      %3937 = vrot.lane.b32.xlu0 %v922, 80
      %v3938 = vpop.permute.xlu0 %3937
      %3939 = vrot.lane.b32.xlu0 %v923, 80
      %v3940 = vpop.permute.xlu0 %3939
      %3941 = vrot.lane.b32.xlu0 %v924, 80
      %v3942 = vpop.permute.xlu0 %3941
      %3943 = vrot.lane.b32.xlu0 %v925, 80
      %v3944 = vpop.permute.xlu0 %3943
      %3945 = vrot.lane.b32.xlu0 %v926, 80
      %v3946 = vpop.permute.xlu0 %3945
      %3947 = vrot.lane.b32.xlu0 %v927, 80
      %v3948 = vpop.permute.xlu0 %3947
      %3949 = vrot.lane.b32.xlu0 %v928, 80
      %v3950 = vpop.permute.xlu0 %3949
      %3951 = vrot.lane.b32.xlu0 %v929, 80
      %v3952 = vpop.permute.xlu0 %3951
      %3953 = vrot.lane.b32.xlu0 %v930, 80
      %v3954 = vpop.permute.xlu0 %3953
      %3955 = vrot.lane.b32.xlu0 %v931, 80
      %v3956 = vpop.permute.xlu0 %3955
      %v3989 = vmul.f32 %v3861, %v3894
      %v3990 = vmul.f32 %v3862, %v3896
      %v3991 = vmul.f32 %v3863, %v3898
      %v3992 = vmul.f32 %v3864, %v3900
      %v3993 = vmul.f32 %v3865, %v3902
      %v3994 = vmul.f32 %v3866, %v3904
      %v3995 = vmul.f32 %v3867, %v3906
      %v3996 = vmul.f32 %v3868, %v3908
      %v3997 = vmul.f32 %v3869, %v3910
      %v3998 = vmul.f32 %v3870, %v3912
      %v3999 = vmul.f32 %v3871, %v3914
      %v4000 = vmul.f32 %v3872, %v3916
      %v4001 = vmul.f32 %v3873, %v3918
      %v4002 = vmul.f32 %v3874, %v3920
      %v4003 = vmul.f32 %v3875, %v3922
      %v4004 = vmul.f32 %v3876, %v3924
      %v4005 = vmul.f32 %v3877, %v3926
      %v4006 = vmul.f32 %v3878, %v3928
      %v4007 = vmul.f32 %v3879, %v3930
      %v4008 = vmul.f32 %v3880, %v3932
      %v4009 = vmul.f32 %v3881, %v3934
      %v4010 = vmul.f32 %v3882, %v3936
      %v4011 = vmul.f32 %v3883, %v3938
      %v4012 = vmul.f32 %v3884, %v3940
      %v4013 = vmul.f32 %v3885, %v3942
      %v4014 = vmul.f32 %v3886, %v3944
      %v4015 = vmul.f32 %v3887, %v3946
      %v4016 = vmul.f32 %v3888, %v3948
      %v4017 = vmul.f32 %v3889, %v3950
      %v4018 = vmul.f32 %v3890, %v3952
      %v4019 = vmul.f32 %v3891, %v3954
      %v4020 = vmul.f32 %v3892, %v3956
      %s4021 = scalar_lea.vmem %s4, 48
      %v4022 = vld [vmem:[%s4021] sm:$0xff]
      %v4024 = vsel %vm803, %v3989, 0
      %v4027 = vsel %vm803, %v3990, 0
      %v4030 = vsel %vm803, %v3991, 0
      %v4033 = vsel %vm803, %v3992, 0
      %v4036 = vsel %vm803, %v3993, 0
      %v4039 = vsel %vm803, %v3994, 0
      %v4042 = vsel %vm803, %v3995, 0
      %v4045 = vsel %vm803, %v3996, 0
      %v4048 = vsel %vm803, %v3997, 0
      %v4051 = vsel %vm803, %v3998, 0
      %v4054 = vsel %vm803, %v3999, 0
      %v4057 = vsel %vm803, %v4000, 0
      %v4060 = vsel %vm803, %v4001, 0
      %v4063 = vsel %vm803, %v4002, 0
      %v4066 = vsel %vm803, %v4003, 0
      %v4069 = vsel %vm803, %v4004, 0
      %v4072 = vsel %vm803, %v4005, 0
      %v4075 = vsel %vm803, %v4006, 0
      %v4078 = vsel %vm803, %v4007, 0
      %v4081 = vsel %vm803, %v4008, 0
      %v4084 = vsel %vm803, %v4009, 0
      %v4087 = vsel %vm803, %v4010, 0
      %v4090 = vsel %vm803, %v4011, 0
      %v4093 = vsel %vm803, %v4012, 0
      %v4096 = vsel %vm803, %v4013, 0
      %v4099 = vsel %vm803, %v4014, 0
      %v4102 = vsel %vm803, %v4015, 0
      %v4105 = vsel %vm803, %v4016, 0
      %v4108 = vsel %vm803, %v4017, 0
      %v4111 = vsel %vm803, %v4018, 0
      %v4114 = vsel %vm803, %v4019, 0
      %v4117 = vsel %vm803, %v4020, 0
      %4119 = vmatprep.subr.mxu0 0.0
      %4120 = vmatpush1.msra.mxu0 %v4022
      %4121 = vmatprep.subr.mxu0 0.0
      %4122 = vmatpush1.msra.mxu0 0.0
      %4123 = vmatprep.subr.mxu0 0.0
      %4124 = vmatpush1.msra.mxu0 0.0
      %4125 = vmatprep.subr.mxu0 0.0
      %4126 = vmatpush1.msra.mxu0 0.0
      %4127 = vmatprep.subr.mxu0 0.0
      %4128 = vmatpush1.msra.mxu0 0.0
      %4129 = vmatprep.subr.mxu0 0.0
      %4130 = vmatpush1.msra.mxu0 0.0
      %4131 = vmatprep.subr.mxu0 0.0
      %4132 = vmatpush1.msra.mxu0 0.0
      %4133 = vmatprep.subr.mxu0 0.0
      %4134 = vmatpush1.msra.mxu0 0.0
      %4135 = vmatprep.subr.mxu0 0.0
      %4136 = vmatpush1.msra.mxu0 0.0
      %4137 = vmatprep.subr.mxu0 0.0
      %4138 = vmatpush1.msra.mxu0 0.0
      %4139 = vmatprep.subr.mxu0 0.0
      %4140 = vmatpush1.msra.mxu0 0.0
      %4141 = vmatprep.subr.mxu0 0.0
      %4142 = vmatpush1.msra.mxu0 0.0
      %4143 = vmatprep.subr.mxu0 0.0
      %4144 = vmatpush1.msra.mxu0 0.0
      %4145 = vmatprep.subr.mxu0 0.0
      %4146 = vmatpush1.msra.mxu0 0.0
      %4147 = vmatprep.subr.mxu0 0.0
      %4148 = vmatpush1.msra.mxu0 0.0
      %4149 = vmatprep.subr.mxu0 0.0
      %4150 = vmatpush1.msra.mxu0 0.0
      %4151 = vmatprep.subr.mxu0 0.0
      %4152 = vmatpush1.msra.mxu0 0.0
      %4153 = vmatprep.subr.mxu0 0.0
      %4154 = vmatpush1.msra.mxu0 0.0
      %4155 = vmatprep.subr.mxu0 0.0
      %4156 = vmatpush1.msra.mxu0 0.0
      %4157 = vmatprep.subr.mxu0 0.0
      %4158 = vmatpush1.msra.mxu0 0.0
      %4159 = vmatprep.subr.mxu0 0.0
      %4160 = vmatpush1.msra.mxu0 0.0
      %4161 = vmatprep.subr.mxu0 0.0
      %4162 = vmatpush1.msra.mxu0 0.0
      %4163 = vmatprep.subr.mxu0 0.0
      %4164 = vmatpush1.msra.mxu0 0.0
      %4165 = vmatprep.subr.mxu0 0.0
      %4166 = vmatpush1.msra.mxu0 0.0
      %4167 = vmatprep.subr.mxu0 0.0
      %4168 = vmatpush1.msra.mxu0 0.0
      %4169 = vmatprep.subr.mxu0 0.0
      %4170 = vmatpush1.msra.mxu0 0.0
      %4171 = vmatprep.subr.mxu0 0.0
      %4172 = vmatpush1.msra.mxu0 0.0
      %4173 = vmatprep.subr.mxu0 0.0
      %4174 = vmatpush1.msra.mxu0 0.0
      %4175 = vmatprep.subr.mxu0 0.0
      %4176 = vmatpush1.msra.mxu0 0.0
      %4177 = vmatprep.subr.mxu0 0.0
      %4178 = vmatpush1.msra.mxu0 0.0
      %4179 = vmatprep.subr.mxu0 0.0
      %4180 = vmatpush1.msra.mxu0 0.0
      %4181 = vmatprep.subr.mxu0 0.0
      %4182 = vmatpush1.msra.mxu0 0.0
      %4183 = vmatprep.mubr.f32.mxu0 0.0
      %4184 = vmatmul.mubr.f32.gmra.mrb[0].mxu0 %v4024
      %v4185 = vpop.f32.mrb[0].mxu0
      %v4186 = vadd.f32 0.0, %v4185
      %v4187 = vpop.f32.mrb[0].mxu0
      %4188 = vmatprep.mubr.f32.mxu0 0.0
      %4189 = vmatmul.mubr.f32.gmra.mrb[0].mxu0 %v4027
      %v4190 = vpop.f32.mrb[0].mxu0
      %v4191 = vadd.f32 0.0, %v4190
      %v4192 = vpop.f32.mrb[0].mxu0
      %4193 = vmatprep.mubr.f32.mxu0 0.0
      %4194 = vmatmul.mubr.f32.gmra.mrb[0].mxu0 %v4030
      %v4195 = vpop.f32.mrb[0].mxu0
      %v4196 = vadd.f32 0.0, %v4195
      %v4197 = vpop.f32.mrb[0].mxu0
      %4198 = vmatprep.mubr.f32.mxu0 0.0
      %4199 = vmatmul.mubr.f32.gmra.mrb[0].mxu0 %v4033
      %v4200 = vpop.f32.mrb[0].mxu0
      %v4201 = vadd.f32 0.0, %v4200
      %v4202 = vpop.f32.mrb[0].mxu0
      %4203 = vmatprep.mubr.f32.mxu0 0.0
      %4204 = vmatmul.mubr.f32.gmra.mrb[0].mxu0 %v4036
      %v4205 = vpop.f32.mrb[0].mxu0
      %v4206 = vadd.f32 0.0, %v4205
      %v4207 = vpop.f32.mrb[0].mxu0
      %4208 = vmatprep.mubr.f32.mxu0 0.0
      %4209 = vmatmul.mubr.f32.gmra.mrb[0].mxu0 %v4039
      %v4210 = vpop.f32.mrb[0].mxu0
      %v4211 = vadd.f32 0.0, %v4210
      %v4212 = vpop.f32.mrb[0].mxu0
      %4213 = vmatprep.mubr.f32.mxu0 0.0
      %4214 = vmatmul.mubr.f32.gmra.mrb[0].mxu0 %v4042
      %v4215 = vpop.f32.mrb[0].mxu0
      %v4216 = vadd.f32 0.0, %v4215
      %v4217 = vpop.f32.mrb[0].mxu0
      %4218 = vmatprep.mubr.f32.mxu0 0.0
      %4219 = vmatmul.mubr.f32.gmra.mrb[0].mxu0 %v4045
      %v4220 = vpop.f32.mrb[0].mxu0
      %v4221 = vadd.f32 0.0, %v4220
      %v4222 = vpop.f32.mrb[0].mxu0
      %4223 = vmatprep.mubr.f32.mxu0 0.0
      %4224 = vmatmul.mubr.f32.gmra.mrb[0].mxu0 %v4048
      %v4225 = vpop.f32.mrb[0].mxu0
      %v4226 = vadd.f32 0.0, %v4225
      %v4227 = vpop.f32.mrb[0].mxu0
      %4228 = vmatprep.mubr.f32.mxu0 0.0
      %4229 = vmatmul.mubr.f32.gmra.mrb[0].mxu0 %v4051
      %v4230 = vpop.f32.mrb[0].mxu0
      %v4231 = vadd.f32 0.0, %v4230
      %v4232 = vpop.f32.mrb[0].mxu0
      %4233 = vmatprep.mubr.f32.mxu0 0.0
      %4234 = vmatmul.mubr.f32.gmra.mrb[0].mxu0 %v4054
      %v4235 = vpop.f32.mrb[0].mxu0
      %v4236 = vadd.f32 0.0, %v4235
      %v4237 = vpop.f32.mrb[0].mxu0
      %4238 = vmatprep.mubr.f32.mxu0 0.0
      %4239 = vmatmul.mubr.f32.gmra.mrb[0].mxu0 %v4057
      %v4240 = vpop.f32.mrb[0].mxu0
      %v4241 = vadd.f32 0.0, %v4240
      %v4242 = vpop.f32.mrb[0].mxu0
      %4243 = vmatprep.mubr.f32.mxu0 0.0
      %4244 = vmatmul.mubr.f32.gmra.mrb[0].mxu0 %v4060
      %v4245 = vpop.f32.mrb[0].mxu0
      %v4246 = vadd.f32 0.0, %v4245
      %v4247 = vpop.f32.mrb[0].mxu0
      %4248 = vmatprep.mubr.f32.mxu0 0.0
      %4249 = vmatmul.mubr.f32.gmra.mrb[0].mxu0 %v4063
      %v4250 = vpop.f32.mrb[0].mxu0
      %v4251 = vadd.f32 0.0, %v4250
      %v4252 = vpop.f32.mrb[0].mxu0
      %4253 = vmatprep.mubr.f32.mxu0 0.0
      %4254 = vmatmul.mubr.f32.gmra.mrb[0].mxu0 %v4066
      %v4255 = vpop.f32.mrb[0].mxu0
      %v4256 = vadd.f32 0.0, %v4255
      %v4257 = vpop.f32.mrb[0].mxu0
      %4258 = vmatprep.mubr.f32.mxu0 0.0
      %4259 = vmatmul.mubr.f32.gmra.mrb[0].mxu0 %v4069
      %v4260 = vpop.f32.mrb[0].mxu0
      %v4261 = vadd.f32 0.0, %v4260
      %v4262 = vpop.f32.mrb[0].mxu0
      %4263 = vmatprep.mubr.f32.mxu0 0.0
      %4264 = vmatmul.mubr.f32.gmra.mrb[0].mxu0 %v4072
      %v4265 = vpop.f32.mrb[0].mxu0
      %v4266 = vadd.f32 0.0, %v4265
      %v4267 = vpop.f32.mrb[0].mxu0
      %4268 = vmatprep.mubr.f32.mxu0 0.0
      %4269 = vmatmul.mubr.f32.gmra.mrb[0].mxu0 %v4075
      %v4270 = vpop.f32.mrb[0].mxu0
      %v4271 = vadd.f32 0.0, %v4270
      %v4272 = vpop.f32.mrb[0].mxu0
      %4273 = vmatprep.mubr.f32.mxu0 0.0
      %4274 = vmatmul.mubr.f32.gmra.mrb[0].mxu0 %v4078
      %v4275 = vpop.f32.mrb[0].mxu0
      %v4276 = vadd.f32 0.0, %v4275
      %v4277 = vpop.f32.mrb[0].mxu0
      %4278 = vmatprep.mubr.f32.mxu0 0.0
      %4279 = vmatmul.mubr.f32.gmra.mrb[0].mxu0 %v4081
      %v4280 = vpop.f32.mrb[0].mxu0
      %v4281 = vadd.f32 0.0, %v4280
      %v4282 = vpop.f32.mrb[0].mxu0
      %4283 = vmatprep.mubr.f32.mxu0 0.0
      %4284 = vmatmul.mubr.f32.gmra.mrb[0].mxu0 %v4084
      %v4285 = vpop.f32.mrb[0].mxu0
      %v4286 = vadd.f32 0.0, %v4285
      %v4287 = vpop.f32.mrb[0].mxu0
      %4288 = vmatprep.mubr.f32.mxu0 0.0
      %4289 = vmatmul.mubr.f32.gmra.mrb[0].mxu0 %v4087
      %v4290 = vpop.f32.mrb[0].mxu0
      %v4291 = vadd.f32 0.0, %v4290
      %v4292 = vpop.f32.mrb[0].mxu0
      %4293 = vmatprep.mubr.f32.mxu0 0.0
      %4294 = vmatmul.mubr.f32.gmra.mrb[0].mxu0 %v4090
      %v4295 = vpop.f32.mrb[0].mxu0
      %v4296 = vadd.f32 0.0, %v4295
      %v4297 = vpop.f32.mrb[0].mxu0
      %4298 = vmatprep.mubr.f32.mxu0 0.0
      %4299 = vmatmul.mubr.f32.gmra.mrb[0].mxu0 %v4093
      %v4300 = vpop.f32.mrb[0].mxu0
      %v4301 = vadd.f32 0.0, %v4300
      %v4302 = vpop.f32.mrb[0].mxu0
      %4303 = vmatprep.mubr.f32.mxu0 0.0
      %4304 = vmatmul.mubr.f32.gmra.mrb[0].mxu0 %v4096
      %v4305 = vpop.f32.mrb[0].mxu0
      %v4306 = vadd.f32 0.0, %v4305
      %v4307 = vpop.f32.mrb[0].mxu0
      %4308 = vmatprep.mubr.f32.mxu0 0.0
      %4309 = vmatmul.mubr.f32.gmra.mrb[0].mxu0 %v4099
      %v4310 = vpop.f32.mrb[0].mxu0
      %v4311 = vadd.f32 0.0, %v4310
      %v4312 = vpop.f32.mrb[0].mxu0
      %4313 = vmatprep.mubr.f32.mxu0 0.0
      %4314 = vmatmul.mubr.f32.gmra.mrb[0].mxu0 %v4102
      %v4315 = vpop.f32.mrb[0].mxu0
      %v4316 = vadd.f32 0.0, %v4315
      %v4317 = vpop.f32.mrb[0].mxu0
      %4318 = vmatprep.mubr.f32.mxu0 0.0
      %4319 = vmatmul.mubr.f32.gmra.mrb[0].mxu0 %v4105
      %v4320 = vpop.f32.mrb[0].mxu0
      %v4321 = vadd.f32 0.0, %v4320
      %v4322 = vpop.f32.mrb[0].mxu0
      %4323 = vmatprep.mubr.f32.mxu0 0.0
      %4324 = vmatmul.mubr.f32.gmra.mrb[0].mxu0 %v4108
      %v4325 = vpop.f32.mrb[0].mxu0
      %v4326 = vadd.f32 0.0, %v4325
      %v4327 = vpop.f32.mrb[0].mxu0
      %4328 = vmatprep.mubr.f32.mxu0 0.0
      %4329 = vmatmul.mubr.f32.gmra.mrb[0].mxu0 %v4111
      %v4330 = vpop.f32.mrb[0].mxu0
      %v4331 = vadd.f32 0.0, %v4330
      %v4332 = vpop.f32.mrb[0].mxu0
      %4333 = vmatprep.mubr.f32.mxu0 0.0
      %4334 = vmatmul.mubr.f32.gmra.mrb[0].mxu0 %v4114
      %v4335 = vpop.f32.mrb[0].mxu0
      %v4336 = vadd.f32 0.0, %v4335
      %v4337 = vpop.f32.mrb[0].mxu0
      %4338 = vmatprep.mubr.f32.mxu0 0.0
      %4339 = vmatmul.mubr.f32.gmra.mrb[0].mxu0 %v4117
      %v4340 = vpop.f32.mrb[0].mxu0
      %v4341 = vadd.f32 0.0, %v4340
      %v4342 = vpop.f32.mrb[0].mxu0
      %4343 = vdwg.mxu0
      %v4344 = vadd.f32 %v3829, %v4186
      %v4345 = vadd.f32 %v3830, %v4191
      %v4346 = vadd.f32 %v3831, %v4196
      %v4347 = vadd.f32 %v3832, %v4201
      %v4348 = vadd.f32 %v3833, %v4206
      %v4349 = vadd.f32 %v3834, %v4211
      %v4350 = vadd.f32 %v3835, %v4216
      %v4351 = vadd.f32 %v3836, %v4221
      %v4352 = vadd.f32 %v3837, %v4226
      %v4353 = vadd.f32 %v3838, %v4231
      %v4354 = vadd.f32 %v3839, %v4236
      %v4355 = vadd.f32 %v3840, %v4241
      %v4356 = vadd.f32 %v3841, %v4246
      %v4357 = vadd.f32 %v3842, %v4251
      %v4358 = vadd.f32 %v3843, %v4256
      %v4359 = vadd.f32 %v3844, %v4261
      %v4360 = vadd.f32 %v3845, %v4266
      %v4361 = vadd.f32 %v3846, %v4271
      %v4362 = vadd.f32 %v3847, %v4276
      %v4363 = vadd.f32 %v3848, %v4281
      %v4364 = vadd.f32 %v3849, %v4286
      %v4365 = vadd.f32 %v3850, %v4291
      %v4366 = vadd.f32 %v3851, %v4296
      %v4367 = vadd.f32 %v3852, %v4301
      %v4368 = vadd.f32 %v3853, %v4306
      %v4369 = vadd.f32 %v3854, %v4311
      %v4370 = vadd.f32 %v3855, %v4316
      %v4371 = vadd.f32 %v3856, %v4321
      %v4372 = vadd.f32 %v3857, %v4326
      %v4373 = vadd.f32 %v3858, %v4331
      %v4374 = vadd.f32 %v3859, %v4336
      %v4375 = vadd.f32 %v3860, %v4341
      %v4376 = vld [vmem:[#allocation2 + $0x10] sm:$0xff]
      %v4377 = vld [vmem:[#allocation2 + $0x18] sm:$0xff]
      %v4378 = vld [vmem:[#allocation2 + $0x20] sm:$0xff]
      %v4379 = vld [vmem:[#allocation2 + $0x28] sm:$0xff]
      %v4380 = vld [vmem:[#allocation2 + $0x30] sm:$0xff]
      %v4381 = vld [vmem:[#allocation2 + $0x38] sm:$0xff]
      %v4382 = vld [vmem:[#allocation2 + $0x40] sm:$0xff]
      %v4383 = vld [vmem:[#allocation2 + $0x48] sm:$0xff]
      %v4384 = vld [vmem:[#allocation2 + $0x50] sm:$0xff]
      %v4385 = vld [vmem:[#allocation2 + $0x58] sm:$0xff]
      %v4386 = vld [vmem:[#allocation2 + $0x60] sm:$0xff]
      %v4387 = vld [vmem:[#allocation2 + $0x68] sm:$0xff]
      %v4388 = vld [vmem:[#allocation2 + $0x70] sm:$0xff]
      %v4389 = vld [vmem:[#allocation2 + $0x78] sm:$0xff]
      %v4390 = vld [vmem:[#allocation2 + $0x80] sm:$0xff]
      %v4391 = vld [vmem:[#allocation2 + $0x88] sm:$0xff]
      %v4392 = vld [vmem:[#allocation2 + $0x90] sm:$0xff]
      %v4393 = vld [vmem:[#allocation2 + $0x98] sm:$0xff]
      %v4394 = vld [vmem:[#allocation2 + $0xa0] sm:$0xff]
      %v4395 = vld [vmem:[#allocation2 + $0xa8] sm:$0xff]
      %v4396 = vld [vmem:[#allocation2 + $0xb0] sm:$0xff]
      %v4397 = vld [vmem:[#allocation2 + $0xb8] sm:$0xff]
      %v4398 = vld [vmem:[#allocation2 + $0xc0] sm:$0xff]
      %v4399 = vld [vmem:[#allocation2 + $0xc8] sm:$0xff]
      %v4400 = vld [vmem:[#allocation2 + $0xd0] sm:$0xff]
      %v4401 = vld [vmem:[#allocation2 + $0xd8] sm:$0xff]
      %v4402 = vld [vmem:[#allocation2 + $0xe0] sm:$0xff]
      %v4403 = vld [vmem:[#allocation2 + $0xe8] sm:$0xff]
      %v4404 = vld [vmem:[#allocation2 + $0xf0] sm:$0xff]
      %v4405 = vld [vmem:[#allocation2 + $0xf8] sm:$0xff]
      %v4406 = vld [vmem:[#allocation2 + $0x100] sm:$0xff]
      %v4407 = vld [vmem:[#allocation2 + $0x108] sm:$0xff]
      %4408 = vrot.lane.b32.xlu0 %v900, 72
      %v4409 = vpop.permute.xlu0 %4408
      %4410 = vrot.lane.b32.xlu0 %v901, 72
      %v4411 = vpop.permute.xlu0 %4410
      %4412 = vrot.lane.b32.xlu0 %v902, 72
      %v4413 = vpop.permute.xlu0 %4412
      %4414 = vrot.lane.b32.xlu0 %v903, 72
      %v4415 = vpop.permute.xlu0 %4414
      %4416 = vrot.lane.b32.xlu0 %v904, 72
      %v4417 = vpop.permute.xlu0 %4416
      %4418 = vrot.lane.b32.xlu0 %v905, 72
      %v4419 = vpop.permute.xlu0 %4418
      %4420 = vrot.lane.b32.xlu0 %v906, 72
      %v4421 = vpop.permute.xlu0 %4420
      %4422 = vrot.lane.b32.xlu0 %v907, 72
      %v4423 = vpop.permute.xlu0 %4422
      %4424 = vrot.lane.b32.xlu0 %v908, 72
      %v4425 = vpop.permute.xlu0 %4424
      %4426 = vrot.lane.b32.xlu0 %v909, 72
      %v4427 = vpop.permute.xlu0 %4426
      %4428 = vrot.lane.b32.xlu0 %v910, 72
      %v4429 = vpop.permute.xlu0 %4428
      %4430 = vrot.lane.b32.xlu0 %v911, 72
      %v4431 = vpop.permute.xlu0 %4430
      %4432 = vrot.lane.b32.xlu0 %v912, 72
      %v4433 = vpop.permute.xlu0 %4432
      %4434 = vrot.lane.b32.xlu0 %v913, 72
      %v4435 = vpop.permute.xlu0 %4434
      %4436 = vrot.lane.b32.xlu0 %v914, 72
      %v4437 = vpop.permute.xlu0 %4436
      %4438 = vrot.lane.b32.xlu0 %v915, 72
      %v4439 = vpop.permute.xlu0 %4438
      %4440 = vrot.lane.b32.xlu0 %v916, 72
      %v4441 = vpop.permute.xlu0 %4440
      %4442 = vrot.lane.b32.xlu0 %v917, 72
      %v4443 = vpop.permute.xlu0 %4442
      %4444 = vrot.lane.b32.xlu0 %v918, 72
      %v4445 = vpop.permute.xlu0 %4444
      %4446 = vrot.lane.b32.xlu0 %v919, 72
      %v4447 = vpop.permute.xlu0 %4446
      %4448 = vrot.lane.b32.xlu0 %v920, 72
      %v4449 = vpop.permute.xlu0 %4448
      %4450 = vrot.lane.b32.xlu0 %v921, 72
      %v4451 = vpop.permute.xlu0 %4450
      %4452 = vrot.lane.b32.xlu0 %v922, 72
      %v4453 = vpop.permute.xlu0 %4452
      %4454 = vrot.lane.b32.xlu0 %v923, 72
      %v4455 = vpop.permute.xlu0 %4454
      %4456 = vrot.lane.b32.xlu0 %v924, 72
      %v4457 = vpop.permute.xlu0 %4456
      %4458 = vrot.lane.b32.xlu0 %v925, 72
      %v4459 = vpop.permute.xlu0 %4458
      %4460 = vrot.lane.b32.xlu0 %v926, 72
      %v4461 = vpop.permute.xlu0 %4460
      %4462 = vrot.lane.b32.xlu0 %v927, 72
      %v4463 = vpop.permute.xlu0 %4462
      %4464 = vrot.lane.b32.xlu0 %v928, 72
      %v4465 = vpop.permute.xlu0 %4464
      %4466 = vrot.lane.b32.xlu0 %v929, 72
      %v4467 = vpop.permute.xlu0 %4466
      %4468 = vrot.lane.b32.xlu0 %v930, 72
      %v4469 = vpop.permute.xlu0 %4468
      %4470 = vrot.lane.b32.xlu0 %v931, 72
      %v4471 = vpop.permute.xlu0 %4470
      %v4504 = vmul.f32 %v4376, %v4409
      %v4505 = vmul.f32 %v4377, %v4411
      %v4506 = vmul.f32 %v4378, %v4413
      %v4507 = vmul.f32 %v4379, %v4415
      %v4508 = vmul.f32 %v4380, %v4417
      %v4509 = vmul.f32 %v4381, %v4419
      %v4510 = vmul.f32 %v4382, %v4421
      %v4511 = vmul.f32 %v4383, %v4423
      %v4512 = vmul.f32 %v4384, %v4425
      %v4513 = vmul.f32 %v4385, %v4427
      %v4514 = vmul.f32 %v4386, %v4429
      %v4515 = vmul.f32 %v4387, %v4431
      %v4516 = vmul.f32 %v4388, %v4433
      %v4517 = vmul.f32 %v4389, %v4435
      %v4518 = vmul.f32 %v4390, %v4437
      %v4519 = vmul.f32 %v4391, %v4439
      %v4520 = vmul.f32 %v4392, %v4441
      %v4521 = vmul.f32 %v4393, %v4443
      %v4522 = vmul.f32 %v4394, %v4445
      %v4523 = vmul.f32 %v4395, %v4447
      %v4524 = vmul.f32 %v4396, %v4449
      %v4525 = vmul.f32 %v4397, %v4451
      %v4526 = vmul.f32 %v4398, %v4453
      %v4527 = vmul.f32 %v4399, %v4455
      %v4528 = vmul.f32 %v4400, %v4457
      %v4529 = vmul.f32 %v4401, %v4459
      %v4530 = vmul.f32 %v4402, %v4461
      %v4531 = vmul.f32 %v4403, %v4463
      %v4532 = vmul.f32 %v4404, %v4465
      %v4533 = vmul.f32 %v4405, %v4467
      %v4534 = vmul.f32 %v4406, %v4469
      %v4535 = vmul.f32 %v4407, %v4471
      %s4536 = scalar_lea.vmem %s4, 56
      %v4537 = vld [vmem:[%s4536] sm:$0xff]
      %v4539 = vsel %vm803, %v4504, 0
      %v4542 = vsel %vm803, %v4505, 0
      %v4545 = vsel %vm803, %v4506, 0
      %v4548 = vsel %vm803, %v4507, 0
      %v4551 = vsel %vm803, %v4508, 0
      %v4554 = vsel %vm803, %v4509, 0
      %v4557 = vsel %vm803, %v4510, 0
      %v4560 = vsel %vm803, %v4511, 0
      %v4563 = vsel %vm803, %v4512, 0
      %v4566 = vsel %vm803, %v4513, 0
      %v4569 = vsel %vm803, %v4514, 0
      %v4572 = vsel %vm803, %v4515, 0
      %v4575 = vsel %vm803, %v4516, 0
      %v4578 = vsel %vm803, %v4517, 0
      %v4581 = vsel %vm803, %v4518, 0
      %v4584 = vsel %vm803, %v4519, 0
      %v4587 = vsel %vm803, %v4520, 0
      %v4590 = vsel %vm803, %v4521, 0
      %v4593 = vsel %vm803, %v4522, 0
      %v4596 = vsel %vm803, %v4523, 0
      %v4599 = vsel %vm803, %v4524, 0
      %v4602 = vsel %vm803, %v4525, 0
      %v4605 = vsel %vm803, %v4526, 0
      %v4608 = vsel %vm803, %v4527, 0
      %v4611 = vsel %vm803, %v4528, 0
      %v4614 = vsel %vm803, %v4529, 0
      %v4617 = vsel %vm803, %v4530, 0
      %v4620 = vsel %vm803, %v4531, 0
      %v4623 = vsel %vm803, %v4532, 0
      %v4626 = vsel %vm803, %v4533, 0
      %v4629 = vsel %vm803, %v4534, 0
      %v4632 = vsel %vm803, %v4535, 0
      %4634 = vmatprep.subr.mxu0 0.0
      %4635 = vmatpush1.msra.mxu0 %v4537
      %4636 = vmatprep.subr.mxu0 0.0
      %4637 = vmatpush1.msra.mxu0 0.0
      %4638 = vmatprep.subr.mxu0 0.0
      %4639 = vmatpush1.msra.mxu0 0.0
      %4640 = vmatprep.subr.mxu0 0.0
      %4641 = vmatpush1.msra.mxu0 0.0
      %4642 = vmatprep.subr.mxu0 0.0
      %4643 = vmatpush1.msra.mxu0 0.0
      %4644 = vmatprep.subr.mxu0 0.0
      %4645 = vmatpush1.msra.mxu0 0.0
      %4646 = vmatprep.subr.mxu0 0.0
      %4647 = vmatpush1.msra.mxu0 0.0
      %4648 = vmatprep.subr.mxu0 0.0
      %4649 = vmatpush1.msra.mxu0 0.0
      %4650 = vmatprep.subr.mxu0 0.0
      %4651 = vmatpush1.msra.mxu0 0.0
      %4652 = vmatprep.subr.mxu0 0.0
      %4653 = vmatpush1.msra.mxu0 0.0
      %4654 = vmatprep.subr.mxu0 0.0
      %4655 = vmatpush1.msra.mxu0 0.0
      %4656 = vmatprep.subr.mxu0 0.0
      %4657 = vmatpush1.msra.mxu0 0.0
      %4658 = vmatprep.subr.mxu0 0.0
      %4659 = vmatpush1.msra.mxu0 0.0
      %4660 = vmatprep.subr.mxu0 0.0
      %4661 = vmatpush1.msra.mxu0 0.0
      %4662 = vmatprep.subr.mxu0 0.0
      %4663 = vmatpush1.msra.mxu0 0.0
      %4664 = vmatprep.subr.mxu0 0.0
      %4665 = vmatpush1.msra.mxu0 0.0
      %4666 = vmatprep.subr.mxu0 0.0
      %4667 = vmatpush1.msra.mxu0 0.0
      %4668 = vmatprep.subr.mxu0 0.0
      %4669 = vmatpush1.msra.mxu0 0.0
      %4670 = vmatprep.subr.mxu0 0.0
      %4671 = vmatpush1.msra.mxu0 0.0
      %4672 = vmatprep.subr.mxu0 0.0
      %4673 = vmatpush1.msra.mxu0 0.0
      %4674 = vmatprep.subr.mxu0 0.0
      %4675 = vmatpush1.msra.mxu0 0.0
      %4676 = vmatprep.subr.mxu0 0.0
      %4677 = vmatpush1.msra.mxu0 0.0
      %4678 = vmatprep.subr.mxu0 0.0
      %4679 = vmatpush1.msra.mxu0 0.0
      %4680 = vmatprep.subr.mxu0 0.0
      %4681 = vmatpush1.msra.mxu0 0.0
      %4682 = vmatprep.subr.mxu0 0.0
      %4683 = vmatpush1.msra.mxu0 0.0
      %4684 = vmatprep.subr.mxu0 0.0
      %4685 = vmatpush1.msra.mxu0 0.0
      %4686 = vmatprep.subr.mxu0 0.0
      %4687 = vmatpush1.msra.mxu0 0.0
      %4688 = vmatprep.subr.mxu0 0.0
      %4689 = vmatpush1.msra.mxu0 0.0
      %4690 = vmatprep.subr.mxu0 0.0
      %4691 = vmatpush1.msra.mxu0 0.0
      %4692 = vmatprep.subr.mxu0 0.0
      %4693 = vmatpush1.msra.mxu0 0.0
      %4694 = vmatprep.subr.mxu0 0.0
      %4695 = vmatpush1.msra.mxu0 0.0
      %4696 = vmatprep.subr.mxu0 0.0
      %4697 = vmatpush1.msra.mxu0 0.0
      %4698 = vmatprep.mubr.f32.mxu0 0.0
      %4699 = vmatmul.mubr.f32.gmra.mrb[0].mxu0 %v4539
      %v4700 = vpop.f32.mrb[0].mxu0
      %v4701 = vadd.f32 0.0, %v4700
      %v4702 = vpop.f32.mrb[0].mxu0
      %4703 = vmatprep.mubr.f32.mxu0 0.0
      %4704 = vmatmul.mubr.f32.gmra.mrb[0].mxu0 %v4542
      %v4705 = vpop.f32.mrb[0].mxu0
      %v4706 = vadd.f32 0.0, %v4705
      %v4707 = vpop.f32.mrb[0].mxu0
      %4708 = vmatprep.mubr.f32.mxu0 0.0
      %4709 = vmatmul.mubr.f32.gmra.mrb[0].mxu0 %v4545
      %v4710 = vpop.f32.mrb[0].mxu0
      %v4711 = vadd.f32 0.0, %v4710
      %v4712 = vpop.f32.mrb[0].mxu0
      %4713 = vmatprep.mubr.f32.mxu0 0.0
      %4714 = vmatmul.mubr.f32.gmra.mrb[0].mxu0 %v4548
      %v4715 = vpop.f32.mrb[0].mxu0
      %v4716 = vadd.f32 0.0, %v4715
      %v4717 = vpop.f32.mrb[0].mxu0
      %4718 = vmatprep.mubr.f32.mxu0 0.0
      %4719 = vmatmul.mubr.f32.gmra.mrb[0].mxu0 %v4551
      %v4720 = vpop.f32.mrb[0].mxu0
      %v4721 = vadd.f32 0.0, %v4720
      %v4722 = vpop.f32.mrb[0].mxu0
      %4723 = vmatprep.mubr.f32.mxu0 0.0
      %4724 = vmatmul.mubr.f32.gmra.mrb[0].mxu0 %v4554
      %v4725 = vpop.f32.mrb[0].mxu0
      %v4726 = vadd.f32 0.0, %v4725
      %v4727 = vpop.f32.mrb[0].mxu0
      %4728 = vmatprep.mubr.f32.mxu0 0.0
      %4729 = vmatmul.mubr.f32.gmra.mrb[0].mxu0 %v4557
      %v4730 = vpop.f32.mrb[0].mxu0
      %v4731 = vadd.f32 0.0, %v4730
      %v4732 = vpop.f32.mrb[0].mxu0
      %4733 = vmatprep.mubr.f32.mxu0 0.0
      %4734 = vmatmul.mubr.f32.gmra.mrb[0].mxu0 %v4560
      %v4735 = vpop.f32.mrb[0].mxu0
      %v4736 = vadd.f32 0.0, %v4735
      %v4737 = vpop.f32.mrb[0].mxu0
      %4738 = vmatprep.mubr.f32.mxu0 0.0
      %4739 = vmatmul.mubr.f32.gmra.mrb[0].mxu0 %v4563
      %v4740 = vpop.f32.mrb[0].mxu0
      %v4741 = vadd.f32 0.0, %v4740
      %v4742 = vpop.f32.mrb[0].mxu0
      %4743 = vmatprep.mubr.f32.mxu0 0.0
      %4744 = vmatmul.mubr.f32.gmra.mrb[0].mxu0 %v4566
      %v4745 = vpop.f32.mrb[0].mxu0
      %v4746 = vadd.f32 0.0, %v4745
      %v4747 = vpop.f32.mrb[0].mxu0
      %4748 = vmatprep.mubr.f32.mxu0 0.0
      %4749 = vmatmul.mubr.f32.gmra.mrb[0].mxu0 %v4569
      %v4750 = vpop.f32.mrb[0].mxu0
      %v4751 = vadd.f32 0.0, %v4750
      %v4752 = vpop.f32.mrb[0].mxu0
      %4753 = vmatprep.mubr.f32.mxu0 0.0
      %4754 = vmatmul.mubr.f32.gmra.mrb[0].mxu0 %v4572
      %v4755 = vpop.f32.mrb[0].mxu0
      %v4756 = vadd.f32 0.0, %v4755
      %v4757 = vpop.f32.mrb[0].mxu0
      %4758 = vmatprep.mubr.f32.mxu0 0.0
      %4759 = vmatmul.mubr.f32.gmra.mrb[0].mxu0 %v4575
      %v4760 = vpop.f32.mrb[0].mxu0
      %v4761 = vadd.f32 0.0, %v4760
      %v4762 = vpop.f32.mrb[0].mxu0
      %4763 = vmatprep.mubr.f32.mxu0 0.0
      %4764 = vmatmul.mubr.f32.gmra.mrb[0].mxu0 %v4578
      %v4765 = vpop.f32.mrb[0].mxu0
      %v4766 = vadd.f32 0.0, %v4765
      %v4767 = vpop.f32.mrb[0].mxu0
      %4768 = vmatprep.mubr.f32.mxu0 0.0
      %4769 = vmatmul.mubr.f32.gmra.mrb[0].mxu0 %v4581
      %v4770 = vpop.f32.mrb[0].mxu0
      %v4771 = vadd.f32 0.0, %v4770
      %v4772 = vpop.f32.mrb[0].mxu0
      %4773 = vmatprep.mubr.f32.mxu0 0.0
      %4774 = vmatmul.mubr.f32.gmra.mrb[0].mxu0 %v4584
      %v4775 = vpop.f32.mrb[0].mxu0
      %v4776 = vadd.f32 0.0, %v4775
      %v4777 = vpop.f32.mrb[0].mxu0
      %4778 = vmatprep.mubr.f32.mxu0 0.0
      %4779 = vmatmul.mubr.f32.gmra.mrb[0].mxu0 %v4587
      %v4780 = vpop.f32.mrb[0].mxu0
      %v4781 = vadd.f32 0.0, %v4780
      %v4782 = vpop.f32.mrb[0].mxu0
      %4783 = vmatprep.mubr.f32.mxu0 0.0
      %4784 = vmatmul.mubr.f32.gmra.mrb[0].mxu0 %v4590
      %v4785 = vpop.f32.mrb[0].mxu0
      %v4786 = vadd.f32 0.0, %v4785
      %v4787 = vpop.f32.mrb[0].mxu0
      %4788 = vmatprep.mubr.f32.mxu0 0.0
      %4789 = vmatmul.mubr.f32.gmra.mrb[0].mxu0 %v4593
      %v4790 = vpop.f32.mrb[0].mxu0
      %v4791 = vadd.f32 0.0, %v4790
      %v4792 = vpop.f32.mrb[0].mxu0
      %4793 = vmatprep.mubr.f32.mxu0 0.0
      %4794 = vmatmul.mubr.f32.gmra.mrb[0].mxu0 %v4596
      %v4795 = vpop.f32.mrb[0].mxu0
      %v4796 = vadd.f32 0.0, %v4795
      %v4797 = vpop.f32.mrb[0].mxu0
      %4798 = vmatprep.mubr.f32.mxu0 0.0
      %4799 = vmatmul.mubr.f32.gmra.mrb[0].mxu0 %v4599
      %v4800 = vpop.f32.mrb[0].mxu0
      %v4801 = vadd.f32 0.0, %v4800
      %v4802 = vpop.f32.mrb[0].mxu0
      %4803 = vmatprep.mubr.f32.mxu0 0.0
      %4804 = vmatmul.mubr.f32.gmra.mrb[0].mxu0 %v4602
      %v4805 = vpop.f32.mrb[0].mxu0
      %v4806 = vadd.f32 0.0, %v4805
      %v4807 = vpop.f32.mrb[0].mxu0
      %4808 = vmatprep.mubr.f32.mxu0 0.0
      %4809 = vmatmul.mubr.f32.gmra.mrb[0].mxu0 %v4605
      %v4810 = vpop.f32.mrb[0].mxu0
      %v4811 = vadd.f32 0.0, %v4810
      %v4812 = vpop.f32.mrb[0].mxu0
      %4813 = vmatprep.mubr.f32.mxu0 0.0
      %4814 = vmatmul.mubr.f32.gmra.mrb[0].mxu0 %v4608
      %v4815 = vpop.f32.mrb[0].mxu0
      %v4816 = vadd.f32 0.0, %v4815
      %v4817 = vpop.f32.mrb[0].mxu0
      %4818 = vmatprep.mubr.f32.mxu0 0.0
      %4819 = vmatmul.mubr.f32.gmra.mrb[0].mxu0 %v4611
      %v4820 = vpop.f32.mrb[0].mxu0
      %v4821 = vadd.f32 0.0, %v4820
      %v4822 = vpop.f32.mrb[0].mxu0
      %4823 = vmatprep.mubr.f32.mxu0 0.0
      %4824 = vmatmul.mubr.f32.gmra.mrb[0].mxu0 %v4614
      %v4825 = vpop.f32.mrb[0].mxu0
      %v4826 = vadd.f32 0.0, %v4825
      %v4827 = vpop.f32.mrb[0].mxu0
      %4828 = vmatprep.mubr.f32.mxu0 0.0
      %4829 = vmatmul.mubr.f32.gmra.mrb[0].mxu0 %v4617
      %v4830 = vpop.f32.mrb[0].mxu0
      %v4831 = vadd.f32 0.0, %v4830
      %v4832 = vpop.f32.mrb[0].mxu0
      %4833 = vmatprep.mubr.f32.mxu0 0.0
      %4834 = vmatmul.mubr.f32.gmra.mrb[0].mxu0 %v4620
      %v4835 = vpop.f32.mrb[0].mxu0
      %v4836 = vadd.f32 0.0, %v4835
      %v4837 = vpop.f32.mrb[0].mxu0
      %4838 = vmatprep.mubr.f32.mxu0 0.0
      %4839 = vmatmul.mubr.f32.gmra.mrb[0].mxu0 %v4623
      %v4840 = vpop.f32.mrb[0].mxu0
      %v4841 = vadd.f32 0.0, %v4840
      %v4842 = vpop.f32.mrb[0].mxu0
      %4843 = vmatprep.mubr.f32.mxu0 0.0
      %4844 = vmatmul.mubr.f32.gmra.mrb[0].mxu0 %v4626
      %v4845 = vpop.f32.mrb[0].mxu0
      %v4846 = vadd.f32 0.0, %v4845
      %v4847 = vpop.f32.mrb[0].mxu0
      %4848 = vmatprep.mubr.f32.mxu0 0.0
      %4849 = vmatmul.mubr.f32.gmra.mrb[0].mxu0 %v4629
      %v4850 = vpop.f32.mrb[0].mxu0
      %v4851 = vadd.f32 0.0, %v4850
      %v4852 = vpop.f32.mrb[0].mxu0
      %4853 = vmatprep.mubr.f32.mxu0 0.0
      %4854 = vmatmul.mubr.f32.gmra.mrb[0].mxu0 %v4632
      %v4855 = vpop.f32.mrb[0].mxu0
      %v4856 = vadd.f32 0.0, %v4855
      %v4857 = vpop.f32.mrb[0].mxu0
      %4858 = vdwg.mxu0
      %v4859 = vadd.f32 %v4344, %v4701
      %v4860 = vadd.f32 %v4345, %v4706
      %v4861 = vadd.f32 %v4346, %v4711
      %v4862 = vadd.f32 %v4347, %v4716
      %v4863 = vadd.f32 %v4348, %v4721
      %v4864 = vadd.f32 %v4349, %v4726
      %v4865 = vadd.f32 %v4350, %v4731
      %v4866 = vadd.f32 %v4351, %v4736
      %v4867 = vadd.f32 %v4352, %v4741
      %v4868 = vadd.f32 %v4353, %v4746
      %v4869 = vadd.f32 %v4354, %v4751
      %v4870 = vadd.f32 %v4355, %v4756
      %v4871 = vadd.f32 %v4356, %v4761
      %v4872 = vadd.f32 %v4357, %v4766
      %v4873 = vadd.f32 %v4358, %v4771
      %v4874 = vadd.f32 %v4359, %v4776
      %v4875 = vadd.f32 %v4360, %v4781
      %v4876 = vadd.f32 %v4361, %v4786
      %v4877 = vadd.f32 %v4362, %v4791
      %v4878 = vadd.f32 %v4363, %v4796
      %v4879 = vadd.f32 %v4364, %v4801
      %v4880 = vadd.f32 %v4365, %v4806
      %v4881 = vadd.f32 %v4366, %v4811
      %v4882 = vadd.f32 %v4367, %v4816
      %v4883 = vadd.f32 %v4368, %v4821
      %v4884 = vadd.f32 %v4369, %v4826
      %v4885 = vadd.f32 %v4370, %v4831
      %v4886 = vadd.f32 %v4371, %v4836
      %v4887 = vadd.f32 %v4372, %v4841
      %v4888 = vadd.f32 %v4373, %v4846
      %v4889 = vadd.f32 %v4374, %v4851
      %v4890 = vadd.f32 %v4375, %v4856
      %v4891 = vld [vmem:[#allocation2 + $0x11] sm:$0xff]
      %v4892 = vld [vmem:[#allocation2 + $0x19] sm:$0xff]
      %v4893 = vld [vmem:[#allocation2 + $0x21] sm:$0xff]
      %v4894 = vld [vmem:[#allocation2 + $0x29] sm:$0xff]
      %v4895 = vld [vmem:[#allocation2 + $0x31] sm:$0xff]
      %v4896 = vld [vmem:[#allocation2 + $0x39] sm:$0xff]
      %v4897 = vld [vmem:[#allocation2 + $0x41] sm:$0xff]
      %v4898 = vld [vmem:[#allocation2 + $0x49] sm:$0xff]
      %v4899 = vld [vmem:[#allocation2 + $0x51] sm:$0xff]
      %v4900 = vld [vmem:[#allocation2 + $0x59] sm:$0xff]
      %v4901 = vld [vmem:[#allocation2 + $0x61] sm:$0xff]
      %v4902 = vld [vmem:[#allocation2 + $0x69] sm:$0xff]
      %v4903 = vld [vmem:[#allocation2 + $0x71] sm:$0xff]
      %v4904 = vld [vmem:[#allocation2 + $0x79] sm:$0xff]
      %v4905 = vld [vmem:[#allocation2 + $0x81] sm:$0xff]
      %v4906 = vld [vmem:[#allocation2 + $0x89] sm:$0xff]
      %v4907 = vld [vmem:[#allocation2 + $0x91] sm:$0xff]
      %v4908 = vld [vmem:[#allocation2 + $0x99] sm:$0xff]
      %v4909 = vld [vmem:[#allocation2 + $0xa1] sm:$0xff]
      %v4910 = vld [vmem:[#allocation2 + $0xa9] sm:$0xff]
      %v4911 = vld [vmem:[#allocation2 + $0xb1] sm:$0xff]
      %v4912 = vld [vmem:[#allocation2 + $0xb9] sm:$0xff]
      %v4913 = vld [vmem:[#allocation2 + $0xc1] sm:$0xff]
      %v4914 = vld [vmem:[#allocation2 + $0xc9] sm:$0xff]
      %v4915 = vld [vmem:[#allocation2 + $0xd1] sm:$0xff]
      %v4916 = vld [vmem:[#allocation2 + $0xd9] sm:$0xff]
      %v4917 = vld [vmem:[#allocation2 + $0xe1] sm:$0xff]
      %v4918 = vld [vmem:[#allocation2 + $0xe9] sm:$0xff]
      %v4919 = vld [vmem:[#allocation2 + $0xf1] sm:$0xff]
      %v4920 = vld [vmem:[#allocation2 + $0xf9] sm:$0xff]
      %v4921 = vld [vmem:[#allocation2 + $0x101] sm:$0xff]
      %v4922 = vld [vmem:[#allocation2 + $0x109] sm:$0xff]
      %4923 = vrot.lane.b32.xlu0 %v900, 64
      %v4924 = vpop.permute.xlu0 %4923
      %4925 = vrot.lane.b32.xlu0 %v901, 64
      %v4926 = vpop.permute.xlu0 %4925
      %4927 = vrot.lane.b32.xlu0 %v902, 64
      %v4928 = vpop.permute.xlu0 %4927
      %4929 = vrot.lane.b32.xlu0 %v903, 64
      %v4930 = vpop.permute.xlu0 %4929
      %4931 = vrot.lane.b32.xlu0 %v904, 64
      %v4932 = vpop.permute.xlu0 %4931
      %4933 = vrot.lane.b32.xlu0 %v905, 64
      %v4934 = vpop.permute.xlu0 %4933
      %4935 = vrot.lane.b32.xlu0 %v906, 64
      %v4936 = vpop.permute.xlu0 %4935
      %4937 = vrot.lane.b32.xlu0 %v907, 64
      %v4938 = vpop.permute.xlu0 %4937
      %4939 = vrot.lane.b32.xlu0 %v908, 64
      %v4940 = vpop.permute.xlu0 %4939
      %4941 = vrot.lane.b32.xlu0 %v909, 64
      %v4942 = vpop.permute.xlu0 %4941
      %4943 = vrot.lane.b32.xlu0 %v910, 64
      %v4944 = vpop.permute.xlu0 %4943
      %4945 = vrot.lane.b32.xlu0 %v911, 64
      %v4946 = vpop.permute.xlu0 %4945
      %4947 = vrot.lane.b32.xlu0 %v912, 64
      %v4948 = vpop.permute.xlu0 %4947
      %4949 = vrot.lane.b32.xlu0 %v913, 64
      %v4950 = vpop.permute.xlu0 %4949
      %4951 = vrot.lane.b32.xlu0 %v914, 64
      %v4952 = vpop.permute.xlu0 %4951
      %4953 = vrot.lane.b32.xlu0 %v915, 64
      %v4954 = vpop.permute.xlu0 %4953
      %4955 = vrot.lane.b32.xlu0 %v916, 64
      %v4956 = vpop.permute.xlu0 %4955
      %4957 = vrot.lane.b32.xlu0 %v917, 64
      %v4958 = vpop.permute.xlu0 %4957
      %4959 = vrot.lane.b32.xlu0 %v918, 64
      %v4960 = vpop.permute.xlu0 %4959
      %4961 = vrot.lane.b32.xlu0 %v919, 64
      %v4962 = vpop.permute.xlu0 %4961
      %4963 = vrot.lane.b32.xlu0 %v920, 64
      %v4964 = vpop.permute.xlu0 %4963
      %4965 = vrot.lane.b32.xlu0 %v921, 64
      %v4966 = vpop.permute.xlu0 %4965
      %4967 = vrot.lane.b32.xlu0 %v922, 64
      %v4968 = vpop.permute.xlu0 %4967
      %4969 = vrot.lane.b32.xlu0 %v923, 64
      %v4970 = vpop.permute.xlu0 %4969
      %4971 = vrot.lane.b32.xlu0 %v924, 64
      %v4972 = vpop.permute.xlu0 %4971
      %4973 = vrot.lane.b32.xlu0 %v925, 64
      %v4974 = vpop.permute.xlu0 %4973
      %4975 = vrot.lane.b32.xlu0 %v926, 64
      %v4976 = vpop.permute.xlu0 %4975
      %4977 = vrot.lane.b32.xlu0 %v927, 64
      %v4978 = vpop.permute.xlu0 %4977
      %4979 = vrot.lane.b32.xlu0 %v928, 64
      %v4980 = vpop.permute.xlu0 %4979
      %4981 = vrot.lane.b32.xlu0 %v929, 64
      %v4982 = vpop.permute.xlu0 %4981
      %4983 = vrot.lane.b32.xlu0 %v930, 64
      %v4984 = vpop.permute.xlu0 %4983
      %4985 = vrot.lane.b32.xlu0 %v931, 64
      %v4986 = vpop.permute.xlu0 %4985
      %v5019 = vmul.f32 %v4891, %v4924
      %v5020 = vmul.f32 %v4892, %v4926
      %v5021 = vmul.f32 %v4893, %v4928
      %v5022 = vmul.f32 %v4894, %v4930
      %v5023 = vmul.f32 %v4895, %v4932
      %v5024 = vmul.f32 %v4896, %v4934
      %v5025 = vmul.f32 %v4897, %v4936
      %v5026 = vmul.f32 %v4898, %v4938
      %v5027 = vmul.f32 %v4899, %v4940
      %v5028 = vmul.f32 %v4900, %v4942
      %v5029 = vmul.f32 %v4901, %v4944
      %v5030 = vmul.f32 %v4902, %v4946
      %v5031 = vmul.f32 %v4903, %v4948
      %v5032 = vmul.f32 %v4904, %v4950
      %v5033 = vmul.f32 %v4905, %v4952
      %v5034 = vmul.f32 %v4906, %v4954
      %v5035 = vmul.f32 %v4907, %v4956
      %v5036 = vmul.f32 %v4908, %v4958
      %v5037 = vmul.f32 %v4909, %v4960
      %v5038 = vmul.f32 %v4910, %v4962
      %v5039 = vmul.f32 %v4911, %v4964
      %v5040 = vmul.f32 %v4912, %v4966
      %v5041 = vmul.f32 %v4913, %v4968
      %v5042 = vmul.f32 %v4914, %v4970
      %v5043 = vmul.f32 %v4915, %v4972
      %v5044 = vmul.f32 %v4916, %v4974
      %v5045 = vmul.f32 %v4917, %v4976
      %v5046 = vmul.f32 %v4918, %v4978
      %v5047 = vmul.f32 %v4919, %v4980
      %v5048 = vmul.f32 %v4920, %v4982
      %v5049 = vmul.f32 %v4921, %v4984
      %v5050 = vmul.f32 %v4922, %v4986
      %s5051 = scalar_lea.vmem %s4, 64
      %v5052 = vld [vmem:[%s5051] sm:$0xff]
      %v5054 = vsel %vm803, %v5019, 0
      %v5057 = vsel %vm803, %v5020, 0
      %v5060 = vsel %vm803, %v5021, 0
      %v5063 = vsel %vm803, %v5022, 0
      %v5066 = vsel %vm803, %v5023, 0
      %v5069 = vsel %vm803, %v5024, 0
      %v5072 = vsel %vm803, %v5025, 0
      %v5075 = vsel %vm803, %v5026, 0
      %v5078 = vsel %vm803, %v5027, 0
      %v5081 = vsel %vm803, %v5028, 0
      %v5084 = vsel %vm803, %v5029, 0
      %v5087 = vsel %vm803, %v5030, 0
      %v5090 = vsel %vm803, %v5031, 0
      %v5093 = vsel %vm803, %v5032, 0
      %v5096 = vsel %vm803, %v5033, 0
      %v5099 = vsel %vm803, %v5034, 0
      %v5102 = vsel %vm803, %v5035, 0
      %v5105 = vsel %vm803, %v5036, 0
      %v5108 = vsel %vm803, %v5037, 0
      %v5111 = vsel %vm803, %v5038, 0
      %v5114 = vsel %vm803, %v5039, 0
      %v5117 = vsel %vm803, %v5040, 0
      %v5120 = vsel %vm803, %v5041, 0
      %v5123 = vsel %vm803, %v5042, 0
      %v5126 = vsel %vm803, %v5043, 0
      %v5129 = vsel %vm803, %v5044, 0
      %v5132 = vsel %vm803, %v5045, 0
      %v5135 = vsel %vm803, %v5046, 0
      %v5138 = vsel %vm803, %v5047, 0
      %v5141 = vsel %vm803, %v5048, 0
      %v5144 = vsel %vm803, %v5049, 0
      %v5147 = vsel %vm803, %v5050, 0
      %5149 = vmatprep.subr.mxu0 0.0
      %5150 = vmatpush1.msra.mxu0 %v5052
      %5151 = vmatprep.subr.mxu0 0.0
      %5152 = vmatpush1.msra.mxu0 0.0
      %5153 = vmatprep.subr.mxu0 0.0
      %5154 = vmatpush1.msra.mxu0 0.0
      %5155 = vmatprep.subr.mxu0 0.0
      %5156 = vmatpush1.msra.mxu0 0.0
      %5157 = vmatprep.subr.mxu0 0.0
      %5158 = vmatpush1.msra.mxu0 0.0
      %5159 = vmatprep.subr.mxu0 0.0
      %5160 = vmatpush1.msra.mxu0 0.0
      %5161 = vmatprep.subr.mxu0 0.0
      %5162 = vmatpush1.msra.mxu0 0.0
      %5163 = vmatprep.subr.mxu0 0.0
      %5164 = vmatpush1.msra.mxu0 0.0
      %5165 = vmatprep.subr.mxu0 0.0
      %5166 = vmatpush1.msra.mxu0 0.0
      %5167 = vmatprep.subr.mxu0 0.0
      %5168 = vmatpush1.msra.mxu0 0.0
      %5169 = vmatprep.subr.mxu0 0.0
      %5170 = vmatpush1.msra.mxu0 0.0
      %5171 = vmatprep.subr.mxu0 0.0
      %5172 = vmatpush1.msra.mxu0 0.0
      %5173 = vmatprep.subr.mxu0 0.0
      %5174 = vmatpush1.msra.mxu0 0.0
      %5175 = vmatprep.subr.mxu0 0.0
      %5176 = vmatpush1.msra.mxu0 0.0
      %5177 = vmatprep.subr.mxu0 0.0
      %5178 = vmatpush1.msra.mxu0 0.0
      %5179 = vmatprep.subr.mxu0 0.0
      %5180 = vmatpush1.msra.mxu0 0.0
      %5181 = vmatprep.subr.mxu0 0.0
      %5182 = vmatpush1.msra.mxu0 0.0
      %5183 = vmatprep.subr.mxu0 0.0
      %5184 = vmatpush1.msra.mxu0 0.0
      %5185 = vmatprep.subr.mxu0 0.0
      %5186 = vmatpush1.msra.mxu0 0.0
      %5187 = vmatprep.subr.mxu0 0.0
      %5188 = vmatpush1.msra.mxu0 0.0
      %5189 = vmatprep.subr.mxu0 0.0
      %5190 = vmatpush1.msra.mxu0 0.0
      %5191 = vmatprep.subr.mxu0 0.0
      %5192 = vmatpush1.msra.mxu0 0.0
      %5193 = vmatprep.subr.mxu0 0.0
      %5194 = vmatpush1.msra.mxu0 0.0
      %5195 = vmatprep.subr.mxu0 0.0
      %5196 = vmatpush1.msra.mxu0 0.0
      %5197 = vmatprep.subr.mxu0 0.0
      %5198 = vmatpush1.msra.mxu0 0.0
      %5199 = vmatprep.subr.mxu0 0.0
      %5200 = vmatpush1.msra.mxu0 0.0
      %5201 = vmatprep.subr.mxu0 0.0
      %5202 = vmatpush1.msra.mxu0 0.0
      %5203 = vmatprep.subr.mxu0 0.0
      %5204 = vmatpush1.msra.mxu0 0.0
      %5205 = vmatprep.subr.mxu0 0.0
      %5206 = vmatpush1.msra.mxu0 0.0
      %5207 = vmatprep.subr.mxu0 0.0
      %5208 = vmatpush1.msra.mxu0 0.0
      %5209 = vmatprep.subr.mxu0 0.0
      %5210 = vmatpush1.msra.mxu0 0.0
      %5211 = vmatprep.subr.mxu0 0.0
      %5212 = vmatpush1.msra.mxu0 0.0
      %5213 = vmatprep.mubr.f32.mxu0 0.0
      %5214 = vmatmul.mubr.f32.gmra.mrb[0].mxu0 %v5054
      %v5215 = vpop.f32.mrb[0].mxu0
      %v5216 = vadd.f32 0.0, %v5215
      %v5217 = vpop.f32.mrb[0].mxu0
      %5218 = vmatprep.mubr.f32.mxu0 0.0
      %5219 = vmatmul.mubr.f32.gmra.mrb[0].mxu0 %v5057
      %v5220 = vpop.f32.mrb[0].mxu0
      %v5221 = vadd.f32 0.0, %v5220
      %v5222 = vpop.f32.mrb[0].mxu0
      %5223 = vmatprep.mubr.f32.mxu0 0.0
      %5224 = vmatmul.mubr.f32.gmra.mrb[0].mxu0 %v5060
      %v5225 = vpop.f32.mrb[0].mxu0
      %v5226 = vadd.f32 0.0, %v5225
      %v5227 = vpop.f32.mrb[0].mxu0
      %5228 = vmatprep.mubr.f32.mxu0 0.0
      %5229 = vmatmul.mubr.f32.gmra.mrb[0].mxu0 %v5063
      %v5230 = vpop.f32.mrb[0].mxu0
      %v5231 = vadd.f32 0.0, %v5230
      %v5232 = vpop.f32.mrb[0].mxu0
      %5233 = vmatprep.mubr.f32.mxu0 0.0
      %5234 = vmatmul.mubr.f32.gmra.mrb[0].mxu0 %v5066
      %v5235 = vpop.f32.mrb[0].mxu0
      %v5236 = vadd.f32 0.0, %v5235
      %v5237 = vpop.f32.mrb[0].mxu0
      %5238 = vmatprep.mubr.f32.mxu0 0.0
      %5239 = vmatmul.mubr.f32.gmra.mrb[0].mxu0 %v5069
      %v5240 = vpop.f32.mrb[0].mxu0
      %v5241 = vadd.f32 0.0, %v5240
      %v5242 = vpop.f32.mrb[0].mxu0
      %5243 = vmatprep.mubr.f32.mxu0 0.0
      %5244 = vmatmul.mubr.f32.gmra.mrb[0].mxu0 %v5072
      %v5245 = vpop.f32.mrb[0].mxu0
      %v5246 = vadd.f32 0.0, %v5245
      %v5247 = vpop.f32.mrb[0].mxu0
      %5248 = vmatprep.mubr.f32.mxu0 0.0
      %5249 = vmatmul.mubr.f32.gmra.mrb[0].mxu0 %v5075
      %v5250 = vpop.f32.mrb[0].mxu0
      %v5251 = vadd.f32 0.0, %v5250
      %v5252 = vpop.f32.mrb[0].mxu0
      %5253 = vmatprep.mubr.f32.mxu0 0.0
      %5254 = vmatmul.mubr.f32.gmra.mrb[0].mxu0 %v5078
      %v5255 = vpop.f32.mrb[0].mxu0
      %v5256 = vadd.f32 0.0, %v5255
      %v5257 = vpop.f32.mrb[0].mxu0
      %5258 = vmatprep.mubr.f32.mxu0 0.0
      %5259 = vmatmul.mubr.f32.gmra.mrb[0].mxu0 %v5081
      %v5260 = vpop.f32.mrb[0].mxu0
      %v5261 = vadd.f32 0.0, %v5260
      %v5262 = vpop.f32.mrb[0].mxu0
      %5263 = vmatprep.mubr.f32.mxu0 0.0
      %5264 = vmatmul.mubr.f32.gmra.mrb[0].mxu0 %v5084
      %v5265 = vpop.f32.mrb[0].mxu0
      %v5266 = vadd.f32 0.0, %v5265
      %v5267 = vpop.f32.mrb[0].mxu0
      %5268 = vmatprep.mubr.f32.mxu0 0.0
      %5269 = vmatmul.mubr.f32.gmra.mrb[0].mxu0 %v5087
      %v5270 = vpop.f32.mrb[0].mxu0
      %v5271 = vadd.f32 0.0, %v5270
      %v5272 = vpop.f32.mrb[0].mxu0
      %5273 = vmatprep.mubr.f32.mxu0 0.0
      %5274 = vmatmul.mubr.f32.gmra.mrb[0].mxu0 %v5090
      %v5275 = vpop.f32.mrb[0].mxu0
      %v5276 = vadd.f32 0.0, %v5275
      %v5277 = vpop.f32.mrb[0].mxu0
      %5278 = vmatprep.mubr.f32.mxu0 0.0
      %5279 = vmatmul.mubr.f32.gmra.mrb[0].mxu0 %v5093
      %v5280 = vpop.f32.mrb[0].mxu0
      %v5281 = vadd.f32 0.0, %v5280
      %v5282 = vpop.f32.mrb[0].mxu0
      %5283 = vmatprep.mubr.f32.mxu0 0.0
      %5284 = vmatmul.mubr.f32.gmra.mrb[0].mxu0 %v5096
      %v5285 = vpop.f32.mrb[0].mxu0
      %v5286 = vadd.f32 0.0, %v5285
      %v5287 = vpop.f32.mrb[0].mxu0
      %5288 = vmatprep.mubr.f32.mxu0 0.0
      %5289 = vmatmul.mubr.f32.gmra.mrb[0].mxu0 %v5099
      %v5290 = vpop.f32.mrb[0].mxu0
      %v5291 = vadd.f32 0.0, %v5290
      %v5292 = vpop.f32.mrb[0].mxu0
      %5293 = vmatprep.mubr.f32.mxu0 0.0
      %5294 = vmatmul.mubr.f32.gmra.mrb[0].mxu0 %v5102
      %v5295 = vpop.f32.mrb[0].mxu0
      %v5296 = vadd.f32 0.0, %v5295
      %v5297 = vpop.f32.mrb[0].mxu0
      %5298 = vmatprep.mubr.f32.mxu0 0.0
      %5299 = vmatmul.mubr.f32.gmra.mrb[0].mxu0 %v5105
      %v5300 = vpop.f32.mrb[0].mxu0
      %v5301 = vadd.f32 0.0, %v5300
      %v5302 = vpop.f32.mrb[0].mxu0
      %5303 = vmatprep.mubr.f32.mxu0 0.0
      %5304 = vmatmul.mubr.f32.gmra.mrb[0].mxu0 %v5108
      %v5305 = vpop.f32.mrb[0].mxu0
      %v5306 = vadd.f32 0.0, %v5305
      %v5307 = vpop.f32.mrb[0].mxu0
      %5308 = vmatprep.mubr.f32.mxu0 0.0
      %5309 = vmatmul.mubr.f32.gmra.mrb[0].mxu0 %v5111
      %v5310 = vpop.f32.mrb[0].mxu0
      %v5311 = vadd.f32 0.0, %v5310
      %v5312 = vpop.f32.mrb[0].mxu0
      %5313 = vmatprep.mubr.f32.mxu0 0.0
      %5314 = vmatmul.mubr.f32.gmra.mrb[0].mxu0 %v5114
      %v5315 = vpop.f32.mrb[0].mxu0
      %v5316 = vadd.f32 0.0, %v5315
      %v5317 = vpop.f32.mrb[0].mxu0
      %5318 = vmatprep.mubr.f32.mxu0 0.0
      %5319 = vmatmul.mubr.f32.gmra.mrb[0].mxu0 %v5117
      %v5320 = vpop.f32.mrb[0].mxu0
      %v5321 = vadd.f32 0.0, %v5320
      %v5322 = vpop.f32.mrb[0].mxu0
      %5323 = vmatprep.mubr.f32.mxu0 0.0
      %5324 = vmatmul.mubr.f32.gmra.mrb[0].mxu0 %v5120
      %v5325 = vpop.f32.mrb[0].mxu0
      %v5326 = vadd.f32 0.0, %v5325
      %v5327 = vpop.f32.mrb[0].mxu0
      %5328 = vmatprep.mubr.f32.mxu0 0.0
      %5329 = vmatmul.mubr.f32.gmra.mrb[0].mxu0 %v5123
      %v5330 = vpop.f32.mrb[0].mxu0
      %v5331 = vadd.f32 0.0, %v5330
      %v5332 = vpop.f32.mrb[0].mxu0
      %5333 = vmatprep.mubr.f32.mxu0 0.0
      %5334 = vmatmul.mubr.f32.gmra.mrb[0].mxu0 %v5126
      %v5335 = vpop.f32.mrb[0].mxu0
      %v5336 = vadd.f32 0.0, %v5335
      %v5337 = vpop.f32.mrb[0].mxu0
      %5338 = vmatprep.mubr.f32.mxu0 0.0
      %5339 = vmatmul.mubr.f32.gmra.mrb[0].mxu0 %v5129
      %v5340 = vpop.f32.mrb[0].mxu0
      %v5341 = vadd.f32 0.0, %v5340
      %v5342 = vpop.f32.mrb[0].mxu0
      %5343 = vmatprep.mubr.f32.mxu0 0.0
      %5344 = vmatmul.mubr.f32.gmra.mrb[0].mxu0 %v5132
      %v5345 = vpop.f32.mrb[0].mxu0
      %v5346 = vadd.f32 0.0, %v5345
      %v5347 = vpop.f32.mrb[0].mxu0
      %5348 = vmatprep.mubr.f32.mxu0 0.0
      %5349 = vmatmul.mubr.f32.gmra.mrb[0].mxu0 %v5135
      %v5350 = vpop.f32.mrb[0].mxu0
      %v5351 = vadd.f32 0.0, %v5350
      %v5352 = vpop.f32.mrb[0].mxu0
      %5353 = vmatprep.mubr.f32.mxu0 0.0
      %5354 = vmatmul.mubr.f32.gmra.mrb[0].mxu0 %v5138
      %v5355 = vpop.f32.mrb[0].mxu0
      %v5356 = vadd.f32 0.0, %v5355
      %v5357 = vpop.f32.mrb[0].mxu0
      %5358 = vmatprep.mubr.f32.mxu0 0.0
      %5359 = vmatmul.mubr.f32.gmra.mrb[0].mxu0 %v5141
      %v5360 = vpop.f32.mrb[0].mxu0
      %v5361 = vadd.f32 0.0, %v5360
      %v5362 = vpop.f32.mrb[0].mxu0
      %5363 = vmatprep.mubr.f32.mxu0 0.0
      %5364 = vmatmul.mubr.f32.gmra.mrb[0].mxu0 %v5144
      %v5365 = vpop.f32.mrb[0].mxu0
      %v5366 = vadd.f32 0.0, %v5365
      %v5367 = vpop.f32.mrb[0].mxu0
      %5368 = vmatprep.mubr.f32.mxu0 0.0
      %5369 = vmatmul.mubr.f32.gmra.mrb[0].mxu0 %v5147
      %v5370 = vpop.f32.mrb[0].mxu0
      %v5371 = vadd.f32 0.0, %v5370
      %v5372 = vpop.f32.mrb[0].mxu0
      %5373 = vdwg.mxu0
      %v5374 = vadd.f32 %v4859, %v5216
      %v5375 = vadd.f32 %v4860, %v5221
      %v5376 = vadd.f32 %v4861, %v5226
      %v5377 = vadd.f32 %v4862, %v5231
      %v5378 = vadd.f32 %v4863, %v5236
      %v5379 = vadd.f32 %v4864, %v5241
      %v5380 = vadd.f32 %v4865, %v5246
      %v5381 = vadd.f32 %v4866, %v5251
      %v5382 = vadd.f32 %v4867, %v5256
      %v5383 = vadd.f32 %v4868, %v5261
      %v5384 = vadd.f32 %v4869, %v5266
      %v5385 = vadd.f32 %v4870, %v5271
      %v5386 = vadd.f32 %v4871, %v5276
      %v5387 = vadd.f32 %v4872, %v5281
      %v5388 = vadd.f32 %v4873, %v5286
      %v5389 = vadd.f32 %v4874, %v5291
      %v5390 = vadd.f32 %v4875, %v5296
      %v5391 = vadd.f32 %v4876, %v5301
      %v5392 = vadd.f32 %v4877, %v5306
      %v5393 = vadd.f32 %v4878, %v5311
      %v5394 = vadd.f32 %v4879, %v5316
      %v5395 = vadd.f32 %v4880, %v5321
      %v5396 = vadd.f32 %v4881, %v5326
      %v5397 = vadd.f32 %v4882, %v5331
      %v5398 = vadd.f32 %v4883, %v5336
      %v5399 = vadd.f32 %v4884, %v5341
      %v5400 = vadd.f32 %v4885, %v5346
      %v5401 = vadd.f32 %v4886, %v5351
      %v5402 = vadd.f32 %v4887, %v5356
      %v5403 = vadd.f32 %v4888, %v5361
      %v5404 = vadd.f32 %v4889, %v5366
      %v5405 = vadd.f32 %v4890, %v5371
      %5438 = vrot.lane.b32.xlu0 %v5374, 16
      %v5439 = vpop.permute.xlu0 %5438
      %5440 = vrot.lane.b32.xlu0 %v5375, 16
      %v5441 = vpop.permute.xlu0 %5440
      %5442 = vrot.lane.b32.xlu0 %v5376, 16
      %v5443 = vpop.permute.xlu0 %5442
      %5444 = vrot.lane.b32.xlu0 %v5377, 16
      %v5445 = vpop.permute.xlu0 %5444
      %5446 = vrot.lane.b32.xlu0 %v5378, 16
      %v5447 = vpop.permute.xlu0 %5446
      %5448 = vrot.lane.b32.xlu0 %v5379, 16
      %v5449 = vpop.permute.xlu0 %5448
      %5450 = vrot.lane.b32.xlu0 %v5380, 16
      %v5451 = vpop.permute.xlu0 %5450
      %5452 = vrot.lane.b32.xlu0 %v5381, 16
      %v5453 = vpop.permute.xlu0 %5452
      %5454 = vrot.lane.b32.xlu0 %v5382, 16
      %v5455 = vpop.permute.xlu0 %5454
      %5456 = vrot.lane.b32.xlu0 %v5383, 16
      %v5457 = vpop.permute.xlu0 %5456
      %5458 = vrot.lane.b32.xlu0 %v5384, 16
      %v5459 = vpop.permute.xlu0 %5458
      %5460 = vrot.lane.b32.xlu0 %v5385, 16
      %v5461 = vpop.permute.xlu0 %5460
      %5462 = vrot.lane.b32.xlu0 %v5386, 16
      %v5463 = vpop.permute.xlu0 %5462
      %5464 = vrot.lane.b32.xlu0 %v5387, 16
      %v5465 = vpop.permute.xlu0 %5464
      %5466 = vrot.lane.b32.xlu0 %v5388, 16
      %v5467 = vpop.permute.xlu0 %5466
      %5468 = vrot.lane.b32.xlu0 %v5389, 16
      %v5469 = vpop.permute.xlu0 %5468
      %5470 = vrot.lane.b32.xlu0 %v5390, 16
      %v5471 = vpop.permute.xlu0 %5470
      %5472 = vrot.lane.b32.xlu0 %v5391, 16
      %v5473 = vpop.permute.xlu0 %5472
      %5474 = vrot.lane.b32.xlu0 %v5392, 16
      %v5475 = vpop.permute.xlu0 %5474
      %5476 = vrot.lane.b32.xlu0 %v5393, 16
      %v5477 = vpop.permute.xlu0 %5476
      %5478 = vrot.lane.b32.xlu0 %v5394, 16
      %v5479 = vpop.permute.xlu0 %5478
      %5480 = vrot.lane.b32.xlu0 %v5395, 16
      %v5481 = vpop.permute.xlu0 %5480
      %5482 = vrot.lane.b32.xlu0 %v5396, 16
      %v5483 = vpop.permute.xlu0 %5482
      %5484 = vrot.lane.b32.xlu0 %v5397, 16
      %v5485 = vpop.permute.xlu0 %5484
      %5486 = vrot.lane.b32.xlu0 %v5398, 16
      %v5487 = vpop.permute.xlu0 %5486
      %5488 = vrot.lane.b32.xlu0 %v5399, 16
      %v5489 = vpop.permute.xlu0 %5488
      %5490 = vrot.lane.b32.xlu0 %v5400, 16
      %v5491 = vpop.permute.xlu0 %5490
      %5492 = vrot.lane.b32.xlu0 %v5401, 16
      %v5493 = vpop.permute.xlu0 %5492
      %5494 = vrot.lane.b32.xlu0 %v5402, 16
      %v5495 = vpop.permute.xlu0 %5494
      %5496 = vrot.lane.b32.xlu0 %v5403, 16
      %v5497 = vpop.permute.xlu0 %5496
      %5498 = vrot.lane.b32.xlu0 %v5404, 16
      %v5499 = vpop.permute.xlu0 %5498
      %5500 = vrot.lane.b32.xlu0 %v5405, 16
      %v5501 = vpop.permute.xlu0 %5500
      %v5534 = vadd.f32 %v485, %v5439
      %v5535 = vadd.f32 %v488, %v5441
      %v5536 = vadd.f32 %v493, %v5443
      %v5537 = vadd.f32 %v496, %v5445
      %v5538 = vadd.f32 %v501, %v5447
      %v5539 = vadd.f32 %v504, %v5449
      %v5540 = vadd.f32 %v509, %v5451
      %v5541 = vadd.f32 %v512, %v5453
      %v5542 = vadd.f32 %v517, %v5455
      %v5543 = vadd.f32 %v520, %v5457
      %v5544 = vadd.f32 %v525, %v5459
      %v5545 = vadd.f32 %v528, %v5461
      %v5546 = vadd.f32 %v533, %v5463
      %v5547 = vadd.f32 %v536, %v5465
      %v5548 = vadd.f32 %v541, %v5467
      %v5549 = vadd.f32 %v544, %v5469
      %v5550 = vadd.f32 %v549, %v5471
      %v5551 = vadd.f32 %v552, %v5473
      %v5552 = vadd.f32 %v557, %v5475
      %v5553 = vadd.f32 %v560, %v5477
      %v5554 = vadd.f32 %v565, %v5479
      %v5555 = vadd.f32 %v568, %v5481
      %v5556 = vadd.f32 %v573, %v5483
      %v5557 = vadd.f32 %v576, %v5485
      %v5558 = vadd.f32 %v581, %v5487
      %v5559 = vadd.f32 %v584, %v5489
      %v5560 = vadd.f32 %v589, %v5491
      %v5561 = vadd.f32 %v592, %v5493
      %v5562 = vadd.f32 %v597, %v5495
      %v5563 = vadd.f32 %v600, %v5497
      %v5564 = vadd.f32 %v605, %v5499
      %v5565 = vadd.f32 %v608, %v5501
      %v5566 = vtanh.pop %v5534
      %v5567 = vtanh.pop %v5535
      %v5568 = vtanh.pop %v5536
      %v5569 = vtanh.pop %v5537
      %v5570 = vtanh.pop %v5538
      %v5571 = vtanh.pop %v5539
      %v5572 = vtanh.pop %v5540
      %v5573 = vtanh.pop %v5541
      %v5574 = vtanh.pop %v5542
      %v5575 = vtanh.pop %v5543
      %v5576 = vtanh.pop %v5544
      %v5577 = vtanh.pop %v5545
      %v5578 = vtanh.pop %v5546
      %v5579 = vtanh.pop %v5547
      %v5580 = vtanh.pop %v5548
      %v5581 = vtanh.pop %v5549
      %v5582 = vtanh.pop %v5550
      %v5583 = vtanh.pop %v5551
      %v5584 = vtanh.pop %v5552
      %v5585 = vtanh.pop %v5553
      %v5586 = vtanh.pop %v5554
      %v5587 = vtanh.pop %v5555
      %v5588 = vtanh.pop %v5556
      %v5589 = vtanh.pop %v5557
      %v5590 = vtanh.pop %v5558
      %v5591 = vtanh.pop %v5559
      %v5592 = vtanh.pop %v5560
      %v5593 = vtanh.pop %v5561
      %v5594 = vtanh.pop %v5562
      %v5595 = vtanh.pop %v5563
      %v5596 = vtanh.pop %v5564
      %v5597 = vtanh.pop %v5565
      %v5598 = vld [vmem:[%s242] sm:$0xff]
      %v5599 = vld [vmem:[%s242 + $0x8] sm:$0xff]
      %v5600 = vld [vmem:[%s242 + $0x10] sm:$0xff]
      %v5601 = vld [vmem:[%s242 + $0x18] sm:$0xff]
      %v5602 = vld [vmem:[%s242 + $0x20] sm:$0xff]
      %v5603 = vld [vmem:[%s242 + $0x28] sm:$0xff]
      %v5604 = vld [vmem:[%s242 + $0x30] sm:$0xff]
      %v5605 = vld [vmem:[%s242 + $0x38] sm:$0xff]
      %v5606 = vld [vmem:[%s242 + $0x40] sm:$0xff]
      %v5607 = vld [vmem:[%s242 + $0x48] sm:$0xff]
      %v5608 = vld [vmem:[%s242 + $0x50] sm:$0xff]
      %v5609 = vld [vmem:[%s242 + $0x58] sm:$0xff]
      %v5610 = vld [vmem:[%s242 + $0x60] sm:$0xff]
      %v5611 = vld [vmem:[%s242 + $0x68] sm:$0xff]
      %v5612 = vld [vmem:[%s242 + $0x70] sm:$0xff]
      %v5613 = vld [vmem:[%s242 + $0x78] sm:$0xff]
      %v5614 = vld [vmem:[%s242 + $0x80] sm:$0xff]
      %v5615 = vld [vmem:[%s242 + $0x88] sm:$0xff]
      %v5616 = vld [vmem:[%s242 + $0x90] sm:$0xff]
      %v5617 = vld [vmem:[%s242 + $0x98] sm:$0xff]
      %v5618 = vld [vmem:[%s242 + $0xa0] sm:$0xff]
      %v5619 = vld [vmem:[%s242 + $0xa8] sm:$0xff]
      %v5620 = vld [vmem:[%s242 + $0xb0] sm:$0xff]
      %v5621 = vld [vmem:[%s242 + $0xb8] sm:$0xff]
      %v5622 = vld [vmem:[%s242 + $0xc0] sm:$0xff]
      %v5623 = vld [vmem:[%s242 + $0xc8] sm:$0xff]
      %v5624 = vld [vmem:[%s242 + $0xd0] sm:$0xff]
      %v5625 = vld [vmem:[%s242 + $0xd8] sm:$0xff]
      %v5626 = vld [vmem:[%s242 + $0xe0] sm:$0xff]
      %v5627 = vld [vmem:[%s242 + $0xe8] sm:$0xff]
      %v5628 = vld [vmem:[%s242 + $0xf0] sm:$0xff]
      %v5629 = vld [vmem:[%s242 + $0xf8] sm:$0xff]
      %v5630 = vsub.f32 1.0, %v740
      %v5631 = vsub.f32 1.0, %v742
      %v5632 = vsub.f32 1.0, %v744
      %v5633 = vsub.f32 1.0, %v746
      %v5634 = vsub.f32 1.0, %v748
      %v5635 = vsub.f32 1.0, %v750
      %v5636 = vsub.f32 1.0, %v752
      %v5637 = vsub.f32 1.0, %v754
      %v5638 = vsub.f32 1.0, %v756
      %v5639 = vsub.f32 1.0, %v758
      %v5640 = vsub.f32 1.0, %v760
      %v5641 = vsub.f32 1.0, %v762
      %v5642 = vsub.f32 1.0, %v764
      %v5643 = vsub.f32 1.0, %v766
      %v5644 = vsub.f32 1.0, %v768
      %v5645 = vsub.f32 1.0, %v770
      %v5646 = vsub.f32 1.0, %v772
      %v5647 = vsub.f32 1.0, %v774
      %v5648 = vsub.f32 1.0, %v776
      %v5649 = vsub.f32 1.0, %v778
      %v5650 = vsub.f32 1.0, %v780
      %v5651 = vsub.f32 1.0, %v782
      %v5652 = vsub.f32 1.0, %v784
      %v5653 = vsub.f32 1.0, %v786
      %v5654 = vsub.f32 1.0, %v788
      %v5655 = vsub.f32 1.0, %v790
      %v5656 = vsub.f32 1.0, %v792
      %v5657 = vsub.f32 1.0, %v794
      %v5658 = vsub.f32 1.0, %v796
      %v5659 = vsub.f32 1.0, %v798
      %v5660 = vsub.f32 1.0, %v800
      %v5661 = vsub.f32 1.0, %v802
      %5694 = vrot.lane.b32.xlu0 %v5598, 8
      %v5695 = vpop.permute.xlu0 %5694
      %5696 = vrot.lane.b32.xlu0 %v5599, 8
      %v5697 = vpop.permute.xlu0 %5696
      %5698 = vrot.lane.b32.xlu0 %v5600, 8
      %v5699 = vpop.permute.xlu0 %5698
      %5700 = vrot.lane.b32.xlu0 %v5601, 8
      %v5701 = vpop.permute.xlu0 %5700
      %5702 = vrot.lane.b32.xlu0 %v5602, 8
      %v5703 = vpop.permute.xlu0 %5702
      %5704 = vrot.lane.b32.xlu0 %v5603, 8
      %v5705 = vpop.permute.xlu0 %5704
      %5706 = vrot.lane.b32.xlu0 %v5604, 8
      %v5707 = vpop.permute.xlu0 %5706
      %5708 = vrot.lane.b32.xlu0 %v5605, 8
      %v5709 = vpop.permute.xlu0 %5708
      %5710 = vrot.lane.b32.xlu0 %v5606, 8
      %v5711 = vpop.permute.xlu0 %5710
      %5712 = vrot.lane.b32.xlu0 %v5607, 8
      %v5713 = vpop.permute.xlu0 %5712
      %5714 = vrot.lane.b32.xlu0 %v5608, 8
      %v5715 = vpop.permute.xlu0 %5714
      %5716 = vrot.lane.b32.xlu0 %v5609, 8
      %v5717 = vpop.permute.xlu0 %5716
      %5718 = vrot.lane.b32.xlu0 %v5610, 8
      %v5719 = vpop.permute.xlu0 %5718
      %5720 = vrot.lane.b32.xlu0 %v5611, 8
      %v5721 = vpop.permute.xlu0 %5720
      %5722 = vrot.lane.b32.xlu0 %v5612, 8
      %v5723 = vpop.permute.xlu0 %5722
      %5724 = vrot.lane.b32.xlu0 %v5613, 8
      %v5725 = vpop.permute.xlu0 %5724
      %5726 = vrot.lane.b32.xlu0 %v5614, 8
      %v5727 = vpop.permute.xlu0 %5726
      %5728 = vrot.lane.b32.xlu0 %v5615, 8
      %v5729 = vpop.permute.xlu0 %5728
      %5730 = vrot.lane.b32.xlu0 %v5616, 8
      %v5731 = vpop.permute.xlu0 %5730
      %5732 = vrot.lane.b32.xlu0 %v5617, 8
      %v5733 = vpop.permute.xlu0 %5732
      %5734 = vrot.lane.b32.xlu0 %v5618, 8
      %v5735 = vpop.permute.xlu0 %5734
      %5736 = vrot.lane.b32.xlu0 %v5619, 8
      %v5737 = vpop.permute.xlu0 %5736
      %5738 = vrot.lane.b32.xlu0 %v5620, 8
      %v5739 = vpop.permute.xlu0 %5738
      %5740 = vrot.lane.b32.xlu0 %v5621, 8
      %v5741 = vpop.permute.xlu0 %5740
      %5742 = vrot.lane.b32.xlu0 %v5622, 8
      %v5743 = vpop.permute.xlu0 %5742
      %5744 = vrot.lane.b32.xlu0 %v5623, 8
      %v5745 = vpop.permute.xlu0 %5744
      %5746 = vrot.lane.b32.xlu0 %v5624, 8
      %v5747 = vpop.permute.xlu0 %5746
      %5748 = vrot.lane.b32.xlu0 %v5625, 8
      %v5749 = vpop.permute.xlu0 %5748
      %5750 = vrot.lane.b32.xlu0 %v5626, 8
      %v5751 = vpop.permute.xlu0 %5750
      %5752 = vrot.lane.b32.xlu0 %v5627, 8
      %v5753 = vpop.permute.xlu0 %5752
      %5754 = vrot.lane.b32.xlu0 %v5628, 8
      %v5755 = vpop.permute.xlu0 %5754
      %5756 = vrot.lane.b32.xlu0 %v5629, 8
      %v5757 = vpop.permute.xlu0 %5756
      %v5790 = vmul.f32 %v5630, %v5695
      %v5791 = vmul.f32 %v5631, %v5697
      %v5792 = vmul.f32 %v5632, %v5699
      %v5793 = vmul.f32 %v5633, %v5701
      %v5794 = vmul.f32 %v5634, %v5703
      %v5795 = vmul.f32 %v5635, %v5705
      %v5796 = vmul.f32 %v5636, %v5707
      %v5797 = vmul.f32 %v5637, %v5709
      %v5798 = vmul.f32 %v5638, %v5711
      %v5799 = vmul.f32 %v5639, %v5713
      %v5800 = vmul.f32 %v5640, %v5715
      %v5801 = vmul.f32 %v5641, %v5717
      %v5802 = vmul.f32 %v5642, %v5719
      %v5803 = vmul.f32 %v5643, %v5721
      %v5804 = vmul.f32 %v5644, %v5723
      %v5805 = vmul.f32 %v5645, %v5725
      %v5806 = vmul.f32 %v5646, %v5727
      %v5807 = vmul.f32 %v5647, %v5729
      %v5808 = vmul.f32 %v5648, %v5731
      %v5809 = vmul.f32 %v5649, %v5733
      %v5810 = vmul.f32 %v5650, %v5735
      %v5811 = vmul.f32 %v5651, %v5737
      %v5812 = vmul.f32 %v5652, %v5739
      %v5813 = vmul.f32 %v5653, %v5741
      %v5814 = vmul.f32 %v5654, %v5743
      %v5815 = vmul.f32 %v5655, %v5745
      %v5816 = vmul.f32 %v5656, %v5747
      %v5817 = vmul.f32 %v5657, %v5749
      %v5818 = vmul.f32 %v5658, %v5751
      %v5819 = vmul.f32 %v5659, %v5753
      %v5820 = vmul.f32 %v5660, %v5755
      %v5821 = vmul.f32 %v5661, %v5757
      %5854 = vrot.lane.b32.xlu0 %v5566, 120
      %v5855 = vpop.permute.xlu0 %5854
      %5856 = vrot.lane.b32.xlu0 %v5567, 120
      %v5857 = vpop.permute.xlu0 %5856
      %5858 = vrot.lane.b32.xlu0 %v5568, 120
      %v5859 = vpop.permute.xlu0 %5858
      %5860 = vrot.lane.b32.xlu0 %v5569, 120
      %v5861 = vpop.permute.xlu0 %5860
      %5862 = vrot.lane.b32.xlu0 %v5570, 120
      %v5863 = vpop.permute.xlu0 %5862
      %5864 = vrot.lane.b32.xlu0 %v5571, 120
      %v5865 = vpop.permute.xlu0 %5864
      %5866 = vrot.lane.b32.xlu0 %v5572, 120
      %v5867 = vpop.permute.xlu0 %5866
      %5868 = vrot.lane.b32.xlu0 %v5573, 120
      %v5869 = vpop.permute.xlu0 %5868
      %5870 = vrot.lane.b32.xlu0 %v5574, 120
      %v5871 = vpop.permute.xlu0 %5870
      %5872 = vrot.lane.b32.xlu0 %v5575, 120
      %v5873 = vpop.permute.xlu0 %5872
      %5874 = vrot.lane.b32.xlu0 %v5576, 120
      %v5875 = vpop.permute.xlu0 %5874
      %5876 = vrot.lane.b32.xlu0 %v5577, 120
      %v5877 = vpop.permute.xlu0 %5876
      %5878 = vrot.lane.b32.xlu0 %v5578, 120
      %v5879 = vpop.permute.xlu0 %5878
      %5880 = vrot.lane.b32.xlu0 %v5579, 120
      %v5881 = vpop.permute.xlu0 %5880
      %5882 = vrot.lane.b32.xlu0 %v5580, 120
      %v5883 = vpop.permute.xlu0 %5882
      %5884 = vrot.lane.b32.xlu0 %v5581, 120
      %v5885 = vpop.permute.xlu0 %5884
      %5886 = vrot.lane.b32.xlu0 %v5582, 120
      %v5887 = vpop.permute.xlu0 %5886
      %5888 = vrot.lane.b32.xlu0 %v5583, 120
      %v5889 = vpop.permute.xlu0 %5888
      %5890 = vrot.lane.b32.xlu0 %v5584, 120
      %v5891 = vpop.permute.xlu0 %5890
      %5892 = vrot.lane.b32.xlu0 %v5585, 120
      %v5893 = vpop.permute.xlu0 %5892
      %5894 = vrot.lane.b32.xlu0 %v5586, 120
      %v5895 = vpop.permute.xlu0 %5894
      %5896 = vrot.lane.b32.xlu0 %v5587, 120
      %v5897 = vpop.permute.xlu0 %5896
      %5898 = vrot.lane.b32.xlu0 %v5588, 120
      %v5899 = vpop.permute.xlu0 %5898
      %5900 = vrot.lane.b32.xlu0 %v5589, 120
      %v5901 = vpop.permute.xlu0 %5900
      %5902 = vrot.lane.b32.xlu0 %v5590, 120
      %v5903 = vpop.permute.xlu0 %5902
      %5904 = vrot.lane.b32.xlu0 %v5591, 120
      %v5905 = vpop.permute.xlu0 %5904
      %5906 = vrot.lane.b32.xlu0 %v5592, 120
      %v5907 = vpop.permute.xlu0 %5906
      %5908 = vrot.lane.b32.xlu0 %v5593, 120
      %v5909 = vpop.permute.xlu0 %5908
      %5910 = vrot.lane.b32.xlu0 %v5594, 120
      %v5911 = vpop.permute.xlu0 %5910
      %5912 = vrot.lane.b32.xlu0 %v5595, 120
      %v5913 = vpop.permute.xlu0 %5912
      %5914 = vrot.lane.b32.xlu0 %v5596, 120
      %v5915 = vpop.permute.xlu0 %5914
      %5916 = vrot.lane.b32.xlu0 %v5597, 120
      %v5917 = vpop.permute.xlu0 %5916
      %v5950 = vmul.f32 %v740, %v5855
      %v5951 = vmul.f32 %v742, %v5857
      %v5952 = vmul.f32 %v744, %v5859
      %v5953 = vmul.f32 %v746, %v5861
      %v5954 = vmul.f32 %v748, %v5863
      %v5955 = vmul.f32 %v750, %v5865
      %v5956 = vmul.f32 %v752, %v5867
      %v5957 = vmul.f32 %v754, %v5869
      %v5958 = vmul.f32 %v756, %v5871
      %v5959 = vmul.f32 %v758, %v5873
      %v5960 = vmul.f32 %v760, %v5875
      %v5961 = vmul.f32 %v762, %v5877
      %v5962 = vmul.f32 %v764, %v5879
      %v5963 = vmul.f32 %v766, %v5881
      %v5964 = vmul.f32 %v768, %v5883
      %v5965 = vmul.f32 %v770, %v5885
      %v5966 = vmul.f32 %v772, %v5887
      %v5967 = vmul.f32 %v774, %v5889
      %v5968 = vmul.f32 %v776, %v5891
      %v5969 = vmul.f32 %v778, %v5893
      %v5970 = vmul.f32 %v780, %v5895
      %v5971 = vmul.f32 %v782, %v5897
      %v5972 = vmul.f32 %v784, %v5899
      %v5973 = vmul.f32 %v786, %v5901
      %v5974 = vmul.f32 %v788, %v5903
      %v5975 = vmul.f32 %v790, %v5905
      %v5976 = vmul.f32 %v792, %v5907
      %v5977 = vmul.f32 %v794, %v5909
      %v5978 = vmul.f32 %v796, %v5911
      %v5979 = vmul.f32 %v798, %v5913
      %v5980 = vmul.f32 %v800, %v5915
      %v5981 = vmul.f32 %v802, %v5917
      %v5982 = vadd.f32 %v5790, %v5950
      %v5983 = vadd.f32 %v5791, %v5951
      %v5984 = vadd.f32 %v5792, %v5952
      %v5985 = vadd.f32 %v5793, %v5953
      %v5986 = vadd.f32 %v5794, %v5954
      %v5987 = vadd.f32 %v5795, %v5955
      %v5988 = vadd.f32 %v5796, %v5956
      %v5989 = vadd.f32 %v5797, %v5957
      %v5990 = vadd.f32 %v5798, %v5958
      %v5991 = vadd.f32 %v5799, %v5959
      %v5992 = vadd.f32 %v5800, %v5960
      %v5993 = vadd.f32 %v5801, %v5961
      %v5994 = vadd.f32 %v5802, %v5962
      %v5995 = vadd.f32 %v5803, %v5963
      %v5996 = vadd.f32 %v5804, %v5964
      %v5997 = vadd.f32 %v5805, %v5965
      %v5998 = vadd.f32 %v5806, %v5966
      %v5999 = vadd.f32 %v5807, %v5967
      %v6000 = vadd.f32 %v5808, %v5968
      %v6001 = vadd.f32 %v5809, %v5969
      %v6002 = vadd.f32 %v5810, %v5970
      %v6003 = vadd.f32 %v5811, %v5971
      %v6004 = vadd.f32 %v5812, %v5972
      %v6005 = vadd.f32 %v5813, %v5973
      %v6006 = vadd.f32 %v5814, %v5974
      %v6007 = vadd.f32 %v5815, %v5975
      %v6008 = vadd.f32 %v5816, %v5976
      %v6009 = vadd.f32 %v5817, %v5977
      %v6010 = vadd.f32 %v5818, %v5978
      %v6011 = vadd.f32 %v5819, %v5979
      %v6012 = vadd.f32 %v5820, %v5980
      %v6013 = vadd.f32 %v5821, %v5981
      %6046 = vrot.lane.b32.xlu0 %v5982, 120
      %v6047 = vpop.permute.xlu0 %6046
      %6048 = vrot.lane.b32.xlu0 %v5983, 120
      %v6049 = vpop.permute.xlu0 %6048
      %6050 = vrot.lane.b32.xlu0 %v5984, 120
      %v6051 = vpop.permute.xlu0 %6050
      %6052 = vrot.lane.b32.xlu0 %v5985, 120
      %v6053 = vpop.permute.xlu0 %6052
      %6054 = vrot.lane.b32.xlu0 %v5986, 120
      %v6055 = vpop.permute.xlu0 %6054
      %6056 = vrot.lane.b32.xlu0 %v5987, 120
      %v6057 = vpop.permute.xlu0 %6056
      %6058 = vrot.lane.b32.xlu0 %v5988, 120
      %v6059 = vpop.permute.xlu0 %6058
      %6060 = vrot.lane.b32.xlu0 %v5989, 120
      %v6061 = vpop.permute.xlu0 %6060
      %6062 = vrot.lane.b32.xlu0 %v5990, 120
      %v6063 = vpop.permute.xlu0 %6062
      %6064 = vrot.lane.b32.xlu0 %v5991, 120
      %v6065 = vpop.permute.xlu0 %6064
      %6066 = vrot.lane.b32.xlu0 %v5992, 120
      %v6067 = vpop.permute.xlu0 %6066
      %6068 = vrot.lane.b32.xlu0 %v5993, 120
      %v6069 = vpop.permute.xlu0 %6068
      %6070 = vrot.lane.b32.xlu0 %v5994, 120
      %v6071 = vpop.permute.xlu0 %6070
      %6072 = vrot.lane.b32.xlu0 %v5995, 120
      %v6073 = vpop.permute.xlu0 %6072
      %6074 = vrot.lane.b32.xlu0 %v5996, 120
      %v6075 = vpop.permute.xlu0 %6074
      %6076 = vrot.lane.b32.xlu0 %v5997, 120
      %v6077 = vpop.permute.xlu0 %6076
      %6078 = vrot.lane.b32.xlu0 %v5998, 120
      %v6079 = vpop.permute.xlu0 %6078
      %6080 = vrot.lane.b32.xlu0 %v5999, 120
      %v6081 = vpop.permute.xlu0 %6080
      %6082 = vrot.lane.b32.xlu0 %v6000, 120
      %v6083 = vpop.permute.xlu0 %6082
      %6084 = vrot.lane.b32.xlu0 %v6001, 120
      %v6085 = vpop.permute.xlu0 %6084
      %6086 = vrot.lane.b32.xlu0 %v6002, 120
      %v6087 = vpop.permute.xlu0 %6086
      %6088 = vrot.lane.b32.xlu0 %v6003, 120
      %v6089 = vpop.permute.xlu0 %6088
      %6090 = vrot.lane.b32.xlu0 %v6004, 120
      %v6091 = vpop.permute.xlu0 %6090
      %6092 = vrot.lane.b32.xlu0 %v6005, 120
      %v6093 = vpop.permute.xlu0 %6092
      %6094 = vrot.lane.b32.xlu0 %v6006, 120
      %v6095 = vpop.permute.xlu0 %6094
      %6096 = vrot.lane.b32.xlu0 %v6007, 120
      %v6097 = vpop.permute.xlu0 %6096
      %6098 = vrot.lane.b32.xlu0 %v6008, 120
      %v6099 = vpop.permute.xlu0 %6098
      %6100 = vrot.lane.b32.xlu0 %v6009, 120
      %v6101 = vpop.permute.xlu0 %6100
      %6102 = vrot.lane.b32.xlu0 %v6010, 120
      %v6103 = vpop.permute.xlu0 %6102
      %6104 = vrot.lane.b32.xlu0 %v6011, 120
      %v6105 = vpop.permute.xlu0 %6104
      %6106 = vrot.lane.b32.xlu0 %v6012, 120
      %v6107 = vpop.permute.xlu0 %6106
      %6108 = vrot.lane.b32.xlu0 %v6013, 120
      %v6109 = vpop.permute.xlu0 %6108
      %6142 = vst.msk [vmem:[%s248] sm:$0xff] %vm803, %v6047
      %6143 = vst.msk [vmem:[%s248 + $0x8] sm:$0xff] %vm803, %v6049
      %6144 = vst.msk [vmem:[%s248 + $0x10] sm:$0xff] %vm803, %v6051
      %6145 = vst.msk [vmem:[%s248 + $0x18] sm:$0xff] %vm803, %v6053
      %6146 = vst.msk [vmem:[%s248 + $0x20] sm:$0xff] %vm803, %v6055
      %6147 = vst.msk [vmem:[%s248 + $0x28] sm:$0xff] %vm803, %v6057
      %6148 = vst.msk [vmem:[%s248 + $0x30] sm:$0xff] %vm803, %v6059
      %6149 = vst.msk [vmem:[%s248 + $0x38] sm:$0xff] %vm803, %v6061
      %6150 = vst.msk [vmem:[%s248 + $0x40] sm:$0xff] %vm803, %v6063
      %6151 = vst.msk [vmem:[%s248 + $0x48] sm:$0xff] %vm803, %v6065
      %6152 = vst.msk [vmem:[%s248 + $0x50] sm:$0xff] %vm803, %v6067
      %6153 = vst.msk [vmem:[%s248 + $0x58] sm:$0xff] %vm803, %v6069
      %6154 = vst.msk [vmem:[%s248 + $0x60] sm:$0xff] %vm803, %v6071
      %6155 = vst.msk [vmem:[%s248 + $0x68] sm:$0xff] %vm803, %v6073
      %6156 = vst.msk [vmem:[%s248 + $0x70] sm:$0xff] %vm803, %v6075
      %6157 = vst.msk [vmem:[%s248 + $0x78] sm:$0xff] %vm803, %v6077
      %6158 = vst.msk [vmem:[%s248 + $0x80] sm:$0xff] %vm803, %v6079
      %6159 = vst.msk [vmem:[%s248 + $0x88] sm:$0xff] %vm803, %v6081
      %6160 = vst.msk [vmem:[%s248 + $0x90] sm:$0xff] %vm803, %v6083
      %6161 = vst.msk [vmem:[%s248 + $0x98] sm:$0xff] %vm803, %v6085
      %6162 = vst.msk [vmem:[%s248 + $0xa0] sm:$0xff] %vm803, %v6087
      %6163 = vst.msk [vmem:[%s248 + $0xa8] sm:$0xff] %vm803, %v6089
      %6164 = vst.msk [vmem:[%s248 + $0xb0] sm:$0xff] %vm803, %v6091
      %6165 = vst.msk [vmem:[%s248 + $0xb8] sm:$0xff] %vm803, %v6093
      %6166 = vst.msk [vmem:[%s248 + $0xc0] sm:$0xff] %vm803, %v6095
      %6167 = vst.msk [vmem:[%s248 + $0xc8] sm:$0xff] %vm803, %v6097
      %6168 = vst.msk [vmem:[%s248 + $0xd0] sm:$0xff] %vm803, %v6099
      %6169 = vst.msk [vmem:[%s248 + $0xd8] sm:$0xff] %vm803, %v6101
      %6170 = vst.msk [vmem:[%s248 + $0xe0] sm:$0xff] %vm803, %v6103
      %6171 = vst.msk [vmem:[%s248 + $0xe8] sm:$0xff] %vm803, %v6105
      %6172 = vst.msk [vmem:[%s248 + $0xf0] sm:$0xff] %vm803, %v6107
      %6173 = vst.msk [vmem:[%s248 + $0xf8] sm:$0xff] %vm803, %v6109
      %s6174 = smul.u32 32, %s16
      %p6175 = scmp.lt.s32.totalorder %s6174, 63
      %s6176 = scalar_select %p6175, %s6174, 63
      %s6177 = smul.addr %s6176, 8
      %s6178 = scalar_lea.vmem %s5, %s6177
      // Predicated region
      $region41: #{conv_gru_cell.1} parent=39 // pred_check
        %p6179 = pneg %p149
      $region42: #{conv_gru_cell.1} parent=39 // pred_check_branch
        %6181 = sbr.rel (%p6179) target = $region44
      $region43: #{conv_gru_cell.1} parent=39 // pred_region
        %s6182 = smul.u32 32, %s16
      $region44: #{conv_gru_cell.1} parent=39 // pred_fallthru
        _
    $region40: #{conv_gru_cell.1} parent=5 // pred_fallthru
      _
    %p6183 = scmp.le.s32.totalorder 2, %s11
    // Predicated region
    $region45: #{conv_gru_cell.1} parent=5 // pred_check
      %p6184 = pneg %p6183
    $region46: #{conv_gru_cell.1} parent=5 // pred_check_branch
      %6186 = sbr.rel (%p6184) target = $region48
    $region47: #{conv_gru_cell.1} parent=5 // pred_region
      %s6187 = ssub.s32 %s11, 2
      // Predicated region
      $region49: #{conv_gru_cell.1} parent=47 // pred_check
        %p6188 = pneg %p155
      $region50: #{conv_gru_cell.1} parent=47 // pred_check_branch
        %6190 = sbr.rel (%p6188) target = $region52
      $region51: #{conv_gru_cell.1} parent=47 // pred_region
        %s6191 = smul.u32 32, %s17
        %p6192 = scmp.lt.s32.totalorder %s6191, 63
        %s6193 = scalar_select %p6192, %s6191, 63
        %s6194 = smul.addr %s6193, 8
        %s6195 = scalar_lea.vmem %s5, %s6194
      $region52: #{conv_gru_cell.1} parent=47 // pred_fallthru
        _
    $region48: #{conv_gru_cell.1} parent=5 // pred_fallthru
      _
  $region6: #{conv_gru_cell.1} parent=0 // loop_footer
    %s15 = sadd.s32 1, %s11
  $region7: #{conv_gru_cell.1} parent=0 // loop_footer_branch
    %10 = sbr.rel target = $region3
  $region8: #{conv_gru_cell.1} parent=0 // loop_exit
    _

</llo_original>
